<compile_context>
chip_gen: v7x
topology: tpu7x:2x2x1
jax: 0.10.0
libtpu: 0.0.40
codegen_flags: <defaults>
</compile_context>

<pallas_src>
import jax
import jax.numpy as jnp
import numpy as np
from jax.experimental import pallas as pl
from jax.experimental.pallas import tpu as pltpu

FEATURES = 32   # stand-in for the original 510 (small synthetic shapes)
BATCH = 2       # in_size
T_STEPS = 8     # number of chunks (sequence length)


# ---------------------------------------------------------------------------
# Pallas kernel: entire sequence in one invocation.
# ---------------------------------------------------------------------------
def seq_kernel(x_ref, wx1_ref, wh1_ref, b1_ref, wx2_ref, wh2_ref, b2_ref,
               wl_ref, bl_ref, out_ref):
    B, T = out_ref.shape          # static
    F = x_ref.shape[-1]           # static

    # --- non-recurrent work, hoisted off the serial critical path ----------
    # (T*B, F) @ (F, 4F) + (1, 4F): lstm1's x-projection for every time step.
    xproj = (jnp.dot(x_ref[...], wx1_ref[...],
                     preferred_element_type=jnp.float32) + b1_ref[...])

    wh1 = wh1_ref[...]            # (F, 4F)
    wx2 = wx2_ref[...]            # (F, 4F)
    wh2 = wh2_ref[...]            # (F, 4F)
    b2 = b2_ref[...]              # (1, 4F)
    wl = wl_ref[...]              # (1, F)
    bl = bl_ref[0, 0]             # scalar (SMEM)

    def gates_to_hc(gates, c):
        # PyTorch LSTMCell gate order i, f, g, o — static lane slices.
        i = jax.nn.sigmoid(gates[:, 0 * F:1 * F])
        f = jax.nn.sigmoid(gates[:, 1 * F:2 * F])
        g = jnp.tanh(gates[:, 2 * F:3 * F])
        o = jax.nn.sigmoid(gates[:, 3 * F:4 * F])
        c_new = f * c + i * g
        h_new = o * jnp.tanh(c_new)
        return h_new, c_new

    h1 = jnp.zeros((B, F), jnp.float32)
    c1 = jnp.zeros((B, F), jnp.float32)
    h2 = jnp.zeros((B, F), jnp.float32)
    c2 = jnp.zeros((B, F), jnp.float32)

    out_acc = jnp.zeros((B, T), jnp.float32)
    col = jax.lax.broadcasted_iota(jnp.int32, (B, T), 1)

    # T is small and static -> full unroll at trace time (equivalent to
    # lax.fori_loop(..., unroll=True), but lets carries stay plain values).
    for t in range(T):
        g1 = xproj[t * B:(t + 1) * B, :] + jnp.dot(
            h1, wh1, preferred_element_type=jnp.float32)
        h1, c1 = gates_to_hc(g1, c1)

        g2 = (jnp.dot(h1, wx2, preferred_element_type=jnp.float32)
              + jnp.dot(h2, wh2, preferred_element_type=jnp.float32) + b2)
        h2, c2 = gates_to_hc(g2, c2)

        # Linear(F -> 1) on VPU/XLU: broadcast-multiply + lane reduction.
        y = jnp.sum(h2 * wl, axis=-1, keepdims=True) + bl          # (B, 1)
        out_acc = out_acc + jnp.where(col == t, y, 0.0)

    out_ref[...] = out_acc.astype(out_ref.dtype)   # single lane-dense store


@jax.jit
def sequence_forward(x, wx1, wh1, b1, wx2, wh2, b2, wl, bl):
    """x: (T*B, F) like the torch input.  Returns (B, T)."""
    TB, _ = x.shape
    T = TB // BATCH

    vmem = pl.BlockSpec(memory_space=pltpu.MemorySpace.VMEM)
    smem = pl.BlockSpec(memory_space=pltpu.MemorySpace.SMEM)

    return pl.pallas_call(
        seq_kernel,
        out_shape=jax.ShapeDtypeStruct((BATCH, T), jnp.float32),
        in_specs=[vmem,              # x    (T*B, F)
                  vmem, vmem, vmem,  # wx1, wh1, b1
                  vmem, vmem, vmem,  # wx2, wh2, b2
                  vmem,              # wl   (1, F)
                  smem],             # bl   (1, 1) scalar
        out_specs=vmem,
    )(x, wx1, wh1, b1, wx2, wh2, b2, wl, bl)


# ---------------------------------------------------------------------------
# Pure-JAX reference (directly mirrors torch LSTMCell / Linear math).
# ---------------------------------------------------------------------------
def reference_forward(x, w_ih1, w_hh1, b_ih1, b_hh1,
                      w_ih2, w_hh2, b_ih2, b_hh2, w_lin, b_lin):
    F = FEATURES
    T = x.shape[0] // BATCH
    h1 = jnp.zeros((BATCH, F)); c1 = jnp.zeros((BATCH, F))
    h2 = jnp.zeros((BATCH, F)); c2 = jnp.zeros((BATCH, F))

    def cell(xt, h, c, w_ih, w_hh, b_ih, b_hh):
        gates = xt @ w_ih.T + b_ih + h @ w_hh.T + b_hh
        i, f, g, o = jnp.split(gates, 4, axis=1)
        i, f, o = jax.nn.sigmoid(i), jax.nn.sigmoid(f), jax.nn.sigmoid(o)
        g = jnp.tanh(g)
        c_new = f * c + i * g
        return jnp.tanh(c_new) * o, c_new

    outs = []
    for t in range(T):
        xt = x[t * BATCH:(t + 1) * BATCH]
        h1, c1 = cell(xt, h1, c1, w_ih1, w_hh1, b_ih1, b_hh1)
        h2, c2 = cell(h1, h2, c2, w_ih2, w_hh2, b_ih2, b_hh2)
        outs.append(h2 @ w_lin.T + b_lin)          # (B, 1)
    return jnp.stack(outs, axis=1)[..., 0]         # (B, T)


if __name__ == "__main__":
    F = FEATURES
    key = jax.random.PRNGKey(0)
    ks = jax.random.split(key, 12)
    bound = 1.0 / np.sqrt(F)
    u = lambda k, shape: jax.random.uniform(k, shape, jnp.float32, -bound, bound)

    # PyTorch LSTMCell / Linear parameter shapes.
    w_ih1 = u(ks[0], (4 * F, F)); w_hh1 = u(ks[1], (4 * F, F))
    b_ih1 = u(ks[2], (4 * F,));   b_hh1 = u(ks[3], (4 * F,))
    w_ih2 = u(ks[4], (4 * F, F)); w_hh2 = u(ks[5], (4 * F, F))
    b_ih2 = u(ks[6], (4 * F,));   b_hh2 = u(ks[7], (4 * F,))
    w_lin = u(ks[8], (1, F));     b_lin = u(ks[9], (1,))

    # Input: (T*B, F), matching torch's chunk(dim=0) usage.
    x = jax.random.normal(ks[10], (T_STEPS * BATCH, F), jnp.float32)

    # Fused-gate packing: Wx = W_ih.T (F, 4F) with columns in i,f,g,o order
    # (matches PyTorch's row ordering of weight_ih), combined biases (1, 4F).
    wx1, wh1 = w_ih1.T, w_hh1.T
    wx2, wh2 = w_ih2.T, w_hh2.T
    b1 = (b_ih1 + b_hh1).reshape(1, 4 * F)
    b2 = (b_ih2 + b_hh2).reshape(1, 4 * F)
    wl = w_lin                       # (1, F) row for the VPU mul+reduce
    bl = b_lin.reshape(1, 1)         # (1, 1) scalar -> SMEM

    out = sequence_forward(x, wx1, wh1, b1, wx2, wh2, b2, wl, bl)
    out = jax.block_until_ready(out)

    ref = reference_forward(x, w_ih1, w_hh1, b_ih1, b_hh1,
                            w_ih2, w_hh2, b_ih2, b_hh2, w_lin, b_lin)
    np.testing.assert_allclose(np.asarray(out), np.asarray(ref),
                               rtol=1e-4, atol=1e-5)
    assert out.shape == (BATCH, T_STEPS)
    print("KERNEL_OK")
</pallas_src>

<mosaic_0001>
module attributes {stable_mosaic.version = 11 : i64} {
  func.func @seq_kernel(%arg0: memref<16x32xf32, #tpu.memory_space<vmem>>, %arg1: memref<32x128xf32, #tpu.memory_space<vmem>>, %arg2: memref<32x128xf32, #tpu.memory_space<vmem>>, %arg3: memref<1x128xf32, #tpu.memory_space<vmem>>, %arg4: memref<32x128xf32, #tpu.memory_space<vmem>>, %arg5: memref<32x128xf32, #tpu.memory_space<vmem>>, %arg6: memref<1x128xf32, #tpu.memory_space<vmem>>, %arg7: memref<1x32xf32, #tpu.memory_space<vmem>>, %arg8: memref<1x1xf32, #tpu.memory_space<smem>>, %arg9: memref<2x8xf32, #tpu.memory_space<vmem>>) attributes {dimension_semantics = [], scalar_prefetch = 0 : i64, scratch_operands = 0 : i64, tpu.core_type = #tpu.core_type<tc>} {
    %c0 = arith.constant 0 : index
    %c0_0 = arith.constant 0 : index
    %0 = vector.load %arg0[%c0, %c0_0] : memref<16x32xf32, #tpu.memory_space<vmem>>, vector<16x32xf32>
    %c0_1 = arith.constant 0 : index
    %c0_2 = arith.constant 0 : index
    %1 = vector.load %arg1[%c0_1, %c0_2] : memref<32x128xf32, #tpu.memory_space<vmem>>, vector<32x128xf32>
    %cst = arith.constant dense<0.000000e+00> : vector<16x128xf32>
    %2 = tpu.matmul %0, %1, %cst {dimension_numbers = #tpu.dot_dimension_numbers<[1], [0], [0], [1], [0, 0, 1, 1], [], []>} : vector<16x32xf32>, vector<32x128xf32>, vector<16x128xf32> -> vector<16x128xf32>
    %c0_3 = arith.constant 0 : index
    %c0_4 = arith.constant 0 : index
    %3 = vector.load %arg3[%c0_3, %c0_4] : memref<1x128xf32, #tpu.memory_space<vmem>>, vector<1x128xf32>
    %4 = vector.broadcast %3 : vector<1x128xf32> to vector<16x128xf32>
    %5 = arith.addf %2, %4 : vector<16x128xf32>
    %c0_5 = arith.constant 0 : index
    %c0_6 = arith.constant 0 : index
    %6 = vector.load %arg2[%c0_5, %c0_6] : memref<32x128xf32, #tpu.memory_space<vmem>>, vector<32x128xf32>
    %c0_7 = arith.constant 0 : index
    %c0_8 = arith.constant 0 : index
    %7 = vector.load %arg4[%c0_7, %c0_8] : memref<32x128xf32, #tpu.memory_space<vmem>>, vector<32x128xf32>
    %c0_9 = arith.constant 0 : index
    %c0_10 = arith.constant 0 : index
    %8 = vector.load %arg5[%c0_9, %c0_10] : memref<32x128xf32, #tpu.memory_space<vmem>>, vector<32x128xf32>
    %c0_11 = arith.constant 0 : index
    %c0_12 = arith.constant 0 : index
    %9 = vector.load %arg6[%c0_11, %c0_12] : memref<1x128xf32, #tpu.memory_space<vmem>>, vector<1x128xf32>
    %c0_13 = arith.constant 0 : index
    %c0_14 = arith.constant 0 : index
    %10 = vector.load %arg7[%c0_13, %c0_14] : memref<1x32xf32, #tpu.memory_space<vmem>>, vector<1x32xf32>
    %c0_15 = arith.constant 0 : index
    %c0_16 = arith.constant 0 : index
    %11 = memref.load %arg8[%c0_15, %c0_16] : memref<1x1xf32, #tpu.memory_space<smem>>
    %cst_17 = arith.constant 0.000000e+00 : f32
    %12 = vector.broadcast %cst_17 : f32 to vector<2x32xf32>
    %cst_18 = arith.constant 0.000000e+00 : f32
    %13 = vector.broadcast %cst_18 : f32 to vector<2x32xf32>
    %cst_19 = arith.constant 0.000000e+00 : f32
    %14 = vector.broadcast %cst_19 : f32 to vector<2x32xf32>
    %cst_20 = arith.constant 0.000000e+00 : f32
    %15 = vector.broadcast %cst_20 : f32 to vector<2x32xf32>
    %cst_21 = arith.constant 0.000000e+00 : f32
    %16 = vector.broadcast %cst_21 : f32 to vector<2x8xf32>
    %17 = tpu.iota {dimensions = array<i32: 1>} : vector<2x8xi32>
    %18 = vector.extract_strided_slice %5 {offsets = [0, 0], sizes = [2, 128], strides = [1, 1]} : vector<16x128xf32> to vector<2x128xf32>
    %cst_22 = arith.constant dense<0.000000e+00> : vector<2x128xf32>
    %19 = tpu.matmul %12, %6, %cst_22 {dimension_numbers = #tpu.dot_dimension_numbers<[1], [0], [0], [1], [0, 0, 1, 1], [], []>} : vector<2x32xf32>, vector<32x128xf32>, vector<2x128xf32> -> vector<2x128xf32>
    %20 = arith.addf %18, %19 : vector<2x128xf32>
    %21 = vector.extract_strided_slice %20 {offsets = [0, 0], sizes = [2, 32], strides = [1, 1]} : vector<2x128xf32> to vector<2x32xf32>
    %22 = arith.negf %21 : vector<2x32xf32>
    %23 = math.exp %22 : vector<2x32xf32>
    %cst_23 = arith.constant 1.000000e+00 : f32
    %24 = vector.broadcast %cst_23 : f32 to vector<2x32xf32>
    %25 = arith.addf %24, %23 : vector<2x32xf32>
    %26 = arith.divf %24, %25 : vector<2x32xf32>
    %27 = vector.extract_strided_slice %20 {offsets = [0, 32], sizes = [2, 32], strides = [1, 1]} : vector<2x128xf32> to vector<2x32xf32>
    %28 = arith.negf %27 : vector<2x32xf32>
    %29 = math.exp %28 : vector<2x32xf32>
    %cst_24 = arith.constant 1.000000e+00 : f32
    %30 = vector.broadcast %cst_24 : f32 to vector<2x32xf32>
    %31 = arith.addf %30, %29 : vector<2x32xf32>
    %32 = arith.divf %30, %31 : vector<2x32xf32>
    %33 = vector.extract_strided_slice %20 {offsets = [0, 64], sizes = [2, 32], strides = [1, 1]} : vector<2x128xf32> to vector<2x32xf32>
    %34 = math.tanh %33 : vector<2x32xf32>
    %35 = vector.extract_strided_slice %20 {offsets = [0, 96], sizes = [2, 32], strides = [1, 1]} : vector<2x128xf32> to vector<2x32xf32>
    %36 = arith.negf %35 : vector<2x32xf32>
    %37 = math.exp %36 : vector<2x32xf32>
    %cst_25 = arith.constant 1.000000e+00 : f32
    %38 = vector.broadcast %cst_25 : f32 to vector<2x32xf32>
    %39 = arith.addf %38, %37 : vector<2x32xf32>
    %40 = arith.divf %38, %39 : vector<2x32xf32>
    %41 = arith.mulf %32, %13 : vector<2x32xf32>
    %42 = arith.mulf %26, %34 : vector<2x32xf32>
    %43 = arith.addf %41, %42 : vector<2x32xf32>
    %44 = math.tanh %43 : vector<2x32xf32>
    %45 = arith.mulf %40, %44 : vector<2x32xf32>
    %cst_26 = arith.constant dense<0.000000e+00> : vector<2x128xf32>
    %46 = tpu.matmul %45, %7, %cst_26 {dimension_numbers = #tpu.dot_dimension_numbers<[1], [0], [0], [1], [0, 0, 1, 1], [], []>} : vector<2x32xf32>, vector<32x128xf32>, vector<2x128xf32> -> vector<2x128xf32>
    %cst_27 = arith.constant dense<0.000000e+00> : vector<2x128xf32>
    %47 = tpu.matmul %14, %8, %cst_27 {dimension_numbers = #tpu.dot_dimension_numbers<[1], [0], [0], [1], [0, 0, 1, 1], [], []>} : vector<2x32xf32>, vector<32x128xf32>, vector<2x128xf32> -> vector<2x128xf32>
    %48 = arith.addf %46, %47 : vector<2x128xf32>
    %49 = vector.broadcast %9 : vector<1x128xf32> to vector<2x128xf32>
    %50 = arith.addf %48, %49 : vector<2x128xf32>
    %51 = vector.extract_strided_slice %50 {offsets = [0, 0], sizes = [2, 32], strides = [1, 1]} : vector<2x128xf32> to vector<2x32xf32>
    %52 = arith.negf %51 : vector<2x32xf32>
    %53 = math.exp %52 : vector<2x32xf32>
    %cst_28 = arith.constant 1.000000e+00 : f32
    %54 = vector.broadcast %cst_28 : f32 to vector<2x32xf32>
    %55 = arith.addf %54, %53 : vector<2x32xf32>
    %56 = arith.divf %54, %55 : vector<2x32xf32>
    %57 = vector.extract_strided_slice %50 {offsets = [0, 32], sizes = [2, 32], strides = [1, 1]} : vector<2x128xf32> to vector<2x32xf32>
    %58 = arith.negf %57 : vector<2x32xf32>
    %59 = math.exp %58 : vector<2x32xf32>
    %cst_29 = arith.constant 1.000000e+00 : f32
    %60 = vector.broadcast %cst_29 : f32 to vector<2x32xf32>
    %61 = arith.addf %60, %59 : vector<2x32xf32>
    %62 = arith.divf %60, %61 : vector<2x32xf32>
    %63 = vector.extract_strided_slice %50 {offsets = [0, 64], sizes = [2, 32], strides = [1, 1]} : vector<2x128xf32> to vector<2x32xf32>
    %64 = math.tanh %63 : vector<2x32xf32>
    %65 = vector.extract_strided_slice %50 {offsets = [0, 96], sizes = [2, 32], strides = [1, 1]} : vector<2x128xf32> to vector<2x32xf32>
    %66 = arith.negf %65 : vector<2x32xf32>
    %67 = math.exp %66 : vector<2x32xf32>
    %cst_30 = arith.constant 1.000000e+00 : f32
    %68 = vector.broadcast %cst_30 : f32 to vector<2x32xf32>
    %69 = arith.addf %68, %67 : vector<2x32xf32>
    %70 = arith.divf %68, %69 : vector<2x32xf32>
    %71 = arith.mulf %62, %15 : vector<2x32xf32>
    %72 = arith.mulf %56, %64 : vector<2x32xf32>
    %73 = arith.addf %71, %72 : vector<2x32xf32>
    %74 = math.tanh %73 : vector<2x32xf32>
    %75 = arith.mulf %70, %74 : vector<2x32xf32>
    %76 = vector.broadcast %10 : vector<1x32xf32> to vector<2x32xf32>
    %77 = arith.mulf %75, %76 : vector<2x32xf32>
    %cst_31 = arith.constant dense<0.000000e+00> : vector<2xf32>
    %78 = vector.multi_reduction <add>, %77, %cst_31 [1] : vector<2x32xf32> to vector<2xf32>
    %79 = vector.shape_cast %78 : vector<2xf32> to vector<2x1xf32>
    %80 = vector.broadcast %11 : f32 to vector<2x1xf32>
    %81 = arith.addf %79, %80 : vector<2x1xf32>
    %c0_i32 = arith.constant 0 : i32
    %82 = vector.broadcast %c0_i32 : i32 to vector<2x8xi32>
    %83 = arith.cmpi eq, %17, %82 : vector<2x8xi32>
    %cst_32 = arith.constant 0.000000e+00 : f32
    %84 = vector.shape_cast %81 : vector<2x1xf32> to vector<2x1xf32>
    %85 = vector.broadcast %84 : vector<2x1xf32> to vector<2x8xf32>
    %86 = vector.broadcast %cst_32 : f32 to vector<2x8xf32>
    %87 = arith.select %83, %85, %86 : vector<2x8xi1>, vector<2x8xf32>
    %88 = arith.addf %16, %87 : vector<2x8xf32>
    %89 = vector.extract_strided_slice %5 {offsets = [2, 0], sizes = [2, 128], strides = [1, 1]} : vector<16x128xf32> to vector<2x128xf32>
    %cst_33 = arith.constant dense<0.000000e+00> : vector<2x128xf32>
    %90 = tpu.matmul %45, %6, %cst_33 {dimension_numbers = #tpu.dot_dimension_numbers<[1], [0], [0], [1], [0, 0, 1, 1], [], []>} : vector<2x32xf32>, vector<32x128xf32>, vector<2x128xf32> -> vector<2x128xf32>
    %91 = arith.addf %89, %90 : vector<2x128xf32>
    %92 = vector.extract_strided_slice %91 {offsets = [0, 0], sizes = [2, 32], strides = [1, 1]} : vector<2x128xf32> to vector<2x32xf32>
    %93 = arith.negf %92 : vector<2x32xf32>
    %94 = math.exp %93 : vector<2x32xf32>
    %cst_34 = arith.constant 1.000000e+00 : f32
    %95 = vector.broadcast %cst_34 : f32 to vector<2x32xf32>
    %96 = arith.addf %95, %94 : vector<2x32xf32>
    %97 = arith.divf %95, %96 : vector<2x32xf32>
    %98 = vector.extract_strided_slice %91 {offsets = [0, 32], sizes = [2, 32], strides = [1, 1]} : vector<2x128xf32> to vector<2x32xf32>
    %99 = arith.negf %98 : vector<2x32xf32>
    %100 = math.exp %99 : vector<2x32xf32>
    %cst_35 = arith.constant 1.000000e+00 : f32
    %101 = vector.broadcast %cst_35 : f32 to vector<2x32xf32>
    %102 = arith.addf %101, %100 : vector<2x32xf32>
    %103 = arith.divf %101, %102 : vector<2x32xf32>
    %104 = vector.extract_strided_slice %91 {offsets = [0, 64], sizes = [2, 32], strides = [1, 1]} : vector<2x128xf32> to vector<2x32xf32>
    %105 = math.tanh %104 : vector<2x32xf32>
    %106 = vector.extract_strided_slice %91 {offsets = [0, 96], sizes = [2, 32], strides = [1, 1]} : vector<2x128xf32> to vector<2x32xf32>
    %107 = arith.negf %106 : vector<2x32xf32>
    %108 = math.exp %107 : vector<2x32xf32>
    %cst_36 = arith.constant 1.000000e+00 : f32
    %109 = vector.broadcast %cst_36 : f32 to vector<2x32xf32>
    %110 = arith.addf %109, %108 : vector<2x32xf32>
    %111 = arith.divf %109, %110 : vector<2x32xf32>
    %112 = arith.mulf %103, %43 : vector<2x32xf32>
    %113 = arith.mulf %97, %105 : vector<2x32xf32>
    %114 = arith.addf %112, %113 : vector<2x32xf32>
    %115 = math.tanh %114 : vector<2x32xf32>
    %116 = arith.mulf %111, %115 : vector<2x32xf32>
    %cst_37 = arith.constant dense<0.000000e+00> : vector<2x128xf32>
    %117 = tpu.matmul %116, %7, %cst_37 {dimension_numbers = #tpu.dot_dimension_numbers<[1], [0], [0], [1], [0, 0, 1, 1], [], []>} : vector<2x32xf32>, vector<32x128xf32>, vector<2x128xf32> -> vector<2x128xf32>
    %cst_38 = arith.constant dense<0.000000e+00> : vector<2x128xf32>
    %118 = tpu.matmul %75, %8, %cst_38 {dimension_numbers = #tpu.dot_dimension_numbers<[1], [0], [0], [1], [0, 0, 1, 1], [], []>} : vector<2x32xf32>, vector<32x128xf32>, vector<2x128xf32> -> vector<2x128xf32>
    %119 = arith.addf %117, %118 : vector<2x128xf32>
    %120 = vector.broadcast %9 : vector<1x128xf32> to vector<2x128xf32>
    %121 = arith.addf %119, %120 : vector<2x128xf32>
    %122 = vector.extract_strided_slice %121 {offsets = [0, 0], sizes = [2, 32], strides = [1, 1]} : vector<2x128xf32> to vector<2x32xf32>
    %123 = arith.negf %122 : vector<2x32xf32>
    %124 = math.exp %123 : vector<2x32xf32>
    %cst_39 = arith.constant 1.000000e+00 : f32
    %125 = vector.broadcast %cst_39 : f32 to vector<2x32xf32>
    %126 = arith.addf %125, %124 : vector<2x32xf32>
    %127 = arith.divf %125, %126 : vector<2x32xf32>
    %128 = vector.extract_strided_slice %121 {offsets = [0, 32], sizes = [2, 32], strides = [1, 1]} : vector<2x128xf32> to vector<2x32xf32>
    %129 = arith.negf %128 : vector<2x32xf32>
    %130 = math.exp %129 : vector<2x32xf32>
    %cst_40 = arith.constant 1.000000e+00 : f32
    %131 = vector.broadcast %cst_40 : f32 to vector<2x32xf32>
    %132 = arith.addf %131, %130 : vector<2x32xf32>
    %133 = arith.divf %131, %132 : vector<2x32xf32>
    %134 = vector.extract_strided_slice %121 {offsets = [0, 64], sizes = [2, 32], strides = [1, 1]} : vector<2x128xf32> to vector<2x32xf32>
    %135 = math.tanh %134 : vector<2x32xf32>
    %136 = vector.extract_strided_slice %121 {offsets = [0, 96], sizes = [2, 32], strides = [1, 1]} : vector<2x128xf32> to vector<2x32xf32>
    %137 = arith.negf %136 : vector<2x32xf32>
    %138 = math.exp %137 : vector<2x32xf32>
    %cst_41 = arith.constant 1.000000e+00 : f32
    %139 = vector.broadcast %cst_41 : f32 to vector<2x32xf32>
    %140 = arith.addf %139, %138 : vector<2x32xf32>
    %141 = arith.divf %139, %140 : vector<2x32xf32>
    %142 = arith.mulf %133, %73 : vector<2x32xf32>
    %143 = arith.mulf %127, %135 : vector<2x32xf32>
    %144 = arith.addf %142, %143 : vector<2x32xf32>
    %145 = math.tanh %144 : vector<2x32xf32>
    %146 = arith.mulf %141, %145 : vector<2x32xf32>
    %147 = vector.broadcast %10 : vector<1x32xf32> to vector<2x32xf32>
    %148 = arith.mulf %146, %147 : vector<2x32xf32>
    %cst_42 = arith.constant dense<0.000000e+00> : vector<2xf32>
    %149 = vector.multi_reduction <add>, %148, %cst_42 [1] : vector<2x32xf32> to vector<2xf32>
    %150 = vector.shape_cast %149 : vector<2xf32> to vector<2x1xf32>
    %151 = vector.broadcast %11 : f32 to vector<2x1xf32>
    %152 = arith.addf %150, %151 : vector<2x1xf32>
    %c1_i32 = arith.constant 1 : i32
    %153 = vector.broadcast %c1_i32 : i32 to vector<2x8xi32>
    %154 = arith.cmpi eq, %17, %153 : vector<2x8xi32>
    %cst_43 = arith.constant 0.000000e+00 : f32
    %155 = vector.shape_cast %152 : vector<2x1xf32> to vector<2x1xf32>
    %156 = vector.broadcast %155 : vector<2x1xf32> to vector<2x8xf32>
    %157 = vector.broadcast %cst_43 : f32 to vector<2x8xf32>
    %158 = arith.select %154, %156, %157 : vector<2x8xi1>, vector<2x8xf32>
    %159 = arith.addf %88, %158 : vector<2x8xf32>
    %160 = vector.extract_strided_slice %5 {offsets = [4, 0], sizes = [2, 128], strides = [1, 1]} : vector<16x128xf32> to vector<2x128xf32>
    %cst_44 = arith.constant dense<0.000000e+00> : vector<2x128xf32>
    %161 = tpu.matmul %116, %6, %cst_44 {dimension_numbers = #tpu.dot_dimension_numbers<[1], [0], [0], [1], [0, 0, 1, 1], [], []>} : vector<2x32xf32>, vector<32x128xf32>, vector<2x128xf32> -> vector<2x128xf32>
    %162 = arith.addf %160, %161 : vector<2x128xf32>
    %163 = vector.extract_strided_slice %162 {offsets = [0, 0], sizes = [2, 32], strides = [1, 1]} : vector<2x128xf32> to vector<2x32xf32>
    %164 = arith.negf %163 : vector<2x32xf32>
    %165 = math.exp %164 : vector<2x32xf32>
    %cst_45 = arith.constant 1.000000e+00 : f32
    %166 = vector.broadcast %cst_45 : f32 to vector<2x32xf32>
    %167 = arith.addf %166, %165 : vector<2x32xf32>
    %168 = arith.divf %166, %167 : vector<2x32xf32>
    %169 = vector.extract_strided_slice %162 {offsets = [0, 32], sizes = [2, 32], strides = [1, 1]} : vector<2x128xf32> to vector<2x32xf32>
    %170 = arith.negf %169 : vector<2x32xf32>
    %171 = math.exp %170 : vector<2x32xf32>
    %cst_46 = arith.constant 1.000000e+00 : f32
    %172 = vector.broadcast %cst_46 : f32 to vector<2x32xf32>
    %173 = arith.addf %172, %171 : vector<2x32xf32>
    %174 = arith.divf %172, %173 : vector<2x32xf32>
    %175 = vector.extract_strided_slice %162 {offsets = [0, 64], sizes = [2, 32], strides = [1, 1]} : vector<2x128xf32> to vector<2x32xf32>
    %176 = math.tanh %175 : vector<2x32xf32>
    %177 = vector.extract_strided_slice %162 {offsets = [0, 96], sizes = [2, 32], strides = [1, 1]} : vector<2x128xf32> to vector<2x32xf32>
    %178 = arith.negf %177 : vector<2x32xf32>
    %179 = math.exp %178 : vector<2x32xf32>
    %cst_47 = arith.constant 1.000000e+00 : f32
    %180 = vector.broadcast %cst_47 : f32 to vector<2x32xf32>
    %181 = arith.addf %180, %179 : vector<2x32xf32>
    %182 = arith.divf %180, %181 : vector<2x32xf32>
    %183 = arith.mulf %174, %114 : vector<2x32xf32>
    %184 = arith.mulf %168, %176 : vector<2x32xf32>
    %185 = arith.addf %183, %184 : vector<2x32xf32>
    %186 = math.tanh %185 : vector<2x32xf32>
    %187 = arith.mulf %182, %186 : vector<2x32xf32>
    %cst_48 = arith.constant dense<0.000000e+00> : vector<2x128xf32>
    %188 = tpu.matmul %187, %7, %cst_48 {dimension_numbers = #tpu.dot_dimension_numbers<[1], [0], [0], [1], [0, 0, 1, 1], [], []>} : vector<2x32xf32>, vector<32x128xf32>, vector<2x128xf32> -> vector<2x128xf32>
    %cst_49 = arith.constant dense<0.000000e+00> : vector<2x128xf32>
    %189 = tpu.matmul %146, %8, %cst_49 {dimension_numbers = #tpu.dot_dimension_numbers<[1], [0], [0], [1], [0, 0, 1, 1], [], []>} : vector<2x32xf32>, vector<32x128xf32>, vector<2x128xf32> -> vector<2x128xf32>
    %190 = arith.addf %188, %189 : vector<2x128xf32>
    %191 = vector.broadcast %9 : vector<1x128xf32> to vector<2x128xf32>
    %192 = arith.addf %190, %191 : vector<2x128xf32>
    %193 = vector.extract_strided_slice %192 {offsets = [0, 0], sizes = [2, 32], strides = [1, 1]} : vector<2x128xf32> to vector<2x32xf32>
    %194 = arith.negf %193 : vector<2x32xf32>
    %195 = math.exp %194 : vector<2x32xf32>
    %cst_50 = arith.constant 1.000000e+00 : f32
    %196 = vector.broadcast %cst_50 : f32 to vector<2x32xf32>
    %197 = arith.addf %196, %195 : vector<2x32xf32>
    %198 = arith.divf %196, %197 : vector<2x32xf32>
    %199 = vector.extract_strided_slice %192 {offsets = [0, 32], sizes = [2, 32], strides = [1, 1]} : vector<2x128xf32> to vector<2x32xf32>
    %200 = arith.negf %199 : vector<2x32xf32>
    %201 = math.exp %200 : vector<2x32xf32>
    %cst_51 = arith.constant 1.000000e+00 : f32
    %202 = vector.broadcast %cst_51 : f32 to vector<2x32xf32>
    %203 = arith.addf %202, %201 : vector<2x32xf32>
    %204 = arith.divf %202, %203 : vector<2x32xf32>
    %205 = vector.extract_strided_slice %192 {offsets = [0, 64], sizes = [2, 32], strides = [1, 1]} : vector<2x128xf32> to vector<2x32xf32>
    %206 = math.tanh %205 : vector<2x32xf32>
    %207 = vector.extract_strided_slice %192 {offsets = [0, 96], sizes = [2, 32], strides = [1, 1]} : vector<2x128xf32> to vector<2x32xf32>
    %208 = arith.negf %207 : vector<2x32xf32>
    %209 = math.exp %208 : vector<2x32xf32>
    %cst_52 = arith.constant 1.000000e+00 : f32
    %210 = vector.broadcast %cst_52 : f32 to vector<2x32xf32>
    %211 = arith.addf %210, %209 : vector<2x32xf32>
    %212 = arith.divf %210, %211 : vector<2x32xf32>
    %213 = arith.mulf %204, %144 : vector<2x32xf32>
    %214 = arith.mulf %198, %206 : vector<2x32xf32>
    %215 = arith.addf %213, %214 : vector<2x32xf32>
    %216 = math.tanh %215 : vector<2x32xf32>
    %217 = arith.mulf %212, %216 : vector<2x32xf32>
    %218 = vector.broadcast %10 : vector<1x32xf32> to vector<2x32xf32>
    %219 = arith.mulf %217, %218 : vector<2x32xf32>
    %cst_53 = arith.constant dense<0.000000e+00> : vector<2xf32>
    %220 = vector.multi_reduction <add>, %219, %cst_53 [1] : vector<2x32xf32> to vector<2xf32>
    %221 = vector.shape_cast %220 : vector<2xf32> to vector<2x1xf32>
    %222 = vector.broadcast %11 : f32 to vector<2x1xf32>
    %223 = arith.addf %221, %222 : vector<2x1xf32>
    %c2_i32 = arith.constant 2 : i32
    %224 = vector.broadcast %c2_i32 : i32 to vector<2x8xi32>
    %225 = arith.cmpi eq, %17, %224 : vector<2x8xi32>
    %cst_54 = arith.constant 0.000000e+00 : f32
    %226 = vector.shape_cast %223 : vector<2x1xf32> to vector<2x1xf32>
    %227 = vector.broadcast %226 : vector<2x1xf32> to vector<2x8xf32>
    %228 = vector.broadcast %cst_54 : f32 to vector<2x8xf32>
    %229 = arith.select %225, %227, %228 : vector<2x8xi1>, vector<2x8xf32>
    %230 = arith.addf %159, %229 : vector<2x8xf32>
    %231 = vector.extract_strided_slice %5 {offsets = [6, 0], sizes = [2, 128], strides = [1, 1]} : vector<16x128xf32> to vector<2x128xf32>
    %cst_55 = arith.constant dense<0.000000e+00> : vector<2x128xf32>
    %232 = tpu.matmul %187, %6, %cst_55 {dimension_numbers = #tpu.dot_dimension_numbers<[1], [0], [0], [1], [0, 0, 1, 1], [], []>} : vector<2x32xf32>, vector<32x128xf32>, vector<2x128xf32> -> vector<2x128xf32>
    %233 = arith.addf %231, %232 : vector<2x128xf32>
    %234 = vector.extract_strided_slice %233 {offsets = [0, 0], sizes = [2, 32], strides = [1, 1]} : vector<2x128xf32> to vector<2x32xf32>
    %235 = arith.negf %234 : vector<2x32xf32>
    %236 = math.exp %235 : vector<2x32xf32>
    %cst_56 = arith.constant 1.000000e+00 : f32
    %237 = vector.broadcast %cst_56 : f32 to vector<2x32xf32>
    %238 = arith.addf %237, %236 : vector<2x32xf32>
    %239 = arith.divf %237, %238 : vector<2x32xf32>
    %240 = vector.extract_strided_slice %233 {offsets = [0, 32], sizes = [2, 32], strides = [1, 1]} : vector<2x128xf32> to vector<2x32xf32>
    %241 = arith.negf %240 : vector<2x32xf32>
    %242 = math.exp %241 : vector<2x32xf32>
    %cst_57 = arith.constant 1.000000e+00 : f32
    %243 = vector.broadcast %cst_57 : f32 to vector<2x32xf32>
    %244 = arith.addf %243, %242 : vector<2x32xf32>
    %245 = arith.divf %243, %244 : vector<2x32xf32>
    %246 = vector.extract_strided_slice %233 {offsets = [0, 64], sizes = [2, 32], strides = [1, 1]} : vector<2x128xf32> to vector<2x32xf32>
    %247 = math.tanh %246 : vector<2x32xf32>
    %248 = vector.extract_strided_slice %233 {offsets = [0, 96], sizes = [2, 32], strides = [1, 1]} : vector<2x128xf32> to vector<2x32xf32>
    %249 = arith.negf %248 : vector<2x32xf32>
    %250 = math.exp %249 : vector<2x32xf32>
    %cst_58 = arith.constant 1.000000e+00 : f32
    %251 = vector.broadcast %cst_58 : f32 to vector<2x32xf32>
    %252 = arith.addf %251, %250 : vector<2x32xf32>
    %253 = arith.divf %251, %252 : vector<2x32xf32>
    %254 = arith.mulf %245, %185 : vector<2x32xf32>
    %255 = arith.mulf %239, %247 : vector<2x32xf32>
    %256 = arith.addf %254, %255 : vector<2x32xf32>
    %257 = math.tanh %256 : vector<2x32xf32>
    %258 = arith.mulf %253, %257 : vector<2x32xf32>
    %cst_59 = arith.constant dense<0.000000e+00> : vector<2x128xf32>
    %259 = tpu.matmul %258, %7, %cst_59 {dimension_numbers = #tpu.dot_dimension_numbers<[1], [0], [0], [1], [0, 0, 1, 1], [], []>} : vector<2x32xf32>, vector<32x128xf32>, vector<2x128xf32> -> vector<2x128xf32>
    %cst_60 = arith.constant dense<0.000000e+00> : vector<2x128xf32>
    %260 = tpu.matmul %217, %8, %cst_60 {dimension_numbers = #tpu.dot_dimension_numbers<[1], [0], [0], [1], [0, 0, 1, 1], [], []>} : vector<2x32xf32>, vector<32x128xf32>, vector<2x128xf32> -> vector<2x128xf32>
    %261 = arith.addf %259, %260 : vector<2x128xf32>
    %262 = vector.broadcast %9 : vector<1x128xf32> to vector<2x128xf32>
    %263 = arith.addf %261, %262 : vector<2x128xf32>
    %264 = vector.extract_strided_slice %263 {offsets = [0, 0], sizes = [2, 32], strides = [1, 1]} : vector<2x128xf32> to vector<2x32xf32>
    %265 = arith.negf %264 : vector<2x32xf32>
    %266 = math.exp %265 : vector<2x32xf32>
    %cst_61 = arith.constant 1.000000e+00 : f32
    %267 = vector.broadcast %cst_61 : f32 to vector<2x32xf32>
    %268 = arith.addf %267, %266 : vector<2x32xf32>
    %269 = arith.divf %267, %268 : vector<2x32xf32>
    %270 = vector.extract_strided_slice %263 {offsets = [0, 32], sizes = [2, 32], strides = [1, 1]} : vector<2x128xf32> to vector<2x32xf32>
    %271 = arith.negf %270 : vector<2x32xf32>
    %272 = math.exp %271 : vector<2x32xf32>
    %cst_62 = arith.constant 1.000000e+00 : f32
    %273 = vector.broadcast %cst_62 : f32 to vector<2x32xf32>
    %274 = arith.addf %273, %272 : vector<2x32xf32>
    %275 = arith.divf %273, %274 : vector<2x32xf32>
    %276 = vector.extract_strided_slice %263 {offsets = [0, 64], sizes = [2, 32], strides = [1, 1]} : vector<2x128xf32> to vector<2x32xf32>
    %277 = math.tanh %276 : vector<2x32xf32>
    %278 = vector.extract_strided_slice %263 {offsets = [0, 96], sizes = [2, 32], strides = [1, 1]} : vector<2x128xf32> to vector<2x32xf32>
    %279 = arith.negf %278 : vector<2x32xf32>
    %280 = math.exp %279 : vector<2x32xf32>
    %cst_63 = arith.constant 1.000000e+00 : f32
    %281 = vector.broadcast %cst_63 : f32 to vector<2x32xf32>
    %282 = arith.addf %281, %280 : vector<2x32xf32>
    %283 = arith.divf %281, %282 : vector<2x32xf32>
    %284 = arith.mulf %275, %215 : vector<2x32xf32>
    %285 = arith.mulf %269, %277 : vector<2x32xf32>
    %286 = arith.addf %284, %285 : vector<2x32xf32>
    %287 = math.tanh %286 : vector<2x32xf32>
    %288 = arith.mulf %283, %287 : vector<2x32xf32>
    %289 = vector.broadcast %10 : vector<1x32xf32> to vector<2x32xf32>
    %290 = arith.mulf %288, %289 : vector<2x32xf32>
    %cst_64 = arith.constant dense<0.000000e+00> : vector<2xf32>
    %291 = vector.multi_reduction <add>, %290, %cst_64 [1] : vector<2x32xf32> to vector<2xf32>
    %292 = vector.shape_cast %291 : vector<2xf32> to vector<2x1xf32>
    %293 = vector.broadcast %11 : f32 to vector<2x1xf32>
    %294 = arith.addf %292, %293 : vector<2x1xf32>
    %c3_i32 = arith.constant 3 : i32
    %295 = vector.broadcast %c3_i32 : i32 to vector<2x8xi32>
    %296 = arith.cmpi eq, %17, %295 : vector<2x8xi32>
    %cst_65 = arith.constant 0.000000e+00 : f32
    %297 = vector.shape_cast %294 : vector<2x1xf32> to vector<2x1xf32>
    %298 = vector.broadcast %297 : vector<2x1xf32> to vector<2x8xf32>
    %299 = vector.broadcast %cst_65 : f32 to vector<2x8xf32>
    %300 = arith.select %296, %298, %299 : vector<2x8xi1>, vector<2x8xf32>
    %301 = arith.addf %230, %300 : vector<2x8xf32>
    %302 = vector.extract_strided_slice %5 {offsets = [8, 0], sizes = [2, 128], strides = [1, 1]} : vector<16x128xf32> to vector<2x128xf32>
    %cst_66 = arith.constant dense<0.000000e+00> : vector<2x128xf32>
    %303 = tpu.matmul %258, %6, %cst_66 {dimension_numbers = #tpu.dot_dimension_numbers<[1], [0], [0], [1], [0, 0, 1, 1], [], []>} : vector<2x32xf32>, vector<32x128xf32>, vector<2x128xf32> -> vector<2x128xf32>
    %304 = arith.addf %302, %303 : vector<2x128xf32>
    %305 = vector.extract_strided_slice %304 {offsets = [0, 0], sizes = [2, 32], strides = [1, 1]} : vector<2x128xf32> to vector<2x32xf32>
    %306 = arith.negf %305 : vector<2x32xf32>
    %307 = math.exp %306 : vector<2x32xf32>
    %cst_67 = arith.constant 1.000000e+00 : f32
    %308 = vector.broadcast %cst_67 : f32 to vector<2x32xf32>
    %309 = arith.addf %308, %307 : vector<2x32xf32>
    %310 = arith.divf %308, %309 : vector<2x32xf32>
    %311 = vector.extract_strided_slice %304 {offsets = [0, 32], sizes = [2, 32], strides = [1, 1]} : vector<2x128xf32> to vector<2x32xf32>
    %312 = arith.negf %311 : vector<2x32xf32>
    %313 = math.exp %312 : vector<2x32xf32>
    %cst_68 = arith.constant 1.000000e+00 : f32
    %314 = vector.broadcast %cst_68 : f32 to vector<2x32xf32>
    %315 = arith.addf %314, %313 : vector<2x32xf32>
    %316 = arith.divf %314, %315 : vector<2x32xf32>
    %317 = vector.extract_strided_slice %304 {offsets = [0, 64], sizes = [2, 32], strides = [1, 1]} : vector<2x128xf32> to vector<2x32xf32>
    %318 = math.tanh %317 : vector<2x32xf32>
    %319 = vector.extract_strided_slice %304 {offsets = [0, 96], sizes = [2, 32], strides = [1, 1]} : vector<2x128xf32> to vector<2x32xf32>
    %320 = arith.negf %319 : vector<2x32xf32>
    %321 = math.exp %320 : vector<2x32xf32>
    %cst_69 = arith.constant 1.000000e+00 : f32
    %322 = vector.broadcast %cst_69 : f32 to vector<2x32xf32>
    %323 = arith.addf %322, %321 : vector<2x32xf32>
    %324 = arith.divf %322, %323 : vector<2x32xf32>
    %325 = arith.mulf %316, %256 : vector<2x32xf32>
    %326 = arith.mulf %310, %318 : vector<2x32xf32>
    %327 = arith.addf %325, %326 : vector<2x32xf32>
    %328 = math.tanh %327 : vector<2x32xf32>
    %329 = arith.mulf %324, %328 : vector<2x32xf32>
    %cst_70 = arith.constant dense<0.000000e+00> : vector<2x128xf32>
    %330 = tpu.matmul %329, %7, %cst_70 {dimension_numbers = #tpu.dot_dimension_numbers<[1], [0], [0], [1], [0, 0, 1, 1], [], []>} : vector<2x32xf32>, vector<32x128xf32>, vector<2x128xf32> -> vector<2x128xf32>
    %cst_71 = arith.constant dense<0.000000e+00> : vector<2x128xf32>
    %331 = tpu.matmul %288, %8, %cst_71 {dimension_numbers = #tpu.dot_dimension_numbers<[1], [0], [0], [1], [0, 0, 1, 1], [], []>} : vector<2x32xf32>, vector<32x128xf32>, vector<2x128xf32> -> vector<2x128xf32>
    %332 = arith.addf %330, %331 : vector<2x128xf32>
    %333 = vector.broadcast %9 : vector<1x128xf32> to vector<2x128xf32>
    %334 = arith.addf %332, %333 : vector<2x128xf32>
    %335 = vector.extract_strided_slice %334 {offsets = [0, 0], sizes = [2, 32], strides = [1, 1]} : vector<2x128xf32> to vector<2x32xf32>
    %336 = arith.negf %335 : vector<2x32xf32>
    %337 = math.exp %336 : vector<2x32xf32>
    %cst_72 = arith.constant 1.000000e+00 : f32
    %338 = vector.broadcast %cst_72 : f32 to vector<2x32xf32>
    %339 = arith.addf %338, %337 : vector<2x32xf32>
    %340 = arith.divf %338, %339 : vector<2x32xf32>
    %341 = vector.extract_strided_slice %334 {offsets = [0, 32], sizes = [2, 32], strides = [1, 1]} : vector<2x128xf32> to vector<2x32xf32>
    %342 = arith.negf %341 : vector<2x32xf32>
    %343 = math.exp %342 : vector<2x32xf32>
    %cst_73 = arith.constant 1.000000e+00 : f32
    %344 = vector.broadcast %cst_73 : f32 to vector<2x32xf32>
    %345 = arith.addf %344, %343 : vector<2x32xf32>
    %346 = arith.divf %344, %345 : vector<2x32xf32>
    %347 = vector.extract_strided_slice %334 {offsets = [0, 64], sizes = [2, 32], strides = [1, 1]} : vector<2x128xf32> to vector<2x32xf32>
    %348 = math.tanh %347 : vector<2x32xf32>
    %349 = vector.extract_strided_slice %334 {offsets = [0, 96], sizes = [2, 32], strides = [1, 1]} : vector<2x128xf32> to vector<2x32xf32>
    %350 = arith.negf %349 : vector<2x32xf32>
    %351 = math.exp %350 : vector<2x32xf32>
    %cst_74 = arith.constant 1.000000e+00 : f32
    %352 = vector.broadcast %cst_74 : f32 to vector<2x32xf32>
    %353 = arith.addf %352, %351 : vector<2x32xf32>
    %354 = arith.divf %352, %353 : vector<2x32xf32>
    %355 = arith.mulf %346, %286 : vector<2x32xf32>
    %356 = arith.mulf %340, %348 : vector<2x32xf32>
    %357 = arith.addf %355, %356 : vector<2x32xf32>
    %358 = math.tanh %357 : vector<2x32xf32>
    %359 = arith.mulf %354, %358 : vector<2x32xf32>
    %360 = vector.broadcast %10 : vector<1x32xf32> to vector<2x32xf32>
    %361 = arith.mulf %359, %360 : vector<2x32xf32>
    %cst_75 = arith.constant dense<0.000000e+00> : vector<2xf32>
    %362 = vector.multi_reduction <add>, %361, %cst_75 [1] : vector<2x32xf32> to vector<2xf32>
    %363 = vector.shape_cast %362 : vector<2xf32> to vector<2x1xf32>
    %364 = vector.broadcast %11 : f32 to vector<2x1xf32>
    %365 = arith.addf %363, %364 : vector<2x1xf32>
    %c4_i32 = arith.constant 4 : i32
    %366 = vector.broadcast %c4_i32 : i32 to vector<2x8xi32>
    %367 = arith.cmpi eq, %17, %366 : vector<2x8xi32>
    %cst_76 = arith.constant 0.000000e+00 : f32
    %368 = vector.shape_cast %365 : vector<2x1xf32> to vector<2x1xf32>
    %369 = vector.broadcast %368 : vector<2x1xf32> to vector<2x8xf32>
    %370 = vector.broadcast %cst_76 : f32 to vector<2x8xf32>
    %371 = arith.select %367, %369, %370 : vector<2x8xi1>, vector<2x8xf32>
    %372 = arith.addf %301, %371 : vector<2x8xf32>
    %373 = vector.extract_strided_slice %5 {offsets = [10, 0], sizes = [2, 128], strides = [1, 1]} : vector<16x128xf32> to vector<2x128xf32>
    %cst_77 = arith.constant dense<0.000000e+00> : vector<2x128xf32>
    %374 = tpu.matmul %329, %6, %cst_77 {dimension_numbers = #tpu.dot_dimension_numbers<[1], [0], [0], [1], [0, 0, 1, 1], [], []>} : vector<2x32xf32>, vector<32x128xf32>, vector<2x128xf32> -> vector<2x128xf32>
    %375 = arith.addf %373, %374 : vector<2x128xf32>
    %376 = vector.extract_strided_slice %375 {offsets = [0, 0], sizes = [2, 32], strides = [1, 1]} : vector<2x128xf32> to vector<2x32xf32>
    %377 = arith.negf %376 : vector<2x32xf32>
    %378 = math.exp %377 : vector<2x32xf32>
    %cst_78 = arith.constant 1.000000e+00 : f32
    %379 = vector.broadcast %cst_78 : f32 to vector<2x32xf32>
    %380 = arith.addf %379, %378 : vector<2x32xf32>
    %381 = arith.divf %379, %380 : vector<2x32xf32>
    %382 = vector.extract_strided_slice %375 {offsets = [0, 32], sizes = [2, 32], strides = [1, 1]} : vector<2x128xf32> to vector<2x32xf32>
    %383 = arith.negf %382 : vector<2x32xf32>
    %384 = math.exp %383 : vector<2x32xf32>
    %cst_79 = arith.constant 1.000000e+00 : f32
    %385 = vector.broadcast %cst_79 : f32 to vector<2x32xf32>
    %386 = arith.addf %385, %384 : vector<2x32xf32>
    %387 = arith.divf %385, %386 : vector<2x32xf32>
    %388 = vector.extract_strided_slice %375 {offsets = [0, 64], sizes = [2, 32], strides = [1, 1]} : vector<2x128xf32> to vector<2x32xf32>
    %389 = math.tanh %388 : vector<2x32xf32>
    %390 = vector.extract_strided_slice %375 {offsets = [0, 96], sizes = [2, 32], strides = [1, 1]} : vector<2x128xf32> to vector<2x32xf32>
    %391 = arith.negf %390 : vector<2x32xf32>
    %392 = math.exp %391 : vector<2x32xf32>
    %cst_80 = arith.constant 1.000000e+00 : f32
    %393 = vector.broadcast %cst_80 : f32 to vector<2x32xf32>
    %394 = arith.addf %393, %392 : vector<2x32xf32>
    %395 = arith.divf %393, %394 : vector<2x32xf32>
    %396 = arith.mulf %387, %327 : vector<2x32xf32>
    %397 = arith.mulf %381, %389 : vector<2x32xf32>
    %398 = arith.addf %396, %397 : vector<2x32xf32>
    %399 = math.tanh %398 : vector<2x32xf32>
    %400 = arith.mulf %395, %399 : vector<2x32xf32>
    %cst_81 = arith.constant dense<0.000000e+00> : vector<2x128xf32>
    %401 = tpu.matmul %400, %7, %cst_81 {dimension_numbers = #tpu.dot_dimension_numbers<[1], [0], [0], [1], [0, 0, 1, 1], [], []>} : vector<2x32xf32>, vector<32x128xf32>, vector<2x128xf32> -> vector<2x128xf32>
    %cst_82 = arith.constant dense<0.000000e+00> : vector<2x128xf32>
    %402 = tpu.matmul %359, %8, %cst_82 {dimension_numbers = #tpu.dot_dimension_numbers<[1], [0], [0], [1], [0, 0, 1, 1], [], []>} : vector<2x32xf32>, vector<32x128xf32>, vector<2x128xf32> -> vector<2x128xf32>
    %403 = arith.addf %401, %402 : vector<2x128xf32>
    %404 = vector.broadcast %9 : vector<1x128xf32> to vector<2x128xf32>
    %405 = arith.addf %403, %404 : vector<2x128xf32>
    %406 = vector.extract_strided_slice %405 {offsets = [0, 0], sizes = [2, 32], strides = [1, 1]} : vector<2x128xf32> to vector<2x32xf32>
    %407 = arith.negf %406 : vector<2x32xf32>
    %408 = math.exp %407 : vector<2x32xf32>
    %cst_83 = arith.constant 1.000000e+00 : f32
    %409 = vector.broadcast %cst_83 : f32 to vector<2x32xf32>
    %410 = arith.addf %409, %408 : vector<2x32xf32>
    %411 = arith.divf %409, %410 : vector<2x32xf32>
    %412 = vector.extract_strided_slice %405 {offsets = [0, 32], sizes = [2, 32], strides = [1, 1]} : vector<2x128xf32> to vector<2x32xf32>
    %413 = arith.negf %412 : vector<2x32xf32>
    %414 = math.exp %413 : vector<2x32xf32>
    %cst_84 = arith.constant 1.000000e+00 : f32
    %415 = vector.broadcast %cst_84 : f32 to vector<2x32xf32>
    %416 = arith.addf %415, %414 : vector<2x32xf32>
    %417 = arith.divf %415, %416 : vector<2x32xf32>
    %418 = vector.extract_strided_slice %405 {offsets = [0, 64], sizes = [2, 32], strides = [1, 1]} : vector<2x128xf32> to vector<2x32xf32>
    %419 = math.tanh %418 : vector<2x32xf32>
    %420 = vector.extract_strided_slice %405 {offsets = [0, 96], sizes = [2, 32], strides = [1, 1]} : vector<2x128xf32> to vector<2x32xf32>
    %421 = arith.negf %420 : vector<2x32xf32>
    %422 = math.exp %421 : vector<2x32xf32>
    %cst_85 = arith.constant 1.000000e+00 : f32
    %423 = vector.broadcast %cst_85 : f32 to vector<2x32xf32>
    %424 = arith.addf %423, %422 : vector<2x32xf32>
    %425 = arith.divf %423, %424 : vector<2x32xf32>
    %426 = arith.mulf %417, %357 : vector<2x32xf32>
    %427 = arith.mulf %411, %419 : vector<2x32xf32>
    %428 = arith.addf %426, %427 : vector<2x32xf32>
    %429 = math.tanh %428 : vector<2x32xf32>
    %430 = arith.mulf %425, %429 : vector<2x32xf32>
    %431 = vector.broadcast %10 : vector<1x32xf32> to vector<2x32xf32>
    %432 = arith.mulf %430, %431 : vector<2x32xf32>
    %cst_86 = arith.constant dense<0.000000e+00> : vector<2xf32>
    %433 = vector.multi_reduction <add>, %432, %cst_86 [1] : vector<2x32xf32> to vector<2xf32>
    %434 = vector.shape_cast %433 : vector<2xf32> to vector<2x1xf32>
    %435 = vector.broadcast %11 : f32 to vector<2x1xf32>
    %436 = arith.addf %434, %435 : vector<2x1xf32>
    %c5_i32 = arith.constant 5 : i32
    %437 = vector.broadcast %c5_i32 : i32 to vector<2x8xi32>
    %438 = arith.cmpi eq, %17, %437 : vector<2x8xi32>
    %cst_87 = arith.constant 0.000000e+00 : f32
    %439 = vector.shape_cast %436 : vector<2x1xf32> to vector<2x1xf32>
    %440 = vector.broadcast %439 : vector<2x1xf32> to vector<2x8xf32>
    %441 = vector.broadcast %cst_87 : f32 to vector<2x8xf32>
    %442 = arith.select %438, %440, %441 : vector<2x8xi1>, vector<2x8xf32>
    %443 = arith.addf %372, %442 : vector<2x8xf32>
    %444 = vector.extract_strided_slice %5 {offsets = [12, 0], sizes = [2, 128], strides = [1, 1]} : vector<16x128xf32> to vector<2x128xf32>
    %cst_88 = arith.constant dense<0.000000e+00> : vector<2x128xf32>
    %445 = tpu.matmul %400, %6, %cst_88 {dimension_numbers = #tpu.dot_dimension_numbers<[1], [0], [0], [1], [0, 0, 1, 1], [], []>} : vector<2x32xf32>, vector<32x128xf32>, vector<2x128xf32> -> vector<2x128xf32>
    %446 = arith.addf %444, %445 : vector<2x128xf32>
    %447 = vector.extract_strided_slice %446 {offsets = [0, 0], sizes = [2, 32], strides = [1, 1]} : vector<2x128xf32> to vector<2x32xf32>
    %448 = arith.negf %447 : vector<2x32xf32>
    %449 = math.exp %448 : vector<2x32xf32>
    %cst_89 = arith.constant 1.000000e+00 : f32
    %450 = vector.broadcast %cst_89 : f32 to vector<2x32xf32>
    %451 = arith.addf %450, %449 : vector<2x32xf32>
    %452 = arith.divf %450, %451 : vector<2x32xf32>
    %453 = vector.extract_strided_slice %446 {offsets = [0, 32], sizes = [2, 32], strides = [1, 1]} : vector<2x128xf32> to vector<2x32xf32>
    %454 = arith.negf %453 : vector<2x32xf32>
    %455 = math.exp %454 : vector<2x32xf32>
    %cst_90 = arith.constant 1.000000e+00 : f32
    %456 = vector.broadcast %cst_90 : f32 to vector<2x32xf32>
    %457 = arith.addf %456, %455 : vector<2x32xf32>
    %458 = arith.divf %456, %457 : vector<2x32xf32>
    %459 = vector.extract_strided_slice %446 {offsets = [0, 64], sizes = [2, 32], strides = [1, 1]} : vector<2x128xf32> to vector<2x32xf32>
    %460 = math.tanh %459 : vector<2x32xf32>
    %461 = vector.extract_strided_slice %446 {offsets = [0, 96], sizes = [2, 32], strides = [1, 1]} : vector<2x128xf32> to vector<2x32xf32>
    %462 = arith.negf %461 : vector<2x32xf32>
    %463 = math.exp %462 : vector<2x32xf32>
    %cst_91 = arith.constant 1.000000e+00 : f32
    %464 = vector.broadcast %cst_91 : f32 to vector<2x32xf32>
    %465 = arith.addf %464, %463 : vector<2x32xf32>
    %466 = arith.divf %464, %465 : vector<2x32xf32>
    %467 = arith.mulf %458, %398 : vector<2x32xf32>
    %468 = arith.mulf %452, %460 : vector<2x32xf32>
    %469 = arith.addf %467, %468 : vector<2x32xf32>
    %470 = math.tanh %469 : vector<2x32xf32>
    %471 = arith.mulf %466, %470 : vector<2x32xf32>
    %cst_92 = arith.constant dense<0.000000e+00> : vector<2x128xf32>
    %472 = tpu.matmul %471, %7, %cst_92 {dimension_numbers = #tpu.dot_dimension_numbers<[1], [0], [0], [1], [0, 0, 1, 1], [], []>} : vector<2x32xf32>, vector<32x128xf32>, vector<2x128xf32> -> vector<2x128xf32>
    %cst_93 = arith.constant dense<0.000000e+00> : vector<2x128xf32>
    %473 = tpu.matmul %430, %8, %cst_93 {dimension_numbers = #tpu.dot_dimension_numbers<[1], [0], [0], [1], [0, 0, 1, 1], [], []>} : vector<2x32xf32>, vector<32x128xf32>, vector<2x128xf32> -> vector<2x128xf32>
    %474 = arith.addf %472, %473 : vector<2x128xf32>
    %475 = vector.broadcast %9 : vector<1x128xf32> to vector<2x128xf32>
    %476 = arith.addf %474, %475 : vector<2x128xf32>
    %477 = vector.extract_strided_slice %476 {offsets = [0, 0], sizes = [2, 32], strides = [1, 1]} : vector<2x128xf32> to vector<2x32xf32>
    %478 = arith.negf %477 : vector<2x32xf32>
    %479 = math.exp %478 : vector<2x32xf32>
    %cst_94 = arith.constant 1.000000e+00 : f32
    %480 = vector.broadcast %cst_94 : f32 to vector<2x32xf32>
    %481 = arith.addf %480, %479 : vector<2x32xf32>
    %482 = arith.divf %480, %481 : vector<2x32xf32>
    %483 = vector.extract_strided_slice %476 {offsets = [0, 32], sizes = [2, 32], strides = [1, 1]} : vector<2x128xf32> to vector<2x32xf32>
    %484 = arith.negf %483 : vector<2x32xf32>
    %485 = math.exp %484 : vector<2x32xf32>
    %cst_95 = arith.constant 1.000000e+00 : f32
    %486 = vector.broadcast %cst_95 : f32 to vector<2x32xf32>
    %487 = arith.addf %486, %485 : vector<2x32xf32>
    %488 = arith.divf %486, %487 : vector<2x32xf32>
    %489 = vector.extract_strided_slice %476 {offsets = [0, 64], sizes = [2, 32], strides = [1, 1]} : vector<2x128xf32> to vector<2x32xf32>
    %490 = math.tanh %489 : vector<2x32xf32>
    %491 = vector.extract_strided_slice %476 {offsets = [0, 96], sizes = [2, 32], strides = [1, 1]} : vector<2x128xf32> to vector<2x32xf32>
    %492 = arith.negf %491 : vector<2x32xf32>
    %493 = math.exp %492 : vector<2x32xf32>
    %cst_96 = arith.constant 1.000000e+00 : f32
    %494 = vector.broadcast %cst_96 : f32 to vector<2x32xf32>
    %495 = arith.addf %494, %493 : vector<2x32xf32>
    %496 = arith.divf %494, %495 : vector<2x32xf32>
    %497 = arith.mulf %488, %428 : vector<2x32xf32>
    %498 = arith.mulf %482, %490 : vector<2x32xf32>
    %499 = arith.addf %497, %498 : vector<2x32xf32>
    %500 = math.tanh %499 : vector<2x32xf32>
    %501 = arith.mulf %496, %500 : vector<2x32xf32>
    %502 = vector.broadcast %10 : vector<1x32xf32> to vector<2x32xf32>
    %503 = arith.mulf %501, %502 : vector<2x32xf32>
    %cst_97 = arith.constant dense<0.000000e+00> : vector<2xf32>
    %504 = vector.multi_reduction <add>, %503, %cst_97 [1] : vector<2x32xf32> to vector<2xf32>
    %505 = vector.shape_cast %504 : vector<2xf32> to vector<2x1xf32>
    %506 = vector.broadcast %11 : f32 to vector<2x1xf32>
    %507 = arith.addf %505, %506 : vector<2x1xf32>
    %c6_i32 = arith.constant 6 : i32
    %508 = vector.broadcast %c6_i32 : i32 to vector<2x8xi32>
    %509 = arith.cmpi eq, %17, %508 : vector<2x8xi32>
    %cst_98 = arith.constant 0.000000e+00 : f32
    %510 = vector.shape_cast %507 : vector<2x1xf32> to vector<2x1xf32>
    %511 = vector.broadcast %510 : vector<2x1xf32> to vector<2x8xf32>
    %512 = vector.broadcast %cst_98 : f32 to vector<2x8xf32>
    %513 = arith.select %509, %511, %512 : vector<2x8xi1>, vector<2x8xf32>
    %514 = arith.addf %443, %513 : vector<2x8xf32>
    %515 = vector.extract_strided_slice %5 {offsets = [14, 0], sizes = [2, 128], strides = [1, 1]} : vector<16x128xf32> to vector<2x128xf32>
    %cst_99 = arith.constant dense<0.000000e+00> : vector<2x128xf32>
    %516 = tpu.matmul %471, %6, %cst_99 {dimension_numbers = #tpu.dot_dimension_numbers<[1], [0], [0], [1], [0, 0, 1, 1], [], []>} : vector<2x32xf32>, vector<32x128xf32>, vector<2x128xf32> -> vector<2x128xf32>
    %517 = arith.addf %515, %516 : vector<2x128xf32>
    %518 = vector.extract_strided_slice %517 {offsets = [0, 0], sizes = [2, 32], strides = [1, 1]} : vector<2x128xf32> to vector<2x32xf32>
    %519 = arith.negf %518 : vector<2x32xf32>
    %520 = math.exp %519 : vector<2x32xf32>
    %cst_100 = arith.constant 1.000000e+00 : f32
    %521 = vector.broadcast %cst_100 : f32 to vector<2x32xf32>
    %522 = arith.addf %521, %520 : vector<2x32xf32>
    %523 = arith.divf %521, %522 : vector<2x32xf32>
    %524 = vector.extract_strided_slice %517 {offsets = [0, 32], sizes = [2, 32], strides = [1, 1]} : vector<2x128xf32> to vector<2x32xf32>
    %525 = arith.negf %524 : vector<2x32xf32>
    %526 = math.exp %525 : vector<2x32xf32>
    %cst_101 = arith.constant 1.000000e+00 : f32
    %527 = vector.broadcast %cst_101 : f32 to vector<2x32xf32>
    %528 = arith.addf %527, %526 : vector<2x32xf32>
    %529 = arith.divf %527, %528 : vector<2x32xf32>
    %530 = vector.extract_strided_slice %517 {offsets = [0, 64], sizes = [2, 32], strides = [1, 1]} : vector<2x128xf32> to vector<2x32xf32>
    %531 = math.tanh %530 : vector<2x32xf32>
    %532 = vector.extract_strided_slice %517 {offsets = [0, 96], sizes = [2, 32], strides = [1, 1]} : vector<2x128xf32> to vector<2x32xf32>
    %533 = arith.negf %532 : vector<2x32xf32>
    %534 = math.exp %533 : vector<2x32xf32>
    %cst_102 = arith.constant 1.000000e+00 : f32
    %535 = vector.broadcast %cst_102 : f32 to vector<2x32xf32>
    %536 = arith.addf %535, %534 : vector<2x32xf32>
    %537 = arith.divf %535, %536 : vector<2x32xf32>
    %538 = arith.mulf %529, %469 : vector<2x32xf32>
    %539 = arith.mulf %523, %531 : vector<2x32xf32>
    %540 = arith.addf %538, %539 : vector<2x32xf32>
    %541 = math.tanh %540 : vector<2x32xf32>
    %542 = arith.mulf %537, %541 : vector<2x32xf32>
    %cst_103 = arith.constant dense<0.000000e+00> : vector<2x128xf32>
    %543 = tpu.matmul %542, %7, %cst_103 {dimension_numbers = #tpu.dot_dimension_numbers<[1], [0], [0], [1], [0, 0, 1, 1], [], []>} : vector<2x32xf32>, vector<32x128xf32>, vector<2x128xf32> -> vector<2x128xf32>
    %cst_104 = arith.constant dense<0.000000e+00> : vector<2x128xf32>
    %544 = tpu.matmul %501, %8, %cst_104 {dimension_numbers = #tpu.dot_dimension_numbers<[1], [0], [0], [1], [0, 0, 1, 1], [], []>} : vector<2x32xf32>, vector<32x128xf32>, vector<2x128xf32> -> vector<2x128xf32>
    %545 = arith.addf %543, %544 : vector<2x128xf32>
    %546 = vector.broadcast %9 : vector<1x128xf32> to vector<2x128xf32>
    %547 = arith.addf %545, %546 : vector<2x128xf32>
    %548 = vector.extract_strided_slice %547 {offsets = [0, 0], sizes = [2, 32], strides = [1, 1]} : vector<2x128xf32> to vector<2x32xf32>
    %549 = arith.negf %548 : vector<2x32xf32>
    %550 = math.exp %549 : vector<2x32xf32>
    %cst_105 = arith.constant 1.000000e+00 : f32
    %551 = vector.broadcast %cst_105 : f32 to vector<2x32xf32>
    %552 = arith.addf %551, %550 : vector<2x32xf32>
    %553 = arith.divf %551, %552 : vector<2x32xf32>
    %554 = vector.extract_strided_slice %547 {offsets = [0, 32], sizes = [2, 32], strides = [1, 1]} : vector<2x128xf32> to vector<2x32xf32>
    %555 = arith.negf %554 : vector<2x32xf32>
    %556 = math.exp %555 : vector<2x32xf32>
    %cst_106 = arith.constant 1.000000e+00 : f32
    %557 = vector.broadcast %cst_106 : f32 to vector<2x32xf32>
    %558 = arith.addf %557, %556 : vector<2x32xf32>
    %559 = arith.divf %557, %558 : vector<2x32xf32>
    %560 = vector.extract_strided_slice %547 {offsets = [0, 64], sizes = [2, 32], strides = [1, 1]} : vector<2x128xf32> to vector<2x32xf32>
    %561 = math.tanh %560 : vector<2x32xf32>
    %562 = vector.extract_strided_slice %547 {offsets = [0, 96], sizes = [2, 32], strides = [1, 1]} : vector<2x128xf32> to vector<2x32xf32>
    %563 = arith.negf %562 : vector<2x32xf32>
    %564 = math.exp %563 : vector<2x32xf32>
    %cst_107 = arith.constant 1.000000e+00 : f32
    %565 = vector.broadcast %cst_107 : f32 to vector<2x32xf32>
    %566 = arith.addf %565, %564 : vector<2x32xf32>
    %567 = arith.divf %565, %566 : vector<2x32xf32>
    %568 = arith.mulf %559, %499 : vector<2x32xf32>
    %569 = arith.mulf %553, %561 : vector<2x32xf32>
    %570 = arith.addf %568, %569 : vector<2x32xf32>
    %571 = math.tanh %570 : vector<2x32xf32>
    %572 = arith.mulf %567, %571 : vector<2x32xf32>
    %573 = vector.broadcast %10 : vector<1x32xf32> to vector<2x32xf32>
    %574 = arith.mulf %572, %573 : vector<2x32xf32>
    %cst_108 = arith.constant dense<0.000000e+00> : vector<2xf32>
    %575 = vector.multi_reduction <add>, %574, %cst_108 [1] : vector<2x32xf32> to vector<2xf32>
    %576 = vector.shape_cast %575 : vector<2xf32> to vector<2x1xf32>
    %577 = vector.broadcast %11 : f32 to vector<2x1xf32>
    %578 = arith.addf %576, %577 : vector<2x1xf32>
    %c7_i32 = arith.constant 7 : i32
    %579 = vector.broadcast %c7_i32 : i32 to vector<2x8xi32>
    %580 = arith.cmpi eq, %17, %579 : vector<2x8xi32>
    %cst_109 = arith.constant 0.000000e+00 : f32
    %581 = vector.shape_cast %578 : vector<2x1xf32> to vector<2x1xf32>
    %582 = vector.broadcast %581 : vector<2x1xf32> to vector<2x8xf32>
    %583 = vector.broadcast %cst_109 : f32 to vector<2x8xf32>
    %584 = arith.select %580, %582, %583 : vector<2x8xi1>, vector<2x8xf32>
    %585 = arith.addf %514, %584 : vector<2x8xf32>
    %c0_110 = arith.constant 0 : index
    %c0_111 = arith.constant 0 : index
    %586 = vector.load %arg9[%c0_110, %c0_111] : memref<2x8xf32, #tpu.memory_space<vmem>>, vector<2x8xf32>
    tpu.vector_store %arg9[%c0_110, %c0_111], %585 {strides = array<i32>} : memref<2x8xf32, #tpu.memory_space<vmem>>, vector<2x8xf32>,
    return
  }
}

</mosaic_0001>

<llo_original>
// kernel: sequence_forward.1
$region0: #{sequence_forward.1}
  #allocation0 [shape = 'u32[]', space=smem, size = 0x4, offset = 0x4, fixed_abs, tag = 'smem constant byte address 0x4 - core index']
  #allocation1 [shape = 'u32[144,128]{1,0:T(1,128)}', space=vmem, size = 0x12000, scoped, tag = 'internal scratch']
  #allocation2 [shape = 'f32[1,1]{1,0:T(1,128)S(6)}', space=smem, size = 0x200, scoped, tag = 'scoped memory for sequence_forward.1']
  %s0 = inlined_call_operand.hbm [shape: f32[16,32], index: 0, kind: input, shape index: {}]
  %s1 = inlined_call_operand.hbm [shape: f32[32,128], index: 1, kind: input, shape index: {}]
  %s2 = inlined_call_operand.hbm [shape: f32[32,128], index: 2, kind: input, shape index: {}]
  %s3 = inlined_call_operand.vmem [shape: f32[1,128], index: 3, kind: input, shape index: {}]
  %s4 = inlined_call_operand.hbm [shape: f32[32,128], index: 4, kind: input, shape index: {}]
  %s5 = inlined_call_operand.hbm [shape: f32[32,128], index: 5, kind: input, shape index: {}]
  %s6 = inlined_call_operand.vmem [shape: f32[1,128], index: 6, kind: input, shape index: {}]
  %s7 = inlined_call_operand.vmem [shape: f32[1,32], index: 7, kind: input, shape index: {}]
  %s8 = inlined_call_operand.<no memory space> [shape: f32[1,1], index: 8, kind: input, shape index: {}]
  %s9 = inlined_call_operand.hbm [shape: f32[2,8], index: 9, kind: output, shape index: {}]
  %s10 = sld [smem:[#allocation0]]
  $region66: #{sequence_forward.1} parent=0
    _
  %s12 = ssub.s32 1, %s10
  %s13 = scalar_select 0, %s12, %s10
  %14 = sst [smem:[#allocation2]] %s8
  $region1: #{sequence_forward.1} parent=0
    #allocation3 [shape = 'u8[8192]{0}', space=vmem, size = 0x2000, scoped, tag = 'input window, operand 0, single buffered']
    #allocation4 [shape = 's32[1]{0}', space=sflag, size = 0x4, scoped, tag = 'scoped memory for sequence_forward.1']
    #allocation5 [shape = 's32[1]{0}', space=sflag, size = 0x4, scoped, tag = 'scoped memory for sequence_forward.1']
    #allocation6 [shape = 'u8[16384]{0}', space=vmem, size = 0x4000, scoped, tag = 'input window, operand 1, single buffered']
    #allocation7 [shape = 's32[1]{0}', space=sflag, size = 0x4, scoped, tag = 'scoped memory for sequence_forward.1']
    #allocation8 [shape = 'u8[16384]{0}', space=vmem, size = 0x4000, scoped, tag = 'input window, operand 2, single buffered']
    #allocation9 [shape = 'u8[16384]{0}', space=vmem, size = 0x4000, scoped, tag = 'input window, operand 4, single buffered']
    #allocation10 [shape = 's32[1]{0}', space=sflag, size = 0x4, scoped, tag = 'scoped memory for sequence_forward.1']
    #allocation11 [shape = 'u8[16384]{0}', space=vmem, size = 0x4000, scoped, tag = 'input window, operand 5, single buffered']
    #allocation12 [shape = 'u8[1024]{0}', space=vmem, size = 0x400, scoped, tag = 'output window, operand 0, single buffered']
    %15 = vsyncpa [#allocation4], 0
    %16 = vsyncpa [#allocation7], 0
    %17 = vsyncpa [#allocation10], 0
    %18 = vsyncpa [#allocation5], 0
    // Predicated region
    $region2: #{sequence_forward.1} parent=1 // pred_check
      _
    $region3: #{sequence_forward.1} parent=1 // pred_check_branch
      %20 = sbr.rel (0) target = $region5
    $region4: #{sequence_forward.1} parent=1 // pred_region
      %s22 = ssub.s32 256, 256
      %23 = vsyncadd [#allocation4], %s22
      %s24 = sshll.u32 [#allocation3], 4
      %s25 = int_to_ptr.vmem [resolvable:$true] %s24
      %30 = dma.hbm_to_vmem [thread:$0]  %s0, 256, %s25, [#allocation4], 128, 128, 8
    $region5: #{sequence_forward.1} parent=1 // pred_fallthru
      _
    // Predicated region
    $region6: #{sequence_forward.1} parent=1 // pred_check
      _
    $region7: #{sequence_forward.1} parent=1 // pred_check_branch
      %32 = sbr.rel (0) target = $region9
    $region8: #{sequence_forward.1} parent=1 // pred_region
      %s34 = ssub.s32 512, 512
      %35 = vsyncadd [#allocation7], %s34
      %s36 = sshll.u32 [#allocation6], 4
      %s37 = int_to_ptr.vmem [resolvable:$true] %s36
      %42 = dma.hbm_to_vmem [thread:$0]  %s1, 512, %s37, [#allocation7], 128, 128, 8
    $region9: #{sequence_forward.1} parent=1 // pred_fallthru
      _
    // Predicated region
    $region10: #{sequence_forward.1} parent=1 // pred_check
      _
    $region11: #{sequence_forward.1} parent=1 // pred_check_branch
      %44 = sbr.rel (0) target = $region13
    $region12: #{sequence_forward.1} parent=1 // pred_region
      %s46 = ssub.s32 512, 512
      %47 = vsyncadd [#allocation7], %s46
      %s48 = sshll.u32 [#allocation8], 4
      %s49 = int_to_ptr.vmem [resolvable:$true] %s48
      %54 = dma.hbm_to_vmem [thread:$0]  %s2, 512, %s49, [#allocation7], 128, 128, 8
    $region13: #{sequence_forward.1} parent=1 // pred_fallthru
      _
    // Predicated region
    $region14: #{sequence_forward.1} parent=1 // pred_check
      _
    $region15: #{sequence_forward.1} parent=1 // pred_check_branch
      %56 = sbr.rel (0) target = $region17
    $region16: #{sequence_forward.1} parent=1 // pred_region
      _
    $region17: #{sequence_forward.1} parent=1 // pred_fallthru
      _
    // Predicated region
    $region18: #{sequence_forward.1} parent=1 // pred_check
      _
    $region19: #{sequence_forward.1} parent=1 // pred_check_branch
      %58 = sbr.rel (0) target = $region21
    $region20: #{sequence_forward.1} parent=1 // pred_region
      %s60 = ssub.s32 512, 512
      %61 = vsyncadd [#allocation10], %s60
      %s62 = sshll.u32 [#allocation9], 4
      %s63 = int_to_ptr.vmem [resolvable:$true] %s62
      %68 = dma.hbm_to_vmem [thread:$0]  %s4, 512, %s63, [#allocation10], 128, 128, 8
    $region21: #{sequence_forward.1} parent=1 // pred_fallthru
      _
    // Predicated region
    $region22: #{sequence_forward.1} parent=1 // pred_check
      _
    $region23: #{sequence_forward.1} parent=1 // pred_check_branch
      %70 = sbr.rel (0) target = $region25
    $region24: #{sequence_forward.1} parent=1 // pred_region
      %s72 = ssub.s32 512, 512
      %73 = vsyncadd [#allocation10], %s72
      %s74 = sshll.u32 [#allocation11], 4
      %s75 = int_to_ptr.vmem [resolvable:$true] %s74
      %80 = dma.hbm_to_vmem [thread:$0]  %s5, 512, %s75, [#allocation10], 128, 128, 8
    $region25: #{sequence_forward.1} parent=1 // pred_fallthru
      _
    // Predicated region
    $region26: #{sequence_forward.1} parent=1 // pred_check
      _
    $region27: #{sequence_forward.1} parent=1 // pred_check_branch
      %82 = sbr.rel (0) target = $region29
    $region28: #{sequence_forward.1} parent=1 // pred_region
      _
    $region29: #{sequence_forward.1} parent=1 // pred_fallthru
      _
    // Predicated region
    $region30: #{sequence_forward.1} parent=1 // pred_check
      _
    $region31: #{sequence_forward.1} parent=1 // pred_check_branch
      %84 = sbr.rel (0) target = $region33
    $region32: #{sequence_forward.1} parent=1 // pred_region
      _
    $region33: #{sequence_forward.1} parent=1 // pred_fallthru
      _
    // Predicated region
    $region34: #{sequence_forward.1} parent=1 // pred_check
      _
    $region35: #{sequence_forward.1} parent=1 // pred_check_branch
      %86 = sbr.rel (0) target = $region37
    $region36: #{sequence_forward.1} parent=1 // pred_region
      _
    $region37: #{sequence_forward.1} parent=1 // pred_fallthru
      _
    // Predicated region
    $region38: #{sequence_forward.1} parent=1 // pred_check
      _
    $region39: #{sequence_forward.1} parent=1 // pred_check_branch
      %88 = sbr.rel (0) target = $region41
    $region40: #{sequence_forward.1} parent=1 // pred_region
      %89 = dma.done [#allocation4], 256
    $region41: #{sequence_forward.1} parent=1 // pred_fallthru
      _
    // Predicated region
    $region42: #{sequence_forward.1} parent=1 // pred_check
      _
    $region43: #{sequence_forward.1} parent=1 // pred_check_branch
      %91 = sbr.rel (0) target = $region45
    $region44: #{sequence_forward.1} parent=1 // pred_region
      %92 = dma.done [#allocation7], 512
    $region45: #{sequence_forward.1} parent=1 // pred_fallthru
      _
    // Predicated region
    $region46: #{sequence_forward.1} parent=1 // pred_check
      _
    $region47: #{sequence_forward.1} parent=1 // pred_check_branch
      %94 = sbr.rel (0) target = $region49
    $region48: #{sequence_forward.1} parent=1 // pred_region
      %95 = dma.done [#allocation7], 512
    $region49: #{sequence_forward.1} parent=1 // pred_fallthru
      _
    // Predicated region
    $region50: #{sequence_forward.1} parent=1 // pred_check
      _
    $region51: #{sequence_forward.1} parent=1 // pred_check_branch
      %97 = sbr.rel (0) target = $region53
    $region52: #{sequence_forward.1} parent=1 // pred_region
      %98 = dma.done [#allocation10], 512
    $region53: #{sequence_forward.1} parent=1 // pred_fallthru
      _
    // Predicated region
    $region54: #{sequence_forward.1} parent=1 // pred_check
      _
    $region55: #{sequence_forward.1} parent=1 // pred_check_branch
      %100 = sbr.rel (0) target = $region57
    $region56: #{sequence_forward.1} parent=1 // pred_region
      %101 = dma.done [#allocation10], 512
    $region57: #{sequence_forward.1} parent=1 // pred_fallthru
      _
    %v102 = vld [vmem:[#allocation3] sm:$0xff]
    %v103 = vld [vmem:[#allocation3 + $0x8] sm:$0xff]
    %v104 = vld [vmem:[#allocation6] sm:$0xff]
    %v105 = vld [vmem:[#allocation6 + $0x8] sm:$0xff]
    %v106 = vld [vmem:[#allocation6 + $0x10] sm:$0xff]
    %v107 = vld [vmem:[#allocation6 + $0x18] sm:$0xff]
    %v108 = vld [vmem:[%s3] sm:$0x1]
    %v110 = vlaneseq
    %v111 = vshrl.u32 %v110, 7
    %v112 = vsub.s32 0, %v111
    %v113 = vrot.slane %v108, %v112
    %vm115 = vcmask 261120
    %v117 = vsel %vm115, %v102, 0
    %v120 = vsel %vm115, %v103, 0
    %122 = vmatprep.subr.mxu0 0.0
    %123 = vmatpush1.msra.mxu0 %v104
    %124 = vmatprep.subr.mxu0 0.0
    %125 = vmatpush1.msra.mxu0 %v105
    %126 = vmatprep.subr.mxu0 0.0
    %127 = vmatpush1.msra.mxu0 %v106
    %128 = vmatprep.subr.mxu0 0.0
    %129 = vmatpush1.msra.mxu0 %v107
    %130 = vmatprep.subr.mxu0 0.0
    %131 = vmatpush1.msra.mxu0 0.0
    %132 = vmatprep.subr.mxu0 0.0
    %133 = vmatpush1.msra.mxu0 0.0
    %134 = vmatprep.subr.mxu0 0.0
    %135 = vmatpush1.msra.mxu0 0.0
    %136 = vmatprep.subr.mxu0 0.0
    %137 = vmatpush1.msra.mxu0 0.0
    %138 = vmatprep.subr.mxu0 0.0
    %139 = vmatpush1.msra.mxu0 0.0
    %140 = vmatprep.subr.mxu0 0.0
    %141 = vmatpush1.msra.mxu0 0.0
    %142 = vmatprep.subr.mxu0 0.0
    %143 = vmatpush1.msra.mxu0 0.0
    %144 = vmatprep.subr.mxu0 0.0
    %145 = vmatpush1.msra.mxu0 0.0
    %146 = vmatprep.subr.mxu0 0.0
    %147 = vmatpush1.msra.mxu0 0.0
    %148 = vmatprep.subr.mxu0 0.0
    %149 = vmatpush1.msra.mxu0 0.0
    %150 = vmatprep.subr.mxu0 0.0
    %151 = vmatpush1.msra.mxu0 0.0
    %152 = vmatprep.subr.mxu0 0.0
    %153 = vmatpush1.msra.mxu0 0.0
    %154 = vmatprep.subr.mxu0 0.0
    %155 = vmatpush1.msra.mxu0 0.0
    %156 = vmatprep.subr.mxu0 0.0
    %157 = vmatpush1.msra.mxu0 0.0
    %158 = vmatprep.subr.mxu0 0.0
    %159 = vmatpush1.msra.mxu0 0.0
    %160 = vmatprep.subr.mxu0 0.0
    %161 = vmatpush1.msra.mxu0 0.0
    %162 = vmatprep.subr.mxu0 0.0
    %163 = vmatpush1.msra.mxu0 0.0
    %164 = vmatprep.subr.mxu0 0.0
    %165 = vmatpush1.msra.mxu0 0.0
    %166 = vmatprep.subr.mxu0 0.0
    %167 = vmatpush1.msra.mxu0 0.0
    %168 = vmatprep.subr.mxu0 0.0
    %169 = vmatpush1.msra.mxu0 0.0
    %170 = vmatprep.subr.mxu0 0.0
    %171 = vmatpush1.msra.mxu0 0.0
    %172 = vmatprep.subr.mxu0 0.0
    %173 = vmatpush1.msra.mxu0 0.0
    %174 = vmatprep.subr.mxu0 0.0
    %175 = vmatpush1.msra.mxu0 0.0
    %176 = vmatprep.subr.mxu0 0.0
    %177 = vmatpush1.msra.mxu0 0.0
    %178 = vmatprep.subr.mxu0 0.0
    %179 = vmatpush1.msra.mxu0 0.0
    %180 = vmatprep.subr.mxu0 0.0
    %181 = vmatpush1.msra.mxu0 0.0
    %182 = vmatprep.subr.mxu0 0.0
    %183 = vmatpush1.msra.mxu0 0.0
    %184 = vmatprep.subr.mxu0 0.0
    %185 = vmatpush1.msra.mxu0 0.0
    %186 = vmatprep.mubr.f32.mxu0 0.0
    %187 = vmatmul.mubr.f32.gmra.mrb[0].mxu0 %v117
    %v188 = vpop.f32.mrb[0].mxu0
    %v189 = vadd.f32 %v113, %v188
    %v190 = vpop.f32.mrb[0].mxu0
    %191 = vmatprep.mubr.f32.mxu0 0.0
    %192 = vmatmul.mubr.f32.gmra.mrb[0].mxu0 %v120
    %v193 = vpop.f32.mrb[0].mxu0
    %v194 = vadd.f32 %v113, %v193
    %v195 = vpop.f32.mrb[0].mxu0
    %196 = vdwg.mxu0
    %v197 = vld [vmem:[#allocation8] sm:$0xff]
    %v198 = vld [vmem:[#allocation8 + $0x8] sm:$0xff]
    %v199 = vld [vmem:[#allocation8 + $0x10] sm:$0xff]
    %v200 = vld [vmem:[#allocation8 + $0x18] sm:$0xff]
    %v201 = vld [vmem:[#allocation9] sm:$0xff]
    %v202 = vld [vmem:[#allocation9 + $0x8] sm:$0xff]
    %v203 = vld [vmem:[#allocation9 + $0x10] sm:$0xff]
    %v204 = vld [vmem:[#allocation9 + $0x18] sm:$0xff]
    %v205 = vld [vmem:[#allocation11] sm:$0xff]
    %v206 = vld [vmem:[#allocation11 + $0x8] sm:$0xff]
    %v207 = vld [vmem:[#allocation11 + $0x10] sm:$0xff]
    %v208 = vld [vmem:[#allocation11 + $0x18] sm:$0xff]
    %v209 = vld [vmem:[%s6] sm:$0x1]
    %v210 = vld [vmem:[%s7] sm:$0x1]
    %s211 = sld [smem:[#allocation2]]
    %v212 = vlaneseq
    %v213 = vand.u32 %v212, 127
    %v215 = vsel %vm115, 0.0, 0
    %217 = vmatprep.subr.mxu0 0.0
    %218 = vmatpush1.msra.mxu0 %v197
    %219 = vmatprep.subr.mxu0 0.0
    %220 = vmatpush1.msra.mxu0 %v198
    %221 = vmatprep.subr.mxu0 0.0
    %222 = vmatpush1.msra.mxu0 %v199
    %223 = vmatprep.subr.mxu0 0.0
    %224 = vmatpush1.msra.mxu0 %v200
    %225 = vmatprep.subr.mxu0 0.0
    %226 = vmatpush1.msra.mxu0 0.0
    %227 = vmatprep.subr.mxu0 0.0
    %228 = vmatpush1.msra.mxu0 0.0
    %229 = vmatprep.subr.mxu0 0.0
    %230 = vmatpush1.msra.mxu0 0.0
    %231 = vmatprep.subr.mxu0 0.0
    %232 = vmatpush1.msra.mxu0 0.0
    %233 = vmatprep.subr.mxu0 0.0
    %234 = vmatpush1.msra.mxu0 0.0
    %235 = vmatprep.subr.mxu0 0.0
    %236 = vmatpush1.msra.mxu0 0.0
    %237 = vmatprep.subr.mxu0 0.0
    %238 = vmatpush1.msra.mxu0 0.0
    %239 = vmatprep.subr.mxu0 0.0
    %240 = vmatpush1.msra.mxu0 0.0
    %241 = vmatprep.subr.mxu0 0.0
    %242 = vmatpush1.msra.mxu0 0.0
    %243 = vmatprep.subr.mxu0 0.0
    %244 = vmatpush1.msra.mxu0 0.0
    %245 = vmatprep.subr.mxu0 0.0
    %246 = vmatpush1.msra.mxu0 0.0
    %247 = vmatprep.subr.mxu0 0.0
    %248 = vmatpush1.msra.mxu0 0.0
    %249 = vmatprep.subr.mxu0 0.0
    %250 = vmatpush1.msra.mxu0 0.0
    %251 = vmatprep.subr.mxu0 0.0
    %252 = vmatpush1.msra.mxu0 0.0
    %253 = vmatprep.subr.mxu0 0.0
    %254 = vmatpush1.msra.mxu0 0.0
    %255 = vmatprep.subr.mxu0 0.0
    %256 = vmatpush1.msra.mxu0 0.0
    %257 = vmatprep.subr.mxu0 0.0
    %258 = vmatpush1.msra.mxu0 0.0
    %259 = vmatprep.subr.mxu0 0.0
    %260 = vmatpush1.msra.mxu0 0.0
    %261 = vmatprep.subr.mxu0 0.0
    %262 = vmatpush1.msra.mxu0 0.0
    %263 = vmatprep.subr.mxu0 0.0
    %264 = vmatpush1.msra.mxu0 0.0
    %265 = vmatprep.subr.mxu0 0.0
    %266 = vmatpush1.msra.mxu0 0.0
    %267 = vmatprep.subr.mxu0 0.0
    %268 = vmatpush1.msra.mxu0 0.0
    %269 = vmatprep.subr.mxu0 0.0
    %270 = vmatpush1.msra.mxu0 0.0
    %271 = vmatprep.subr.mxu0 0.0
    %272 = vmatpush1.msra.mxu0 0.0
    %273 = vmatprep.subr.mxu0 0.0
    %274 = vmatpush1.msra.mxu0 0.0
    %275 = vmatprep.subr.mxu0 0.0
    %276 = vmatpush1.msra.mxu0 0.0
    %277 = vmatprep.subr.mxu0 0.0
    %278 = vmatpush1.msra.mxu0 0.0
    %279 = vmatprep.subr.mxu0 0.0
    %280 = vmatpush1.msra.mxu0 0.0
    %281 = vmatprep.mubr.f32.mxu0 0.0
    %282 = vmatmul.mubr.f32.gmra.mrb[0].mxu0 %v215
    %v283 = vpop.f32.mrb[0].mxu0
    %v284 = vadd.f32 0.0, %v283
    %v285 = vpop.f32.mrb[0].mxu0
    %286 = vdwg.mxu0
    %v287 = vadd.f32 %v189, %v284
    %v288 = vxor.u32 %v287, 2147483648
    %v289 = vmul.f32 %v288, 1.442695
    %v290 = vpow.pop %v289
    %v291 = vadd.f32 %v290, 1.0
    %v292 = vrcp.pop %v291
    %v293 = vmul.f32 1.0, %v292
    %v294 = vtanh.pop %v287
    %v295 = vmul.f32 %v293, 0.0
    %297 = vrot.lane.b32.xlu0 %v294, 64
    %v298 = vpop.permute.xlu0 %297
    %v300 = vmul.f32 %v293, %v298
    %302 = vrot.lane.b32.xlu0 %v300, 32
    %v303 = vpop.permute.xlu0 %302
    %v305 = vadd.f32 %v295, %v303
    %v306 = vtanh.pop %v305
    %308 = vrot.lane.b32.xlu0 %v306, 64
    %v309 = vpop.permute.xlu0 %308
    %v311 = vmul.f32 %v293, %v309
    %312 = vmatprep.subr.mxu0 0.0
    %313 = vmatpush1.msra.mxu0 %v205
    %314 = vmatprep.subr.mxu0 0.0
    %315 = vmatpush1.msra.mxu0 %v206
    %316 = vmatprep.subr.mxu0 0.0
    %317 = vmatpush1.msra.mxu0 %v207
    %318 = vmatprep.subr.mxu0 0.0
    %319 = vmatpush1.msra.mxu0 %v208
    %320 = vmatprep.subr.mxu0 0.0
    %321 = vmatpush1.msra.mxu0 0.0
    %322 = vmatprep.subr.mxu0 0.0
    %323 = vmatpush1.msra.mxu0 0.0
    %324 = vmatprep.subr.mxu0 0.0
    %325 = vmatpush1.msra.mxu0 0.0
    %326 = vmatprep.subr.mxu0 0.0
    %327 = vmatpush1.msra.mxu0 0.0
    %328 = vmatprep.subr.mxu0 0.0
    %329 = vmatpush1.msra.mxu0 0.0
    %330 = vmatprep.subr.mxu0 0.0
    %331 = vmatpush1.msra.mxu0 0.0
    %332 = vmatprep.subr.mxu0 0.0
    %333 = vmatpush1.msra.mxu0 0.0
    %334 = vmatprep.subr.mxu0 0.0
    %335 = vmatpush1.msra.mxu0 0.0
    %336 = vmatprep.subr.mxu0 0.0
    %337 = vmatpush1.msra.mxu0 0.0
    %338 = vmatprep.subr.mxu0 0.0
    %339 = vmatpush1.msra.mxu0 0.0
    %340 = vmatprep.subr.mxu0 0.0
    %341 = vmatpush1.msra.mxu0 0.0
    %342 = vmatprep.subr.mxu0 0.0
    %343 = vmatpush1.msra.mxu0 0.0
    %344 = vmatprep.subr.mxu0 0.0
    %345 = vmatpush1.msra.mxu0 0.0
    %346 = vmatprep.subr.mxu0 0.0
    %347 = vmatpush1.msra.mxu0 0.0
    %348 = vmatprep.subr.mxu0 0.0
    %349 = vmatpush1.msra.mxu0 0.0
    %350 = vmatprep.subr.mxu0 0.0
    %351 = vmatpush1.msra.mxu0 0.0
    %352 = vmatprep.subr.mxu0 0.0
    %353 = vmatpush1.msra.mxu0 0.0
    %354 = vmatprep.subr.mxu0 0.0
    %355 = vmatpush1.msra.mxu0 0.0
    %356 = vmatprep.subr.mxu0 0.0
    %357 = vmatpush1.msra.mxu0 0.0
    %358 = vmatprep.subr.mxu0 0.0
    %359 = vmatpush1.msra.mxu0 0.0
    %360 = vmatprep.subr.mxu0 0.0
    %361 = vmatpush1.msra.mxu0 0.0
    %362 = vmatprep.subr.mxu0 0.0
    %363 = vmatpush1.msra.mxu0 0.0
    %364 = vmatprep.subr.mxu0 0.0
    %365 = vmatpush1.msra.mxu0 0.0
    %366 = vmatprep.subr.mxu0 0.0
    %367 = vmatpush1.msra.mxu0 0.0
    %368 = vmatprep.subr.mxu0 0.0
    %369 = vmatpush1.msra.mxu0 0.0
    %370 = vmatprep.subr.mxu0 0.0
    %371 = vmatpush1.msra.mxu0 0.0
    %372 = vmatprep.subr.mxu0 0.0
    %373 = vmatpush1.msra.mxu0 0.0
    %374 = vmatprep.subr.mxu0 0.0
    %375 = vmatpush1.msra.mxu0 0.0
    %376 = vmatprep.mubr.f32.mxu0 0.0
    %377 = vmatmul.mubr.f32.gmra.mrb[0].mxu0 %v215
    %v378 = vpop.f32.mrb[0].mxu0
    %v379 = vadd.f32 0.0, %v378
    %v380 = vpop.f32.mrb[0].mxu0
    %381 = vdwg.mxu0
    %383 = vrot.lane.b32.xlu0 %v311, 32
    %v384 = vpop.permute.xlu0 %383
    %v385 = vsel %vm115, %v384, 0
    %387 = vmatprep.subr.mxu0 0.0
    %388 = vmatpush1.msra.mxu0 %v201
    %389 = vmatprep.subr.mxu0 0.0
    %390 = vmatpush1.msra.mxu0 %v202
    %391 = vmatprep.subr.mxu0 0.0
    %392 = vmatpush1.msra.mxu0 %v203
    %393 = vmatprep.subr.mxu0 0.0
    %394 = vmatpush1.msra.mxu0 %v204
    %395 = vmatprep.subr.mxu0 0.0
    %396 = vmatpush1.msra.mxu0 0.0
    %397 = vmatprep.subr.mxu0 0.0
    %398 = vmatpush1.msra.mxu0 0.0
    %399 = vmatprep.subr.mxu0 0.0
    %400 = vmatpush1.msra.mxu0 0.0
    %401 = vmatprep.subr.mxu0 0.0
    %402 = vmatpush1.msra.mxu0 0.0
    %403 = vmatprep.subr.mxu0 0.0
    %404 = vmatpush1.msra.mxu0 0.0
    %405 = vmatprep.subr.mxu0 0.0
    %406 = vmatpush1.msra.mxu0 0.0
    %407 = vmatprep.subr.mxu0 0.0
    %408 = vmatpush1.msra.mxu0 0.0
    %409 = vmatprep.subr.mxu0 0.0
    %410 = vmatpush1.msra.mxu0 0.0
    %411 = vmatprep.subr.mxu0 0.0
    %412 = vmatpush1.msra.mxu0 0.0
    %413 = vmatprep.subr.mxu0 0.0
    %414 = vmatpush1.msra.mxu0 0.0
    %415 = vmatprep.subr.mxu0 0.0
    %416 = vmatpush1.msra.mxu0 0.0
    %417 = vmatprep.subr.mxu0 0.0
    %418 = vmatpush1.msra.mxu0 0.0
    %419 = vmatprep.subr.mxu0 0.0
    %420 = vmatpush1.msra.mxu0 0.0
    %421 = vmatprep.subr.mxu0 0.0
    %422 = vmatpush1.msra.mxu0 0.0
    %423 = vmatprep.subr.mxu0 0.0
    %424 = vmatpush1.msra.mxu0 0.0
    %425 = vmatprep.subr.mxu0 0.0
    %426 = vmatpush1.msra.mxu0 0.0
    %427 = vmatprep.subr.mxu0 0.0
    %428 = vmatpush1.msra.mxu0 0.0
    %429 = vmatprep.subr.mxu0 0.0
    %430 = vmatpush1.msra.mxu0 0.0
    %431 = vmatprep.subr.mxu0 0.0
    %432 = vmatpush1.msra.mxu0 0.0
    %433 = vmatprep.subr.mxu0 0.0
    %434 = vmatpush1.msra.mxu0 0.0
    %435 = vmatprep.subr.mxu0 0.0
    %436 = vmatpush1.msra.mxu0 0.0
    %437 = vmatprep.subr.mxu0 0.0
    %438 = vmatpush1.msra.mxu0 0.0
    %439 = vmatprep.subr.mxu0 0.0
    %440 = vmatpush1.msra.mxu0 0.0
    %441 = vmatprep.subr.mxu0 0.0
    %442 = vmatpush1.msra.mxu0 0.0
    %443 = vmatprep.subr.mxu0 0.0
    %444 = vmatpush1.msra.mxu0 0.0
    %445 = vmatprep.subr.mxu0 0.0
    %446 = vmatpush1.msra.mxu0 0.0
    %447 = vmatprep.subr.mxu0 0.0
    %448 = vmatpush1.msra.mxu0 0.0
    %449 = vmatprep.subr.mxu0 0.0
    %450 = vmatpush1.msra.mxu0 0.0
    %451 = vmatprep.mubr.f32.mxu0 0.0
    %452 = vmatmul.mubr.f32.gmra.mrb[0].mxu0 %v385
    %v453 = vpop.f32.mrb[0].mxu0
    %v454 = vadd.f32 %v379, %v453
    %v455 = vpop.f32.mrb[0].mxu0
    %456 = vdwg.mxu0
    %v458 = vlaneseq
    %v459 = vshrl.u32 %v458, 7
    %v460 = vsub.s32 0, %v459
    %v461 = vrot.slane %v209, %v460
    %v463 = vadd.f32 %v454, %v461
    %v464 = vxor.u32 %v463, 2147483648
    %v465 = vmul.f32 %v464, 1.442695
    %v466 = vpow.pop %v465
    %v467 = vadd.f32 %v466, 1.0
    %v468 = vrcp.pop %v467
    %v469 = vmul.f32 1.0, %v468
    %v470 = vtanh.pop %v463
    %v471 = vmul.f32 %v469, 0.0
    %473 = vrot.lane.b32.xlu0 %v470, 64
    %v474 = vpop.permute.xlu0 %473
    %v476 = vmul.f32 %v469, %v474
    %478 = vrot.lane.b32.xlu0 %v476, 32
    %v479 = vpop.permute.xlu0 %478
    %v481 = vadd.f32 %v471, %v479
    %v482 = vtanh.pop %v481
    %484 = vrot.lane.b32.xlu0 %v482, 64
    %v485 = vpop.permute.xlu0 %484
    %v487 = vmul.f32 %v469, %v485
    %v489 = vlaneseq
    %v490 = vshrl.u32 %v489, 7
    %v491 = vsub.s32 0, %v490
    %v492 = vrot.slane %v210, %v491
    %493 = vrot.lane.b32.xlu0 %v492, 96
    %v494 = vpop.permute.xlu0 %493
    %v496 = vmul.f32 %v487, %v494
    %498 = vrot.lane.b32.xlu0 %v496, 32
    %v499 = vpop.permute.xlu0 %498
    %vm501 = vcmask 254976
    %v502 = vsel %vm501, %v499, 0.0
    %503 = vadd.xlane.f32.xlu0 %v502
    %v504 = vpop.xlane.xlu0 %503
    %v505 = vstv %s211
    %v506 = vadd.f32 %v504, %v505
    %vm507 = vcmp.eq.s32.totalorder %v213, 0
    %v508 = vsel %vm507, %v506, 0.0
    %v509 = vadd.f32 %v508, 0.0
    %510 = vmatprep.subr.mxu0 0.0
    %511 = vmatpush1.msra.mxu0 %v197
    %512 = vmatprep.subr.mxu0 0.0
    %513 = vmatpush1.msra.mxu0 %v198
    %514 = vmatprep.subr.mxu0 0.0
    %515 = vmatpush1.msra.mxu0 %v199
    %516 = vmatprep.subr.mxu0 0.0
    %517 = vmatpush1.msra.mxu0 %v200
    %518 = vmatprep.subr.mxu0 0.0
    %519 = vmatpush1.msra.mxu0 0.0
    %520 = vmatprep.subr.mxu0 0.0
    %521 = vmatpush1.msra.mxu0 0.0
    %522 = vmatprep.subr.mxu0 0.0
    %523 = vmatpush1.msra.mxu0 0.0
    %524 = vmatprep.subr.mxu0 0.0
    %525 = vmatpush1.msra.mxu0 0.0
    %526 = vmatprep.subr.mxu0 0.0
    %527 = vmatpush1.msra.mxu0 0.0
    %528 = vmatprep.subr.mxu0 0.0
    %529 = vmatpush1.msra.mxu0 0.0
    %530 = vmatprep.subr.mxu0 0.0
    %531 = vmatpush1.msra.mxu0 0.0
    %532 = vmatprep.subr.mxu0 0.0
    %533 = vmatpush1.msra.mxu0 0.0
    %534 = vmatprep.subr.mxu0 0.0
    %535 = vmatpush1.msra.mxu0 0.0
    %536 = vmatprep.subr.mxu0 0.0
    %537 = vmatpush1.msra.mxu0 0.0
    %538 = vmatprep.subr.mxu0 0.0
    %539 = vmatpush1.msra.mxu0 0.0
    %540 = vmatprep.subr.mxu0 0.0
    %541 = vmatpush1.msra.mxu0 0.0
    %542 = vmatprep.subr.mxu0 0.0
    %543 = vmatpush1.msra.mxu0 0.0
    %544 = vmatprep.subr.mxu0 0.0
    %545 = vmatpush1.msra.mxu0 0.0
    %546 = vmatprep.subr.mxu0 0.0
    %547 = vmatpush1.msra.mxu0 0.0
    %548 = vmatprep.subr.mxu0 0.0
    %549 = vmatpush1.msra.mxu0 0.0
    %550 = vmatprep.subr.mxu0 0.0
    %551 = vmatpush1.msra.mxu0 0.0
    %552 = vmatprep.subr.mxu0 0.0
    %553 = vmatpush1.msra.mxu0 0.0
    %554 = vmatprep.subr.mxu0 0.0
    %555 = vmatpush1.msra.mxu0 0.0
    %556 = vmatprep.subr.mxu0 0.0
    %557 = vmatpush1.msra.mxu0 0.0
    %558 = vmatprep.subr.mxu0 0.0
    %559 = vmatpush1.msra.mxu0 0.0
    %560 = vmatprep.subr.mxu0 0.0
    %561 = vmatpush1.msra.mxu0 0.0
    %562 = vmatprep.subr.mxu0 0.0
    %563 = vmatpush1.msra.mxu0 0.0
    %564 = vmatprep.subr.mxu0 0.0
    %565 = vmatpush1.msra.mxu0 0.0
    %566 = vmatprep.subr.mxu0 0.0
    %567 = vmatpush1.msra.mxu0 0.0
    %568 = vmatprep.subr.mxu0 0.0
    %569 = vmatpush1.msra.mxu0 0.0
    %570 = vmatprep.subr.mxu0 0.0
    %571 = vmatpush1.msra.mxu0 0.0
    %572 = vmatprep.subr.mxu0 0.0
    %573 = vmatpush1.msra.mxu0 0.0
    %574 = vmatprep.mubr.f32.mxu0 0.0
    %575 = vmatmul.mubr.f32.gmra.mrb[0].mxu0 %v385
    %v576 = vpop.f32.mrb[0].mxu0
    %v577 = vadd.f32 0.0, %v576
    %v578 = vpop.f32.mrb[0].mxu0
    %579 = vdwg.mxu0
    %v581 = vrot.slane %v577, 6
    %v583 = vadd.f32 %v189, %v581
    %v584 = vxor.u32 %v583, 2147483648
    %v585 = vmul.f32 %v584, 1.442695
    %v586 = vpow.pop %v585
    %v587 = vadd.f32 %v586, 1.0
    %v588 = vrcp.pop %v587
    %v589 = vmul.f32 1.0, %v588
    %v590 = vtanh.pop %v583
    %v592 = vrot.slane %v305, 6
    %v594 = vmul.f32 %v589, %v592
    %596 = vrot.lane.b32.xlu0 %v590, 64
    %v597 = vpop.permute.xlu0 %596
    %v599 = vmul.f32 %v589, %v597
    %601 = vrot.lane.b32.xlu0 %v599, 32
    %v602 = vpop.permute.xlu0 %601
    %v604 = vadd.f32 %v594, %v602
    %v605 = vtanh.pop %v604
    %607 = vrot.lane.b32.xlu0 %v605, 64
    %v608 = vpop.permute.xlu0 %607
    %v610 = vmul.f32 %v589, %v608
    %612 = vrot.lane.b32.xlu0 %v487, 32
    %v613 = vpop.permute.xlu0 %612
    %v614 = vsel %vm115, %v613, 0
    %616 = vmatprep.subr.mxu0 0.0
    %617 = vmatpush1.msra.mxu0 %v205
    %618 = vmatprep.subr.mxu0 0.0
    %619 = vmatpush1.msra.mxu0 %v206
    %620 = vmatprep.subr.mxu0 0.0
    %621 = vmatpush1.msra.mxu0 %v207
    %622 = vmatprep.subr.mxu0 0.0
    %623 = vmatpush1.msra.mxu0 %v208
    %624 = vmatprep.subr.mxu0 0.0
    %625 = vmatpush1.msra.mxu0 0.0
    %626 = vmatprep.subr.mxu0 0.0
    %627 = vmatpush1.msra.mxu0 0.0
    %628 = vmatprep.subr.mxu0 0.0
    %629 = vmatpush1.msra.mxu0 0.0
    %630 = vmatprep.subr.mxu0 0.0
    %631 = vmatpush1.msra.mxu0 0.0
    %632 = vmatprep.subr.mxu0 0.0
    %633 = vmatpush1.msra.mxu0 0.0
    %634 = vmatprep.subr.mxu0 0.0
    %635 = vmatpush1.msra.mxu0 0.0
    %636 = vmatprep.subr.mxu0 0.0
    %637 = vmatpush1.msra.mxu0 0.0
    %638 = vmatprep.subr.mxu0 0.0
    %639 = vmatpush1.msra.mxu0 0.0
    %640 = vmatprep.subr.mxu0 0.0
    %641 = vmatpush1.msra.mxu0 0.0
    %642 = vmatprep.subr.mxu0 0.0
    %643 = vmatpush1.msra.mxu0 0.0
    %644 = vmatprep.subr.mxu0 0.0
    %645 = vmatpush1.msra.mxu0 0.0
    %646 = vmatprep.subr.mxu0 0.0
    %647 = vmatpush1.msra.mxu0 0.0
    %648 = vmatprep.subr.mxu0 0.0
    %649 = vmatpush1.msra.mxu0 0.0
    %650 = vmatprep.subr.mxu0 0.0
    %651 = vmatpush1.msra.mxu0 0.0
    %652 = vmatprep.subr.mxu0 0.0
    %653 = vmatpush1.msra.mxu0 0.0
    %654 = vmatprep.subr.mxu0 0.0
    %655 = vmatpush1.msra.mxu0 0.0
    %656 = vmatprep.subr.mxu0 0.0
    %657 = vmatpush1.msra.mxu0 0.0
    %658 = vmatprep.subr.mxu0 0.0
    %659 = vmatpush1.msra.mxu0 0.0
    %660 = vmatprep.subr.mxu0 0.0
    %661 = vmatpush1.msra.mxu0 0.0
    %662 = vmatprep.subr.mxu0 0.0
    %663 = vmatpush1.msra.mxu0 0.0
    %664 = vmatprep.subr.mxu0 0.0
    %665 = vmatpush1.msra.mxu0 0.0
    %666 = vmatprep.subr.mxu0 0.0
    %667 = vmatpush1.msra.mxu0 0.0
    %668 = vmatprep.subr.mxu0 0.0
    %669 = vmatpush1.msra.mxu0 0.0
    %670 = vmatprep.subr.mxu0 0.0
    %671 = vmatpush1.msra.mxu0 0.0
    %672 = vmatprep.subr.mxu0 0.0
    %673 = vmatpush1.msra.mxu0 0.0
    %674 = vmatprep.subr.mxu0 0.0
    %675 = vmatpush1.msra.mxu0 0.0
    %676 = vmatprep.subr.mxu0 0.0
    %677 = vmatpush1.msra.mxu0 0.0
    %678 = vmatprep.subr.mxu0 0.0
    %679 = vmatpush1.msra.mxu0 0.0
    %680 = vmatprep.mubr.f32.mxu0 0.0
    %681 = vmatmul.mubr.f32.gmra.mrb[0].mxu0 %v614
    %v682 = vpop.f32.mrb[0].mxu0
    %v683 = vadd.f32 0.0, %v682
    %v684 = vpop.f32.mrb[0].mxu0
    %685 = vdwg.mxu0
    %v687 = vrot.slane %v610, 2
    %688 = vrot.lane.b32.xlu0 %v687, 32
    %v689 = vpop.permute.xlu0 %688
    %v690 = vsel %vm115, %v689, 0
    %692 = vmatprep.subr.mxu0 0.0
    %693 = vmatpush1.msra.mxu0 %v201
    %694 = vmatprep.subr.mxu0 0.0
    %695 = vmatpush1.msra.mxu0 %v202
    %696 = vmatprep.subr.mxu0 0.0
    %697 = vmatpush1.msra.mxu0 %v203
    %698 = vmatprep.subr.mxu0 0.0
    %699 = vmatpush1.msra.mxu0 %v204
    %700 = vmatprep.subr.mxu0 0.0
    %701 = vmatpush1.msra.mxu0 0.0
    %702 = vmatprep.subr.mxu0 0.0
    %703 = vmatpush1.msra.mxu0 0.0
    %704 = vmatprep.subr.mxu0 0.0
    %705 = vmatpush1.msra.mxu0 0.0
    %706 = vmatprep.subr.mxu0 0.0
    %707 = vmatpush1.msra.mxu0 0.0
    %708 = vmatprep.subr.mxu0 0.0
    %709 = vmatpush1.msra.mxu0 0.0
    %710 = vmatprep.subr.mxu0 0.0
    %711 = vmatpush1.msra.mxu0 0.0
    %712 = vmatprep.subr.mxu0 0.0
    %713 = vmatpush1.msra.mxu0 0.0
    %714 = vmatprep.subr.mxu0 0.0
    %715 = vmatpush1.msra.mxu0 0.0
    %716 = vmatprep.subr.mxu0 0.0
    %717 = vmatpush1.msra.mxu0 0.0
    %718 = vmatprep.subr.mxu0 0.0
    %719 = vmatpush1.msra.mxu0 0.0
    %720 = vmatprep.subr.mxu0 0.0
    %721 = vmatpush1.msra.mxu0 0.0
    %722 = vmatprep.subr.mxu0 0.0
    %723 = vmatpush1.msra.mxu0 0.0
    %724 = vmatprep.subr.mxu0 0.0
    %725 = vmatpush1.msra.mxu0 0.0
    %726 = vmatprep.subr.mxu0 0.0
    %727 = vmatpush1.msra.mxu0 0.0
    %728 = vmatprep.subr.mxu0 0.0
    %729 = vmatpush1.msra.mxu0 0.0
    %730 = vmatprep.subr.mxu0 0.0
    %731 = vmatpush1.msra.mxu0 0.0
    %732 = vmatprep.subr.mxu0 0.0
    %733 = vmatpush1.msra.mxu0 0.0
    %734 = vmatprep.subr.mxu0 0.0
    %735 = vmatpush1.msra.mxu0 0.0
    %736 = vmatprep.subr.mxu0 0.0
    %737 = vmatpush1.msra.mxu0 0.0
    %738 = vmatprep.subr.mxu0 0.0
    %739 = vmatpush1.msra.mxu0 0.0
    %740 = vmatprep.subr.mxu0 0.0
    %741 = vmatpush1.msra.mxu0 0.0
    %742 = vmatprep.subr.mxu0 0.0
    %743 = vmatpush1.msra.mxu0 0.0
    %744 = vmatprep.subr.mxu0 0.0
    %745 = vmatpush1.msra.mxu0 0.0
    %746 = vmatprep.subr.mxu0 0.0
    %747 = vmatpush1.msra.mxu0 0.0
    %748 = vmatprep.subr.mxu0 0.0
    %749 = vmatpush1.msra.mxu0 0.0
    %750 = vmatprep.subr.mxu0 0.0
    %751 = vmatpush1.msra.mxu0 0.0
    %752 = vmatprep.subr.mxu0 0.0
    %753 = vmatpush1.msra.mxu0 0.0
    %754 = vmatprep.subr.mxu0 0.0
    %755 = vmatpush1.msra.mxu0 0.0
    %756 = vmatprep.mubr.f32.mxu0 0.0
    %757 = vmatmul.mubr.f32.gmra.mrb[0].mxu0 %v690
    %v758 = vpop.f32.mrb[0].mxu0
    %v759 = vadd.f32 %v683, %v758
    %v760 = vpop.f32.mrb[0].mxu0
    %761 = vdwg.mxu0
    %v762 = vadd.f32 %v759, %v461
    %v763 = vxor.u32 %v762, 2147483648
    %v764 = vmul.f32 %v763, 1.442695
    %v765 = vpow.pop %v764
    %v766 = vadd.f32 %v765, 1.0
    %v767 = vrcp.pop %v766
    %v768 = vmul.f32 1.0, %v767
    %v769 = vtanh.pop %v762
    %v770 = vmul.f32 %v768, %v481
    %772 = vrot.lane.b32.xlu0 %v769, 64
    %v773 = vpop.permute.xlu0 %772
    %v775 = vmul.f32 %v768, %v773
    %777 = vrot.lane.b32.xlu0 %v775, 32
    %v778 = vpop.permute.xlu0 %777
    %v780 = vadd.f32 %v770, %v778
    %v781 = vtanh.pop %v780
    %783 = vrot.lane.b32.xlu0 %v781, 64
    %v784 = vpop.permute.xlu0 %783
    %v786 = vmul.f32 %v768, %v784
    %v787 = vmul.f32 %v786, %v494
    %789 = vrot.lane.b32.xlu0 %v787, 32
    %v790 = vpop.permute.xlu0 %789
    %v792 = vsel %vm501, %v790, 0.0
    %793 = vadd.xlane.f32.xlu0 %v792
    %v794 = vpop.xlane.xlu0 %793
    %v795 = vadd.f32 %v794, %v505
    %vm796 = vcmp.eq.s32.totalorder %v213, 1
    %v797 = vsel %vm796, %v795, 0.0
    %v798 = vadd.f32 %v509, %v797
    %799 = vmatprep.subr.mxu0 0.0
    %800 = vmatpush1.msra.mxu0 %v197
    %801 = vmatprep.subr.mxu0 0.0
    %802 = vmatpush1.msra.mxu0 %v198
    %803 = vmatprep.subr.mxu0 0.0
    %804 = vmatpush1.msra.mxu0 %v199
    %805 = vmatprep.subr.mxu0 0.0
    %806 = vmatpush1.msra.mxu0 %v200
    %807 = vmatprep.subr.mxu0 0.0
    %808 = vmatpush1.msra.mxu0 0.0
    %809 = vmatprep.subr.mxu0 0.0
    %810 = vmatpush1.msra.mxu0 0.0
    %811 = vmatprep.subr.mxu0 0.0
    %812 = vmatpush1.msra.mxu0 0.0
    %813 = vmatprep.subr.mxu0 0.0
    %814 = vmatpush1.msra.mxu0 0.0
    %815 = vmatprep.subr.mxu0 0.0
    %816 = vmatpush1.msra.mxu0 0.0
    %817 = vmatprep.subr.mxu0 0.0
    %818 = vmatpush1.msra.mxu0 0.0
    %819 = vmatprep.subr.mxu0 0.0
    %820 = vmatpush1.msra.mxu0 0.0
    %821 = vmatprep.subr.mxu0 0.0
    %822 = vmatpush1.msra.mxu0 0.0
    %823 = vmatprep.subr.mxu0 0.0
    %824 = vmatpush1.msra.mxu0 0.0
    %825 = vmatprep.subr.mxu0 0.0
    %826 = vmatpush1.msra.mxu0 0.0
    %827 = vmatprep.subr.mxu0 0.0
    %828 = vmatpush1.msra.mxu0 0.0
    %829 = vmatprep.subr.mxu0 0.0
    %830 = vmatpush1.msra.mxu0 0.0
    %831 = vmatprep.subr.mxu0 0.0
    %832 = vmatpush1.msra.mxu0 0.0
    %833 = vmatprep.subr.mxu0 0.0
    %834 = vmatpush1.msra.mxu0 0.0
    %835 = vmatprep.subr.mxu0 0.0
    %836 = vmatpush1.msra.mxu0 0.0
    %837 = vmatprep.subr.mxu0 0.0
    %838 = vmatpush1.msra.mxu0 0.0
    %839 = vmatprep.subr.mxu0 0.0
    %840 = vmatpush1.msra.mxu0 0.0
    %841 = vmatprep.subr.mxu0 0.0
    %842 = vmatpush1.msra.mxu0 0.0
    %843 = vmatprep.subr.mxu0 0.0
    %844 = vmatpush1.msra.mxu0 0.0
    %845 = vmatprep.subr.mxu0 0.0
    %846 = vmatpush1.msra.mxu0 0.0
    %847 = vmatprep.subr.mxu0 0.0
    %848 = vmatpush1.msra.mxu0 0.0
    %849 = vmatprep.subr.mxu0 0.0
    %850 = vmatpush1.msra.mxu0 0.0
    %851 = vmatprep.subr.mxu0 0.0
    %852 = vmatpush1.msra.mxu0 0.0
    %853 = vmatprep.subr.mxu0 0.0
    %854 = vmatpush1.msra.mxu0 0.0
    %855 = vmatprep.subr.mxu0 0.0
    %856 = vmatpush1.msra.mxu0 0.0
    %857 = vmatprep.subr.mxu0 0.0
    %858 = vmatpush1.msra.mxu0 0.0
    %859 = vmatprep.subr.mxu0 0.0
    %860 = vmatpush1.msra.mxu0 0.0
    %861 = vmatprep.subr.mxu0 0.0
    %862 = vmatpush1.msra.mxu0 0.0
    %863 = vmatprep.mubr.f32.mxu0 0.0
    %864 = vmatmul.mubr.f32.gmra.mrb[0].mxu0 %v690
    %v865 = vpop.f32.mrb[0].mxu0
    %v866 = vadd.f32 0.0, %v865
    %v867 = vpop.f32.mrb[0].mxu0
    %868 = vdwg.mxu0
    %v870 = vrot.slane %v866, 4
    %v872 = vadd.f32 %v189, %v870
    %v873 = vxor.u32 %v872, 2147483648
    %v874 = vmul.f32 %v873, 1.442695
    %v875 = vpow.pop %v874
    %v876 = vadd.f32 %v875, 1.0
    %v877 = vrcp.pop %v876
    %v878 = vmul.f32 1.0, %v877
    %v879 = vtanh.pop %v872
    %v881 = vrot.slane %v604, 6
    %v883 = vmul.f32 %v878, %v881
    %885 = vrot.lane.b32.xlu0 %v879, 64
    %v886 = vpop.permute.xlu0 %885
    %v888 = vmul.f32 %v878, %v886
    %890 = vrot.lane.b32.xlu0 %v888, 32
    %v891 = vpop.permute.xlu0 %890
    %v893 = vadd.f32 %v883, %v891
    %v894 = vtanh.pop %v893
    %896 = vrot.lane.b32.xlu0 %v894, 64
    %v897 = vpop.permute.xlu0 %896
    %v899 = vmul.f32 %v878, %v897
    %901 = vrot.lane.b32.xlu0 %v786, 32
    %v902 = vpop.permute.xlu0 %901
    %v903 = vsel %vm115, %v902, 0
    %905 = vmatprep.subr.mxu0 0.0
    %906 = vmatpush1.msra.mxu0 %v205
    %907 = vmatprep.subr.mxu0 0.0
    %908 = vmatpush1.msra.mxu0 %v206
    %909 = vmatprep.subr.mxu0 0.0
    %910 = vmatpush1.msra.mxu0 %v207
    %911 = vmatprep.subr.mxu0 0.0
    %912 = vmatpush1.msra.mxu0 %v208
    %913 = vmatprep.subr.mxu0 0.0
    %914 = vmatpush1.msra.mxu0 0.0
    %915 = vmatprep.subr.mxu0 0.0
    %916 = vmatpush1.msra.mxu0 0.0
    %917 = vmatprep.subr.mxu0 0.0
    %918 = vmatpush1.msra.mxu0 0.0
    %919 = vmatprep.subr.mxu0 0.0
    %920 = vmatpush1.msra.mxu0 0.0
    %921 = vmatprep.subr.mxu0 0.0
    %922 = vmatpush1.msra.mxu0 0.0
    %923 = vmatprep.subr.mxu0 0.0
    %924 = vmatpush1.msra.mxu0 0.0
    %925 = vmatprep.subr.mxu0 0.0
    %926 = vmatpush1.msra.mxu0 0.0
    %927 = vmatprep.subr.mxu0 0.0
    %928 = vmatpush1.msra.mxu0 0.0
    %929 = vmatprep.subr.mxu0 0.0
    %930 = vmatpush1.msra.mxu0 0.0
    %931 = vmatprep.subr.mxu0 0.0
    %932 = vmatpush1.msra.mxu0 0.0
    %933 = vmatprep.subr.mxu0 0.0
    %934 = vmatpush1.msra.mxu0 0.0
    %935 = vmatprep.subr.mxu0 0.0
    %936 = vmatpush1.msra.mxu0 0.0
    %937 = vmatprep.subr.mxu0 0.0
    %938 = vmatpush1.msra.mxu0 0.0
    %939 = vmatprep.subr.mxu0 0.0
    %940 = vmatpush1.msra.mxu0 0.0
    %941 = vmatprep.subr.mxu0 0.0
    %942 = vmatpush1.msra.mxu0 0.0
    %943 = vmatprep.subr.mxu0 0.0
    %944 = vmatpush1.msra.mxu0 0.0
    %945 = vmatprep.subr.mxu0 0.0
    %946 = vmatpush1.msra.mxu0 0.0
    %947 = vmatprep.subr.mxu0 0.0
    %948 = vmatpush1.msra.mxu0 0.0
    %949 = vmatprep.subr.mxu0 0.0
    %950 = vmatpush1.msra.mxu0 0.0
    %951 = vmatprep.subr.mxu0 0.0
    %952 = vmatpush1.msra.mxu0 0.0
    %953 = vmatprep.subr.mxu0 0.0
    %954 = vmatpush1.msra.mxu0 0.0
    %955 = vmatprep.subr.mxu0 0.0
    %956 = vmatpush1.msra.mxu0 0.0
    %957 = vmatprep.subr.mxu0 0.0
    %958 = vmatpush1.msra.mxu0 0.0
    %959 = vmatprep.subr.mxu0 0.0
    %960 = vmatpush1.msra.mxu0 0.0
    %961 = vmatprep.subr.mxu0 0.0
    %962 = vmatpush1.msra.mxu0 0.0
    %963 = vmatprep.subr.mxu0 0.0
    %964 = vmatpush1.msra.mxu0 0.0
    %965 = vmatprep.subr.mxu0 0.0
    %966 = vmatpush1.msra.mxu0 0.0
    %967 = vmatprep.subr.mxu0 0.0
    %968 = vmatpush1.msra.mxu0 0.0
    %969 = vmatprep.mubr.f32.mxu0 0.0
    %970 = vmatmul.mubr.f32.gmra.mrb[0].mxu0 %v903
    %v971 = vpop.f32.mrb[0].mxu0
    %v972 = vadd.f32 0.0, %v971
    %v973 = vpop.f32.mrb[0].mxu0
    %974 = vdwg.mxu0
    %v976 = vrot.slane %v899, 4
    %977 = vrot.lane.b32.xlu0 %v976, 32
    %v978 = vpop.permute.xlu0 %977
    %v979 = vsel %vm115, %v978, 0
    %981 = vmatprep.subr.mxu0 0.0
    %982 = vmatpush1.msra.mxu0 %v201
    %983 = vmatprep.subr.mxu0 0.0
    %984 = vmatpush1.msra.mxu0 %v202
    %985 = vmatprep.subr.mxu0 0.0
    %986 = vmatpush1.msra.mxu0 %v203
    %987 = vmatprep.subr.mxu0 0.0
    %988 = vmatpush1.msra.mxu0 %v204
    %989 = vmatprep.subr.mxu0 0.0
    %990 = vmatpush1.msra.mxu0 0.0
    %991 = vmatprep.subr.mxu0 0.0
    %992 = vmatpush1.msra.mxu0 0.0
    %993 = vmatprep.subr.mxu0 0.0
    %994 = vmatpush1.msra.mxu0 0.0
    %995 = vmatprep.subr.mxu0 0.0
    %996 = vmatpush1.msra.mxu0 0.0
    %997 = vmatprep.subr.mxu0 0.0
    %998 = vmatpush1.msra.mxu0 0.0
    %999 = vmatprep.subr.mxu0 0.0
    %1000 = vmatpush1.msra.mxu0 0.0
    %1001 = vmatprep.subr.mxu0 0.0
    %1002 = vmatpush1.msra.mxu0 0.0
    %1003 = vmatprep.subr.mxu0 0.0
    %1004 = vmatpush1.msra.mxu0 0.0
    %1005 = vmatprep.subr.mxu0 0.0
    %1006 = vmatpush1.msra.mxu0 0.0
    %1007 = vmatprep.subr.mxu0 0.0
    %1008 = vmatpush1.msra.mxu0 0.0
    %1009 = vmatprep.subr.mxu0 0.0
    %1010 = vmatpush1.msra.mxu0 0.0
    %1011 = vmatprep.subr.mxu0 0.0
    %1012 = vmatpush1.msra.mxu0 0.0
    %1013 = vmatprep.subr.mxu0 0.0
    %1014 = vmatpush1.msra.mxu0 0.0
    %1015 = vmatprep.subr.mxu0 0.0
    %1016 = vmatpush1.msra.mxu0 0.0
    %1017 = vmatprep.subr.mxu0 0.0
    %1018 = vmatpush1.msra.mxu0 0.0
    %1019 = vmatprep.subr.mxu0 0.0
    %1020 = vmatpush1.msra.mxu0 0.0
    %1021 = vmatprep.subr.mxu0 0.0
    %1022 = vmatpush1.msra.mxu0 0.0
    %1023 = vmatprep.subr.mxu0 0.0
    %1024 = vmatpush1.msra.mxu0 0.0
    %1025 = vmatprep.subr.mxu0 0.0
    %1026 = vmatpush1.msra.mxu0 0.0
    %1027 = vmatprep.subr.mxu0 0.0
    %1028 = vmatpush1.msra.mxu0 0.0
    %1029 = vmatprep.subr.mxu0 0.0
    %1030 = vmatpush1.msra.mxu0 0.0
    %1031 = vmatprep.subr.mxu0 0.0
    %1032 = vmatpush1.msra.mxu0 0.0
    %1033 = vmatprep.subr.mxu0 0.0
    %1034 = vmatpush1.msra.mxu0 0.0
    %1035 = vmatprep.subr.mxu0 0.0
    %1036 = vmatpush1.msra.mxu0 0.0
    %1037 = vmatprep.subr.mxu0 0.0
    %1038 = vmatpush1.msra.mxu0 0.0
    %1039 = vmatprep.subr.mxu0 0.0
    %1040 = vmatpush1.msra.mxu0 0.0
    %1041 = vmatprep.subr.mxu0 0.0
    %1042 = vmatpush1.msra.mxu0 0.0
    %1043 = vmatprep.subr.mxu0 0.0
    %1044 = vmatpush1.msra.mxu0 0.0
    %1045 = vmatprep.mubr.f32.mxu0 0.0
    %1046 = vmatmul.mubr.f32.gmra.mrb[0].mxu0 %v979
    %v1047 = vpop.f32.mrb[0].mxu0
    %v1048 = vadd.f32 %v972, %v1047
    %v1049 = vpop.f32.mrb[0].mxu0
    %1050 = vdwg.mxu0
    %v1051 = vadd.f32 %v1048, %v461
    %v1052 = vxor.u32 %v1051, 2147483648
    %v1053 = vmul.f32 %v1052, 1.442695
    %v1054 = vpow.pop %v1053
    %v1055 = vadd.f32 %v1054, 1.0
    %v1056 = vrcp.pop %v1055
    %v1057 = vmul.f32 1.0, %v1056
    %v1058 = vtanh.pop %v1051
    %v1059 = vmul.f32 %v1057, %v780
    %1061 = vrot.lane.b32.xlu0 %v1058, 64
    %v1062 = vpop.permute.xlu0 %1061
    %v1064 = vmul.f32 %v1057, %v1062
    %1066 = vrot.lane.b32.xlu0 %v1064, 32
    %v1067 = vpop.permute.xlu0 %1066
    %v1069 = vadd.f32 %v1059, %v1067
    %v1070 = vtanh.pop %v1069
    %1072 = vrot.lane.b32.xlu0 %v1070, 64
    %v1073 = vpop.permute.xlu0 %1072
    %v1075 = vmul.f32 %v1057, %v1073
    %v1076 = vmul.f32 %v1075, %v494
    %1078 = vrot.lane.b32.xlu0 %v1076, 32
    %v1079 = vpop.permute.xlu0 %1078
    %v1081 = vsel %vm501, %v1079, 0.0
    %1082 = vadd.xlane.f32.xlu0 %v1081
    %v1083 = vpop.xlane.xlu0 %1082
    %v1084 = vadd.f32 %v1083, %v505
    %vm1085 = vcmp.eq.s32.totalorder %v213, 2
    %v1086 = vsel %vm1085, %v1084, 0.0
    %v1087 = vadd.f32 %v798, %v1086
    %1088 = vmatprep.subr.mxu0 0.0
    %1089 = vmatpush1.msra.mxu0 %v197
    %1090 = vmatprep.subr.mxu0 0.0
    %1091 = vmatpush1.msra.mxu0 %v198
    %1092 = vmatprep.subr.mxu0 0.0
    %1093 = vmatpush1.msra.mxu0 %v199
    %1094 = vmatprep.subr.mxu0 0.0
    %1095 = vmatpush1.msra.mxu0 %v200
    %1096 = vmatprep.subr.mxu0 0.0
    %1097 = vmatpush1.msra.mxu0 0.0
    %1098 = vmatprep.subr.mxu0 0.0
    %1099 = vmatpush1.msra.mxu0 0.0
    %1100 = vmatprep.subr.mxu0 0.0
    %1101 = vmatpush1.msra.mxu0 0.0
    %1102 = vmatprep.subr.mxu0 0.0
    %1103 = vmatpush1.msra.mxu0 0.0
    %1104 = vmatprep.subr.mxu0 0.0
    %1105 = vmatpush1.msra.mxu0 0.0
    %1106 = vmatprep.subr.mxu0 0.0
    %1107 = vmatpush1.msra.mxu0 0.0
    %1108 = vmatprep.subr.mxu0 0.0
    %1109 = vmatpush1.msra.mxu0 0.0
    %1110 = vmatprep.subr.mxu0 0.0
    %1111 = vmatpush1.msra.mxu0 0.0
    %1112 = vmatprep.subr.mxu0 0.0
    %1113 = vmatpush1.msra.mxu0 0.0
    %1114 = vmatprep.subr.mxu0 0.0
    %1115 = vmatpush1.msra.mxu0 0.0
    %1116 = vmatprep.subr.mxu0 0.0
    %1117 = vmatpush1.msra.mxu0 0.0
    %1118 = vmatprep.subr.mxu0 0.0
    %1119 = vmatpush1.msra.mxu0 0.0
    %1120 = vmatprep.subr.mxu0 0.0
    %1121 = vmatpush1.msra.mxu0 0.0
    %1122 = vmatprep.subr.mxu0 0.0
    %1123 = vmatpush1.msra.mxu0 0.0
    %1124 = vmatprep.subr.mxu0 0.0
    %1125 = vmatpush1.msra.mxu0 0.0
    %1126 = vmatprep.subr.mxu0 0.0
    %1127 = vmatpush1.msra.mxu0 0.0
    %1128 = vmatprep.subr.mxu0 0.0
    %1129 = vmatpush1.msra.mxu0 0.0
    %1130 = vmatprep.subr.mxu0 0.0
    %1131 = vmatpush1.msra.mxu0 0.0
    %1132 = vmatprep.subr.mxu0 0.0
    %1133 = vmatpush1.msra.mxu0 0.0
    %1134 = vmatprep.subr.mxu0 0.0
    %1135 = vmatpush1.msra.mxu0 0.0
    %1136 = vmatprep.subr.mxu0 0.0
    %1137 = vmatpush1.msra.mxu0 0.0
    %1138 = vmatprep.subr.mxu0 0.0
    %1139 = vmatpush1.msra.mxu0 0.0
    %1140 = vmatprep.subr.mxu0 0.0
    %1141 = vmatpush1.msra.mxu0 0.0
    %1142 = vmatprep.subr.mxu0 0.0
    %1143 = vmatpush1.msra.mxu0 0.0
    %1144 = vmatprep.subr.mxu0 0.0
    %1145 = vmatpush1.msra.mxu0 0.0
    %1146 = vmatprep.subr.mxu0 0.0
    %1147 = vmatpush1.msra.mxu0 0.0
    %1148 = vmatprep.subr.mxu0 0.0
    %1149 = vmatpush1.msra.mxu0 0.0
    %1150 = vmatprep.subr.mxu0 0.0
    %1151 = vmatpush1.msra.mxu0 0.0
    %1152 = vmatprep.mubr.f32.mxu0 0.0
    %1153 = vmatmul.mubr.f32.gmra.mrb[0].mxu0 %v979
    %v1154 = vpop.f32.mrb[0].mxu0
    %v1155 = vadd.f32 0.0, %v1154
    %v1156 = vpop.f32.mrb[0].mxu0
    %1157 = vdwg.mxu0
    %v1159 = vrot.slane %v1155, 2
    %v1161 = vadd.f32 %v189, %v1159
    %v1162 = vxor.u32 %v1161, 2147483648
    %v1163 = vmul.f32 %v1162, 1.442695
    %v1164 = vpow.pop %v1163
    %v1165 = vadd.f32 %v1164, 1.0
    %v1166 = vrcp.pop %v1165
    %v1167 = vmul.f32 1.0, %v1166
    %v1168 = vtanh.pop %v1161
    %v1170 = vrot.slane %v893, 6
    %v1172 = vmul.f32 %v1167, %v1170
    %1174 = vrot.lane.b32.xlu0 %v1168, 64
    %v1175 = vpop.permute.xlu0 %1174
    %v1177 = vmul.f32 %v1167, %v1175
    %1179 = vrot.lane.b32.xlu0 %v1177, 32
    %v1180 = vpop.permute.xlu0 %1179
    %v1182 = vadd.f32 %v1172, %v1180
    %v1183 = vtanh.pop %v1182
    %1185 = vrot.lane.b32.xlu0 %v1183, 64
    %v1186 = vpop.permute.xlu0 %1185
    %v1188 = vmul.f32 %v1167, %v1186
    %1190 = vrot.lane.b32.xlu0 %v1075, 32
    %v1191 = vpop.permute.xlu0 %1190
    %v1192 = vsel %vm115, %v1191, 0
    %1194 = vmatprep.subr.mxu0 0.0
    %1195 = vmatpush1.msra.mxu0 %v205
    %1196 = vmatprep.subr.mxu0 0.0
    %1197 = vmatpush1.msra.mxu0 %v206
    %1198 = vmatprep.subr.mxu0 0.0
    %1199 = vmatpush1.msra.mxu0 %v207
    %1200 = vmatprep.subr.mxu0 0.0
    %1201 = vmatpush1.msra.mxu0 %v208
    %1202 = vmatprep.subr.mxu0 0.0
    %1203 = vmatpush1.msra.mxu0 0.0
    %1204 = vmatprep.subr.mxu0 0.0
    %1205 = vmatpush1.msra.mxu0 0.0
    %1206 = vmatprep.subr.mxu0 0.0
    %1207 = vmatpush1.msra.mxu0 0.0
    %1208 = vmatprep.subr.mxu0 0.0
    %1209 = vmatpush1.msra.mxu0 0.0
    %1210 = vmatprep.subr.mxu0 0.0
    %1211 = vmatpush1.msra.mxu0 0.0
    %1212 = vmatprep.subr.mxu0 0.0
    %1213 = vmatpush1.msra.mxu0 0.0
    %1214 = vmatprep.subr.mxu0 0.0
    %1215 = vmatpush1.msra.mxu0 0.0
    %1216 = vmatprep.subr.mxu0 0.0
    %1217 = vmatpush1.msra.mxu0 0.0
    %1218 = vmatprep.subr.mxu0 0.0
    %1219 = vmatpush1.msra.mxu0 0.0
    %1220 = vmatprep.subr.mxu0 0.0
    %1221 = vmatpush1.msra.mxu0 0.0
    %1222 = vmatprep.subr.mxu0 0.0
    %1223 = vmatpush1.msra.mxu0 0.0
    %1224 = vmatprep.subr.mxu0 0.0
    %1225 = vmatpush1.msra.mxu0 0.0
    %1226 = vmatprep.subr.mxu0 0.0
    %1227 = vmatpush1.msra.mxu0 0.0
    %1228 = vmatprep.subr.mxu0 0.0
    %1229 = vmatpush1.msra.mxu0 0.0
    %1230 = vmatprep.subr.mxu0 0.0
    %1231 = vmatpush1.msra.mxu0 0.0
    %1232 = vmatprep.subr.mxu0 0.0
    %1233 = vmatpush1.msra.mxu0 0.0
    %1234 = vmatprep.subr.mxu0 0.0
    %1235 = vmatpush1.msra.mxu0 0.0
    %1236 = vmatprep.subr.mxu0 0.0
    %1237 = vmatpush1.msra.mxu0 0.0
    %1238 = vmatprep.subr.mxu0 0.0
    %1239 = vmatpush1.msra.mxu0 0.0
    %1240 = vmatprep.subr.mxu0 0.0
    %1241 = vmatpush1.msra.mxu0 0.0
    %1242 = vmatprep.subr.mxu0 0.0
    %1243 = vmatpush1.msra.mxu0 0.0
    %1244 = vmatprep.subr.mxu0 0.0
    %1245 = vmatpush1.msra.mxu0 0.0
    %1246 = vmatprep.subr.mxu0 0.0
    %1247 = vmatpush1.msra.mxu0 0.0
    %1248 = vmatprep.subr.mxu0 0.0
    %1249 = vmatpush1.msra.mxu0 0.0
    %1250 = vmatprep.subr.mxu0 0.0
    %1251 = vmatpush1.msra.mxu0 0.0
    %1252 = vmatprep.subr.mxu0 0.0
    %1253 = vmatpush1.msra.mxu0 0.0
    %1254 = vmatprep.subr.mxu0 0.0
    %1255 = vmatpush1.msra.mxu0 0.0
    %1256 = vmatprep.subr.mxu0 0.0
    %1257 = vmatpush1.msra.mxu0 0.0
    %1258 = vmatprep.mubr.f32.mxu0 0.0
    %1259 = vmatmul.mubr.f32.gmra.mrb[0].mxu0 %v1192
    %v1260 = vpop.f32.mrb[0].mxu0
    %v1261 = vadd.f32 0.0, %v1260
    %v1262 = vpop.f32.mrb[0].mxu0
    %1263 = vdwg.mxu0
    %v1265 = vrot.slane %v1188, 6
    %1266 = vrot.lane.b32.xlu0 %v1265, 32
    %v1267 = vpop.permute.xlu0 %1266
    %v1268 = vsel %vm115, %v1267, 0
    %1270 = vmatprep.subr.mxu0 0.0
    %1271 = vmatpush1.msra.mxu0 %v201
    %1272 = vmatprep.subr.mxu0 0.0
    %1273 = vmatpush1.msra.mxu0 %v202
    %1274 = vmatprep.subr.mxu0 0.0
    %1275 = vmatpush1.msra.mxu0 %v203
    %1276 = vmatprep.subr.mxu0 0.0
    %1277 = vmatpush1.msra.mxu0 %v204
    %1278 = vmatprep.subr.mxu0 0.0
    %1279 = vmatpush1.msra.mxu0 0.0
    %1280 = vmatprep.subr.mxu0 0.0
    %1281 = vmatpush1.msra.mxu0 0.0
    %1282 = vmatprep.subr.mxu0 0.0
    %1283 = vmatpush1.msra.mxu0 0.0
    %1284 = vmatprep.subr.mxu0 0.0
    %1285 = vmatpush1.msra.mxu0 0.0
    %1286 = vmatprep.subr.mxu0 0.0
    %1287 = vmatpush1.msra.mxu0 0.0
    %1288 = vmatprep.subr.mxu0 0.0
    %1289 = vmatpush1.msra.mxu0 0.0
    %1290 = vmatprep.subr.mxu0 0.0
    %1291 = vmatpush1.msra.mxu0 0.0
    %1292 = vmatprep.subr.mxu0 0.0
    %1293 = vmatpush1.msra.mxu0 0.0
    %1294 = vmatprep.subr.mxu0 0.0
    %1295 = vmatpush1.msra.mxu0 0.0
    %1296 = vmatprep.subr.mxu0 0.0
    %1297 = vmatpush1.msra.mxu0 0.0
    %1298 = vmatprep.subr.mxu0 0.0
    %1299 = vmatpush1.msra.mxu0 0.0
    %1300 = vmatprep.subr.mxu0 0.0
    %1301 = vmatpush1.msra.mxu0 0.0
    %1302 = vmatprep.subr.mxu0 0.0
    %1303 = vmatpush1.msra.mxu0 0.0
    %1304 = vmatprep.subr.mxu0 0.0
    %1305 = vmatpush1.msra.mxu0 0.0
    %1306 = vmatprep.subr.mxu0 0.0
    %1307 = vmatpush1.msra.mxu0 0.0
    %1308 = vmatprep.subr.mxu0 0.0
    %1309 = vmatpush1.msra.mxu0 0.0
    %1310 = vmatprep.subr.mxu0 0.0
    %1311 = vmatpush1.msra.mxu0 0.0
    %1312 = vmatprep.subr.mxu0 0.0
    %1313 = vmatpush1.msra.mxu0 0.0
    %1314 = vmatprep.subr.mxu0 0.0
    %1315 = vmatpush1.msra.mxu0 0.0
    %1316 = vmatprep.subr.mxu0 0.0
    %1317 = vmatpush1.msra.mxu0 0.0
    %1318 = vmatprep.subr.mxu0 0.0
    %1319 = vmatpush1.msra.mxu0 0.0
    %1320 = vmatprep.subr.mxu0 0.0
    %1321 = vmatpush1.msra.mxu0 0.0
    %1322 = vmatprep.subr.mxu0 0.0
    %1323 = vmatpush1.msra.mxu0 0.0
    %1324 = vmatprep.subr.mxu0 0.0
    %1325 = vmatpush1.msra.mxu0 0.0
    %1326 = vmatprep.subr.mxu0 0.0
    %1327 = vmatpush1.msra.mxu0 0.0
    %1328 = vmatprep.subr.mxu0 0.0
    %1329 = vmatpush1.msra.mxu0 0.0
    %1330 = vmatprep.subr.mxu0 0.0
    %1331 = vmatpush1.msra.mxu0 0.0
    %1332 = vmatprep.subr.mxu0 0.0
    %1333 = vmatpush1.msra.mxu0 0.0
    %1334 = vmatprep.mubr.f32.mxu0 0.0
    %1335 = vmatmul.mubr.f32.gmra.mrb[0].mxu0 %v1268
    %v1336 = vpop.f32.mrb[0].mxu0
    %v1337 = vadd.f32 %v1261, %v1336
    %v1338 = vpop.f32.mrb[0].mxu0
    %1339 = vdwg.mxu0
    %v1340 = vadd.f32 %v1337, %v461
    %v1341 = vxor.u32 %v1340, 2147483648
    %v1342 = vmul.f32 %v1341, 1.442695
    %v1343 = vpow.pop %v1342
    %v1344 = vadd.f32 %v1343, 1.0
    %v1345 = vrcp.pop %v1344
    %v1346 = vmul.f32 1.0, %v1345
    %v1347 = vtanh.pop %v1340
    %v1348 = vmul.f32 %v1346, %v1069
    %1350 = vrot.lane.b32.xlu0 %v1347, 64
    %v1351 = vpop.permute.xlu0 %1350
    %v1353 = vmul.f32 %v1346, %v1351
    %1355 = vrot.lane.b32.xlu0 %v1353, 32
    %v1356 = vpop.permute.xlu0 %1355
    %v1358 = vadd.f32 %v1348, %v1356
    %v1359 = vtanh.pop %v1358
    %1361 = vrot.lane.b32.xlu0 %v1359, 64
    %v1362 = vpop.permute.xlu0 %1361
    %v1364 = vmul.f32 %v1346, %v1362
    %v1365 = vmul.f32 %v1364, %v494
    %1367 = vrot.lane.b32.xlu0 %v1365, 32
    %v1368 = vpop.permute.xlu0 %1367
    %v1370 = vsel %vm501, %v1368, 0.0
    %1371 = vadd.xlane.f32.xlu0 %v1370
    %v1372 = vpop.xlane.xlu0 %1371
    %v1373 = vadd.f32 %v1372, %v505
    %vm1374 = vcmp.eq.s32.totalorder %v213, 3
    %v1375 = vsel %vm1374, %v1373, 0.0
    %v1376 = vadd.f32 %v1087, %v1375
    %1377 = vmatprep.subr.mxu0 0.0
    %1378 = vmatpush1.msra.mxu0 %v197
    %1379 = vmatprep.subr.mxu0 0.0
    %1380 = vmatpush1.msra.mxu0 %v198
    %1381 = vmatprep.subr.mxu0 0.0
    %1382 = vmatpush1.msra.mxu0 %v199
    %1383 = vmatprep.subr.mxu0 0.0
    %1384 = vmatpush1.msra.mxu0 %v200
    %1385 = vmatprep.subr.mxu0 0.0
    %1386 = vmatpush1.msra.mxu0 0.0
    %1387 = vmatprep.subr.mxu0 0.0
    %1388 = vmatpush1.msra.mxu0 0.0
    %1389 = vmatprep.subr.mxu0 0.0
    %1390 = vmatpush1.msra.mxu0 0.0
    %1391 = vmatprep.subr.mxu0 0.0
    %1392 = vmatpush1.msra.mxu0 0.0
    %1393 = vmatprep.subr.mxu0 0.0
    %1394 = vmatpush1.msra.mxu0 0.0
    %1395 = vmatprep.subr.mxu0 0.0
    %1396 = vmatpush1.msra.mxu0 0.0
    %1397 = vmatprep.subr.mxu0 0.0
    %1398 = vmatpush1.msra.mxu0 0.0
    %1399 = vmatprep.subr.mxu0 0.0
    %1400 = vmatpush1.msra.mxu0 0.0
    %1401 = vmatprep.subr.mxu0 0.0
    %1402 = vmatpush1.msra.mxu0 0.0
    %1403 = vmatprep.subr.mxu0 0.0
    %1404 = vmatpush1.msra.mxu0 0.0
    %1405 = vmatprep.subr.mxu0 0.0
    %1406 = vmatpush1.msra.mxu0 0.0
    %1407 = vmatprep.subr.mxu0 0.0
    %1408 = vmatpush1.msra.mxu0 0.0
    %1409 = vmatprep.subr.mxu0 0.0
    %1410 = vmatpush1.msra.mxu0 0.0
    %1411 = vmatprep.subr.mxu0 0.0
    %1412 = vmatpush1.msra.mxu0 0.0
    %1413 = vmatprep.subr.mxu0 0.0
    %1414 = vmatpush1.msra.mxu0 0.0
    %1415 = vmatprep.subr.mxu0 0.0
    %1416 = vmatpush1.msra.mxu0 0.0
    %1417 = vmatprep.subr.mxu0 0.0
    %1418 = vmatpush1.msra.mxu0 0.0
    %1419 = vmatprep.subr.mxu0 0.0
    %1420 = vmatpush1.msra.mxu0 0.0
    %1421 = vmatprep.subr.mxu0 0.0
    %1422 = vmatpush1.msra.mxu0 0.0
    %1423 = vmatprep.subr.mxu0 0.0
    %1424 = vmatpush1.msra.mxu0 0.0
    %1425 = vmatprep.subr.mxu0 0.0
    %1426 = vmatpush1.msra.mxu0 0.0
    %1427 = vmatprep.subr.mxu0 0.0
    %1428 = vmatpush1.msra.mxu0 0.0
    %1429 = vmatprep.subr.mxu0 0.0
    %1430 = vmatpush1.msra.mxu0 0.0
    %1431 = vmatprep.subr.mxu0 0.0
    %1432 = vmatpush1.msra.mxu0 0.0
    %1433 = vmatprep.subr.mxu0 0.0
    %1434 = vmatpush1.msra.mxu0 0.0
    %1435 = vmatprep.subr.mxu0 0.0
    %1436 = vmatpush1.msra.mxu0 0.0
    %1437 = vmatprep.subr.mxu0 0.0
    %1438 = vmatpush1.msra.mxu0 0.0
    %1439 = vmatprep.subr.mxu0 0.0
    %1440 = vmatpush1.msra.mxu0 0.0
    %1441 = vmatprep.mubr.f32.mxu0 0.0
    %1442 = vmatmul.mubr.f32.gmra.mrb[0].mxu0 %v1268
    %v1443 = vpop.f32.mrb[0].mxu0
    %v1444 = vadd.f32 0.0, %v1443
    %v1445 = vpop.f32.mrb[0].mxu0
    %1446 = vdwg.mxu0
    %v1447 = vadd.f32 %v194, %v1444
    %v1448 = vxor.u32 %v1447, 2147483648
    %v1449 = vmul.f32 %v1448, 1.442695
    %v1450 = vpow.pop %v1449
    %v1451 = vadd.f32 %v1450, 1.0
    %v1452 = vrcp.pop %v1451
    %v1453 = vmul.f32 1.0, %v1452
    %v1454 = vtanh.pop %v1447
    %v1456 = vrot.slane %v1182, 6
    %v1458 = vmul.f32 %v1453, %v1456
    %1460 = vrot.lane.b32.xlu0 %v1454, 64
    %v1461 = vpop.permute.xlu0 %1460
    %v1463 = vmul.f32 %v1453, %v1461
    %1465 = vrot.lane.b32.xlu0 %v1463, 32
    %v1466 = vpop.permute.xlu0 %1465
    %v1468 = vadd.f32 %v1458, %v1466
    %v1469 = vtanh.pop %v1468
    %1471 = vrot.lane.b32.xlu0 %v1469, 64
    %v1472 = vpop.permute.xlu0 %1471
    %v1474 = vmul.f32 %v1453, %v1472
    %1476 = vrot.lane.b32.xlu0 %v1364, 32
    %v1477 = vpop.permute.xlu0 %1476
    %v1478 = vsel %vm115, %v1477, 0
    %1480 = vmatprep.subr.mxu0 0.0
    %1481 = vmatpush1.msra.mxu0 %v205
    %1482 = vmatprep.subr.mxu0 0.0
    %1483 = vmatpush1.msra.mxu0 %v206
    %1484 = vmatprep.subr.mxu0 0.0
    %1485 = vmatpush1.msra.mxu0 %v207
    %1486 = vmatprep.subr.mxu0 0.0
    %1487 = vmatpush1.msra.mxu0 %v208
    %1488 = vmatprep.subr.mxu0 0.0
    %1489 = vmatpush1.msra.mxu0 0.0
    %1490 = vmatprep.subr.mxu0 0.0
    %1491 = vmatpush1.msra.mxu0 0.0
    %1492 = vmatprep.subr.mxu0 0.0
    %1493 = vmatpush1.msra.mxu0 0.0
    %1494 = vmatprep.subr.mxu0 0.0
    %1495 = vmatpush1.msra.mxu0 0.0
    %1496 = vmatprep.subr.mxu0 0.0
    %1497 = vmatpush1.msra.mxu0 0.0
    %1498 = vmatprep.subr.mxu0 0.0
    %1499 = vmatpush1.msra.mxu0 0.0
    %1500 = vmatprep.subr.mxu0 0.0
    %1501 = vmatpush1.msra.mxu0 0.0
    %1502 = vmatprep.subr.mxu0 0.0
    %1503 = vmatpush1.msra.mxu0 0.0
    %1504 = vmatprep.subr.mxu0 0.0
    %1505 = vmatpush1.msra.mxu0 0.0
    %1506 = vmatprep.subr.mxu0 0.0
    %1507 = vmatpush1.msra.mxu0 0.0
    %1508 = vmatprep.subr.mxu0 0.0
    %1509 = vmatpush1.msra.mxu0 0.0
    %1510 = vmatprep.subr.mxu0 0.0
    %1511 = vmatpush1.msra.mxu0 0.0
    %1512 = vmatprep.subr.mxu0 0.0
    %1513 = vmatpush1.msra.mxu0 0.0
    %1514 = vmatprep.subr.mxu0 0.0
    %1515 = vmatpush1.msra.mxu0 0.0
    %1516 = vmatprep.subr.mxu0 0.0
    %1517 = vmatpush1.msra.mxu0 0.0
    %1518 = vmatprep.subr.mxu0 0.0
    %1519 = vmatpush1.msra.mxu0 0.0
    %1520 = vmatprep.subr.mxu0 0.0
    %1521 = vmatpush1.msra.mxu0 0.0
    %1522 = vmatprep.subr.mxu0 0.0
    %1523 = vmatpush1.msra.mxu0 0.0
    %1524 = vmatprep.subr.mxu0 0.0
    %1525 = vmatpush1.msra.mxu0 0.0
    %1526 = vmatprep.subr.mxu0 0.0
    %1527 = vmatpush1.msra.mxu0 0.0
    %1528 = vmatprep.subr.mxu0 0.0
    %1529 = vmatpush1.msra.mxu0 0.0
    %1530 = vmatprep.subr.mxu0 0.0
    %1531 = vmatpush1.msra.mxu0 0.0
    %1532 = vmatprep.subr.mxu0 0.0
    %1533 = vmatpush1.msra.mxu0 0.0
    %1534 = vmatprep.subr.mxu0 0.0
    %1535 = vmatpush1.msra.mxu0 0.0
    %1536 = vmatprep.subr.mxu0 0.0
    %1537 = vmatpush1.msra.mxu0 0.0
    %1538 = vmatprep.subr.mxu0 0.0
    %1539 = vmatpush1.msra.mxu0 0.0
    %1540 = vmatprep.subr.mxu0 0.0
    %1541 = vmatpush1.msra.mxu0 0.0
    %1542 = vmatprep.subr.mxu0 0.0
    %1543 = vmatpush1.msra.mxu0 0.0
    %1544 = vmatprep.mubr.f32.mxu0 0.0
    %1545 = vmatmul.mubr.f32.gmra.mrb[0].mxu0 %v1478
    %v1546 = vpop.f32.mrb[0].mxu0
    %v1547 = vadd.f32 0.0, %v1546
    %v1548 = vpop.f32.mrb[0].mxu0
    %1549 = vdwg.mxu0
    %1551 = vrot.lane.b32.xlu0 %v1474, 32
    %v1552 = vpop.permute.xlu0 %1551
    %v1553 = vsel %vm115, %v1552, 0
    %1555 = vmatprep.subr.mxu0 0.0
    %1556 = vmatpush1.msra.mxu0 %v201
    %1557 = vmatprep.subr.mxu0 0.0
    %1558 = vmatpush1.msra.mxu0 %v202
    %1559 = vmatprep.subr.mxu0 0.0
    %1560 = vmatpush1.msra.mxu0 %v203
    %1561 = vmatprep.subr.mxu0 0.0
    %1562 = vmatpush1.msra.mxu0 %v204
    %1563 = vmatprep.subr.mxu0 0.0
    %1564 = vmatpush1.msra.mxu0 0.0
    %1565 = vmatprep.subr.mxu0 0.0
    %1566 = vmatpush1.msra.mxu0 0.0
    %1567 = vmatprep.subr.mxu0 0.0
    %1568 = vmatpush1.msra.mxu0 0.0
    %1569 = vmatprep.subr.mxu0 0.0
    %1570 = vmatpush1.msra.mxu0 0.0
    %1571 = vmatprep.subr.mxu0 0.0
    %1572 = vmatpush1.msra.mxu0 0.0
    %1573 = vmatprep.subr.mxu0 0.0
    %1574 = vmatpush1.msra.mxu0 0.0
    %1575 = vmatprep.subr.mxu0 0.0
    %1576 = vmatpush1.msra.mxu0 0.0
    %1577 = vmatprep.subr.mxu0 0.0
    %1578 = vmatpush1.msra.mxu0 0.0
    %1579 = vmatprep.subr.mxu0 0.0
    %1580 = vmatpush1.msra.mxu0 0.0
    %1581 = vmatprep.subr.mxu0 0.0
    %1582 = vmatpush1.msra.mxu0 0.0
    %1583 = vmatprep.subr.mxu0 0.0
    %1584 = vmatpush1.msra.mxu0 0.0
    %1585 = vmatprep.subr.mxu0 0.0
    %1586 = vmatpush1.msra.mxu0 0.0
    %1587 = vmatprep.subr.mxu0 0.0
    %1588 = vmatpush1.msra.mxu0 0.0
    %1589 = vmatprep.subr.mxu0 0.0
    %1590 = vmatpush1.msra.mxu0 0.0
    %1591 = vmatprep.subr.mxu0 0.0
    %1592 = vmatpush1.msra.mxu0 0.0
    %1593 = vmatprep.subr.mxu0 0.0
    %1594 = vmatpush1.msra.mxu0 0.0
    %1595 = vmatprep.subr.mxu0 0.0
    %1596 = vmatpush1.msra.mxu0 0.0
    %1597 = vmatprep.subr.mxu0 0.0
    %1598 = vmatpush1.msra.mxu0 0.0
    %1599 = vmatprep.subr.mxu0 0.0
    %1600 = vmatpush1.msra.mxu0 0.0
    %1601 = vmatprep.subr.mxu0 0.0
    %1602 = vmatpush1.msra.mxu0 0.0
    %1603 = vmatprep.subr.mxu0 0.0
    %1604 = vmatpush1.msra.mxu0 0.0
    %1605 = vmatprep.subr.mxu0 0.0
    %1606 = vmatpush1.msra.mxu0 0.0
    %1607 = vmatprep.subr.mxu0 0.0
    %1608 = vmatpush1.msra.mxu0 0.0
    %1609 = vmatprep.subr.mxu0 0.0
    %1610 = vmatpush1.msra.mxu0 0.0
    %1611 = vmatprep.subr.mxu0 0.0
    %1612 = vmatpush1.msra.mxu0 0.0
    %1613 = vmatprep.subr.mxu0 0.0
    %1614 = vmatpush1.msra.mxu0 0.0
    %1615 = vmatprep.subr.mxu0 0.0
    %1616 = vmatpush1.msra.mxu0 0.0
    %1617 = vmatprep.subr.mxu0 0.0
    %1618 = vmatpush1.msra.mxu0 0.0
    %1619 = vmatprep.mubr.f32.mxu0 0.0
    %1620 = vmatmul.mubr.f32.gmra.mrb[0].mxu0 %v1553
    %v1621 = vpop.f32.mrb[0].mxu0
    %v1622 = vadd.f32 %v1547, %v1621
    %v1623 = vpop.f32.mrb[0].mxu0
    %1624 = vdwg.mxu0
    %v1625 = vadd.f32 %v1622, %v461
    %v1626 = vxor.u32 %v1625, 2147483648
    %v1627 = vmul.f32 %v1626, 1.442695
    %v1628 = vpow.pop %v1627
    %v1629 = vadd.f32 %v1628, 1.0
    %v1630 = vrcp.pop %v1629
    %v1631 = vmul.f32 1.0, %v1630
    %v1632 = vtanh.pop %v1625
    %v1633 = vmul.f32 %v1631, %v1358
    %1635 = vrot.lane.b32.xlu0 %v1632, 64
    %v1636 = vpop.permute.xlu0 %1635
    %v1638 = vmul.f32 %v1631, %v1636
    %1640 = vrot.lane.b32.xlu0 %v1638, 32
    %v1641 = vpop.permute.xlu0 %1640
    %v1643 = vadd.f32 %v1633, %v1641
    %v1644 = vtanh.pop %v1643
    %1646 = vrot.lane.b32.xlu0 %v1644, 64
    %v1647 = vpop.permute.xlu0 %1646
    %v1649 = vmul.f32 %v1631, %v1647
    %v1650 = vmul.f32 %v1649, %v494
    %1652 = vrot.lane.b32.xlu0 %v1650, 32
    %v1653 = vpop.permute.xlu0 %1652
    %v1655 = vsel %vm501, %v1653, 0.0
    %1656 = vadd.xlane.f32.xlu0 %v1655
    %v1657 = vpop.xlane.xlu0 %1656
    %v1658 = vadd.f32 %v1657, %v505
    %vm1659 = vcmp.eq.s32.totalorder %v213, 4
    %v1660 = vsel %vm1659, %v1658, 0.0
    %v1661 = vadd.f32 %v1376, %v1660
    %1662 = vmatprep.subr.mxu0 0.0
    %1663 = vmatpush1.msra.mxu0 %v197
    %1664 = vmatprep.subr.mxu0 0.0
    %1665 = vmatpush1.msra.mxu0 %v198
    %1666 = vmatprep.subr.mxu0 0.0
    %1667 = vmatpush1.msra.mxu0 %v199
    %1668 = vmatprep.subr.mxu0 0.0
    %1669 = vmatpush1.msra.mxu0 %v200
    %1670 = vmatprep.subr.mxu0 0.0
    %1671 = vmatpush1.msra.mxu0 0.0
    %1672 = vmatprep.subr.mxu0 0.0
    %1673 = vmatpush1.msra.mxu0 0.0
    %1674 = vmatprep.subr.mxu0 0.0
    %1675 = vmatpush1.msra.mxu0 0.0
    %1676 = vmatprep.subr.mxu0 0.0
    %1677 = vmatpush1.msra.mxu0 0.0
    %1678 = vmatprep.subr.mxu0 0.0
    %1679 = vmatpush1.msra.mxu0 0.0
    %1680 = vmatprep.subr.mxu0 0.0
    %1681 = vmatpush1.msra.mxu0 0.0
    %1682 = vmatprep.subr.mxu0 0.0
    %1683 = vmatpush1.msra.mxu0 0.0
    %1684 = vmatprep.subr.mxu0 0.0
    %1685 = vmatpush1.msra.mxu0 0.0
    %1686 = vmatprep.subr.mxu0 0.0
    %1687 = vmatpush1.msra.mxu0 0.0
    %1688 = vmatprep.subr.mxu0 0.0
    %1689 = vmatpush1.msra.mxu0 0.0
    %1690 = vmatprep.subr.mxu0 0.0
    %1691 = vmatpush1.msra.mxu0 0.0
    %1692 = vmatprep.subr.mxu0 0.0
    %1693 = vmatpush1.msra.mxu0 0.0
    %1694 = vmatprep.subr.mxu0 0.0
    %1695 = vmatpush1.msra.mxu0 0.0
    %1696 = vmatprep.subr.mxu0 0.0
    %1697 = vmatpush1.msra.mxu0 0.0
    %1698 = vmatprep.subr.mxu0 0.0
    %1699 = vmatpush1.msra.mxu0 0.0
    %1700 = vmatprep.subr.mxu0 0.0
    %1701 = vmatpush1.msra.mxu0 0.0
    %1702 = vmatprep.subr.mxu0 0.0
    %1703 = vmatpush1.msra.mxu0 0.0
    %1704 = vmatprep.subr.mxu0 0.0
    %1705 = vmatpush1.msra.mxu0 0.0
    %1706 = vmatprep.subr.mxu0 0.0
    %1707 = vmatpush1.msra.mxu0 0.0
    %1708 = vmatprep.subr.mxu0 0.0
    %1709 = vmatpush1.msra.mxu0 0.0
    %1710 = vmatprep.subr.mxu0 0.0
    %1711 = vmatpush1.msra.mxu0 0.0
    %1712 = vmatprep.subr.mxu0 0.0
    %1713 = vmatpush1.msra.mxu0 0.0
    %1714 = vmatprep.subr.mxu0 0.0
    %1715 = vmatpush1.msra.mxu0 0.0
    %1716 = vmatprep.subr.mxu0 0.0
    %1717 = vmatpush1.msra.mxu0 0.0
    %1718 = vmatprep.subr.mxu0 0.0
    %1719 = vmatpush1.msra.mxu0 0.0
    %1720 = vmatprep.subr.mxu0 0.0
    %1721 = vmatpush1.msra.mxu0 0.0
    %1722 = vmatprep.subr.mxu0 0.0
    %1723 = vmatpush1.msra.mxu0 0.0
    %1724 = vmatprep.subr.mxu0 0.0
    %1725 = vmatpush1.msra.mxu0 0.0
    %1726 = vmatprep.mubr.f32.mxu0 0.0
    %1727 = vmatmul.mubr.f32.gmra.mrb[0].mxu0 %v1553
    %v1728 = vpop.f32.mrb[0].mxu0
    %v1729 = vadd.f32 0.0, %v1728
    %v1730 = vpop.f32.mrb[0].mxu0
    %1731 = vdwg.mxu0
    %v1733 = vrot.slane %v1729, 6
    %v1735 = vadd.f32 %v194, %v1733
    %v1736 = vxor.u32 %v1735, 2147483648
    %v1737 = vmul.f32 %v1736, 1.442695
    %v1738 = vpow.pop %v1737
    %v1739 = vadd.f32 %v1738, 1.0
    %v1740 = vrcp.pop %v1739
    %v1741 = vmul.f32 1.0, %v1740
    %v1742 = vtanh.pop %v1735
    %v1744 = vrot.slane %v1468, 6
    %v1746 = vmul.f32 %v1741, %v1744
    %1748 = vrot.lane.b32.xlu0 %v1742, 64
    %v1749 = vpop.permute.xlu0 %1748
    %v1751 = vmul.f32 %v1741, %v1749
    %1753 = vrot.lane.b32.xlu0 %v1751, 32
    %v1754 = vpop.permute.xlu0 %1753
    %v1756 = vadd.f32 %v1746, %v1754
    %v1757 = vtanh.pop %v1756
    %1759 = vrot.lane.b32.xlu0 %v1757, 64
    %v1760 = vpop.permute.xlu0 %1759
    %v1762 = vmul.f32 %v1741, %v1760
    %1764 = vrot.lane.b32.xlu0 %v1649, 32
    %v1765 = vpop.permute.xlu0 %1764
    %v1766 = vsel %vm115, %v1765, 0
    %1768 = vmatprep.subr.mxu0 0.0
    %1769 = vmatpush1.msra.mxu0 %v205
    %1770 = vmatprep.subr.mxu0 0.0
    %1771 = vmatpush1.msra.mxu0 %v206
    %1772 = vmatprep.subr.mxu0 0.0
    %1773 = vmatpush1.msra.mxu0 %v207
    %1774 = vmatprep.subr.mxu0 0.0
    %1775 = vmatpush1.msra.mxu0 %v208
    %1776 = vmatprep.subr.mxu0 0.0
    %1777 = vmatpush1.msra.mxu0 0.0
    %1778 = vmatprep.subr.mxu0 0.0
    %1779 = vmatpush1.msra.mxu0 0.0
    %1780 = vmatprep.subr.mxu0 0.0
    %1781 = vmatpush1.msra.mxu0 0.0
    %1782 = vmatprep.subr.mxu0 0.0
    %1783 = vmatpush1.msra.mxu0 0.0
    %1784 = vmatprep.subr.mxu0 0.0
    %1785 = vmatpush1.msra.mxu0 0.0
    %1786 = vmatprep.subr.mxu0 0.0
    %1787 = vmatpush1.msra.mxu0 0.0
    %1788 = vmatprep.subr.mxu0 0.0
    %1789 = vmatpush1.msra.mxu0 0.0
    %1790 = vmatprep.subr.mxu0 0.0
    %1791 = vmatpush1.msra.mxu0 0.0
    %1792 = vmatprep.subr.mxu0 0.0
    %1793 = vmatpush1.msra.mxu0 0.0
    %1794 = vmatprep.subr.mxu0 0.0
    %1795 = vmatpush1.msra.mxu0 0.0
    %1796 = vmatprep.subr.mxu0 0.0
    %1797 = vmatpush1.msra.mxu0 0.0
    %1798 = vmatprep.subr.mxu0 0.0
    %1799 = vmatpush1.msra.mxu0 0.0
    %1800 = vmatprep.subr.mxu0 0.0
    %1801 = vmatpush1.msra.mxu0 0.0
    %1802 = vmatprep.subr.mxu0 0.0
    %1803 = vmatpush1.msra.mxu0 0.0
    %1804 = vmatprep.subr.mxu0 0.0
    %1805 = vmatpush1.msra.mxu0 0.0
    %1806 = vmatprep.subr.mxu0 0.0
    %1807 = vmatpush1.msra.mxu0 0.0
    %1808 = vmatprep.subr.mxu0 0.0
    %1809 = vmatpush1.msra.mxu0 0.0
    %1810 = vmatprep.subr.mxu0 0.0
    %1811 = vmatpush1.msra.mxu0 0.0
    %1812 = vmatprep.subr.mxu0 0.0
    %1813 = vmatpush1.msra.mxu0 0.0
    %1814 = vmatprep.subr.mxu0 0.0
    %1815 = vmatpush1.msra.mxu0 0.0
    %1816 = vmatprep.subr.mxu0 0.0
    %1817 = vmatpush1.msra.mxu0 0.0
    %1818 = vmatprep.subr.mxu0 0.0
    %1819 = vmatpush1.msra.mxu0 0.0
    %1820 = vmatprep.subr.mxu0 0.0
    %1821 = vmatpush1.msra.mxu0 0.0
    %1822 = vmatprep.subr.mxu0 0.0
    %1823 = vmatpush1.msra.mxu0 0.0
    %1824 = vmatprep.subr.mxu0 0.0
    %1825 = vmatpush1.msra.mxu0 0.0
    %1826 = vmatprep.subr.mxu0 0.0
    %1827 = vmatpush1.msra.mxu0 0.0
    %1828 = vmatprep.subr.mxu0 0.0
    %1829 = vmatpush1.msra.mxu0 0.0
    %1830 = vmatprep.subr.mxu0 0.0
    %1831 = vmatpush1.msra.mxu0 0.0
    %1832 = vmatprep.mubr.f32.mxu0 0.0
    %1833 = vmatmul.mubr.f32.gmra.mrb[0].mxu0 %v1766
    %v1834 = vpop.f32.mrb[0].mxu0
    %v1835 = vadd.f32 0.0, %v1834
    %v1836 = vpop.f32.mrb[0].mxu0
    %1837 = vdwg.mxu0
    %v1839 = vrot.slane %v1762, 2
    %1840 = vrot.lane.b32.xlu0 %v1839, 32
    %v1841 = vpop.permute.xlu0 %1840
    %v1842 = vsel %vm115, %v1841, 0
    %1844 = vmatprep.subr.mxu0 0.0
    %1845 = vmatpush1.msra.mxu0 %v201
    %1846 = vmatprep.subr.mxu0 0.0
    %1847 = vmatpush1.msra.mxu0 %v202
    %1848 = vmatprep.subr.mxu0 0.0
    %1849 = vmatpush1.msra.mxu0 %v203
    %1850 = vmatprep.subr.mxu0 0.0
    %1851 = vmatpush1.msra.mxu0 %v204
    %1852 = vmatprep.subr.mxu0 0.0
    %1853 = vmatpush1.msra.mxu0 0.0
    %1854 = vmatprep.subr.mxu0 0.0
    %1855 = vmatpush1.msra.mxu0 0.0
    %1856 = vmatprep.subr.mxu0 0.0
    %1857 = vmatpush1.msra.mxu0 0.0
    %1858 = vmatprep.subr.mxu0 0.0
    %1859 = vmatpush1.msra.mxu0 0.0
    %1860 = vmatprep.subr.mxu0 0.0
    %1861 = vmatpush1.msra.mxu0 0.0
    %1862 = vmatprep.subr.mxu0 0.0
    %1863 = vmatpush1.msra.mxu0 0.0
    %1864 = vmatprep.subr.mxu0 0.0
    %1865 = vmatpush1.msra.mxu0 0.0
    %1866 = vmatprep.subr.mxu0 0.0
    %1867 = vmatpush1.msra.mxu0 0.0
    %1868 = vmatprep.subr.mxu0 0.0
    %1869 = vmatpush1.msra.mxu0 0.0
    %1870 = vmatprep.subr.mxu0 0.0
    %1871 = vmatpush1.msra.mxu0 0.0
    %1872 = vmatprep.subr.mxu0 0.0
    %1873 = vmatpush1.msra.mxu0 0.0
    %1874 = vmatprep.subr.mxu0 0.0
    %1875 = vmatpush1.msra.mxu0 0.0
    %1876 = vmatprep.subr.mxu0 0.0
    %1877 = vmatpush1.msra.mxu0 0.0
    %1878 = vmatprep.subr.mxu0 0.0
    %1879 = vmatpush1.msra.mxu0 0.0
    %1880 = vmatprep.subr.mxu0 0.0
    %1881 = vmatpush1.msra.mxu0 0.0
    %1882 = vmatprep.subr.mxu0 0.0
    %1883 = vmatpush1.msra.mxu0 0.0
    %1884 = vmatprep.subr.mxu0 0.0
    %1885 = vmatpush1.msra.mxu0 0.0
    %1886 = vmatprep.subr.mxu0 0.0
    %1887 = vmatpush1.msra.mxu0 0.0
    %1888 = vmatprep.subr.mxu0 0.0
    %1889 = vmatpush1.msra.mxu0 0.0
    %1890 = vmatprep.subr.mxu0 0.0
    %1891 = vmatpush1.msra.mxu0 0.0
    %1892 = vmatprep.subr.mxu0 0.0
    %1893 = vmatpush1.msra.mxu0 0.0
    %1894 = vmatprep.subr.mxu0 0.0
    %1895 = vmatpush1.msra.mxu0 0.0
    %1896 = vmatprep.subr.mxu0 0.0
    %1897 = vmatpush1.msra.mxu0 0.0
    %1898 = vmatprep.subr.mxu0 0.0
    %1899 = vmatpush1.msra.mxu0 0.0
    %1900 = vmatprep.subr.mxu0 0.0
    %1901 = vmatpush1.msra.mxu0 0.0
    %1902 = vmatprep.subr.mxu0 0.0
    %1903 = vmatpush1.msra.mxu0 0.0
    %1904 = vmatprep.subr.mxu0 0.0
    %1905 = vmatpush1.msra.mxu0 0.0
    %1906 = vmatprep.subr.mxu0 0.0
    %1907 = vmatpush1.msra.mxu0 0.0
    %1908 = vmatprep.mubr.f32.mxu0 0.0
    %1909 = vmatmul.mubr.f32.gmra.mrb[0].mxu0 %v1842
    %v1910 = vpop.f32.mrb[0].mxu0
    %v1911 = vadd.f32 %v1835, %v1910
    %v1912 = vpop.f32.mrb[0].mxu0
    %1913 = vdwg.mxu0
    %v1914 = vadd.f32 %v1911, %v461
    %v1915 = vxor.u32 %v1914, 2147483648
    %v1916 = vmul.f32 %v1915, 1.442695
    %v1917 = vpow.pop %v1916
    %v1918 = vadd.f32 %v1917, 1.0
    %v1919 = vrcp.pop %v1918
    %v1920 = vmul.f32 1.0, %v1919
    %v1921 = vtanh.pop %v1914
    %v1922 = vmul.f32 %v1920, %v1643
    %1924 = vrot.lane.b32.xlu0 %v1921, 64
    %v1925 = vpop.permute.xlu0 %1924
    %v1927 = vmul.f32 %v1920, %v1925
    %1929 = vrot.lane.b32.xlu0 %v1927, 32
    %v1930 = vpop.permute.xlu0 %1929
    %v1932 = vadd.f32 %v1922, %v1930
    %v1933 = vtanh.pop %v1932
    %1935 = vrot.lane.b32.xlu0 %v1933, 64
    %v1936 = vpop.permute.xlu0 %1935
    %v1938 = vmul.f32 %v1920, %v1936
    %v1939 = vmul.f32 %v1938, %v494
    %1941 = vrot.lane.b32.xlu0 %v1939, 32
    %v1942 = vpop.permute.xlu0 %1941
    %v1944 = vsel %vm501, %v1942, 0.0
    %1945 = vadd.xlane.f32.xlu0 %v1944
    %v1946 = vpop.xlane.xlu0 %1945
    %v1947 = vadd.f32 %v1946, %v505
    %vm1948 = vcmp.eq.s32.totalorder %v213, 5
    %v1949 = vsel %vm1948, %v1947, 0.0
    %v1950 = vadd.f32 %v1661, %v1949
    %1951 = vmatprep.subr.mxu0 0.0
    %1952 = vmatpush1.msra.mxu0 %v197
    %1953 = vmatprep.subr.mxu0 0.0
    %1954 = vmatpush1.msra.mxu0 %v198
    %1955 = vmatprep.subr.mxu0 0.0
    %1956 = vmatpush1.msra.mxu0 %v199
    %1957 = vmatprep.subr.mxu0 0.0
    %1958 = vmatpush1.msra.mxu0 %v200
    %1959 = vmatprep.subr.mxu0 0.0
    %1960 = vmatpush1.msra.mxu0 0.0
    %1961 = vmatprep.subr.mxu0 0.0
    %1962 = vmatpush1.msra.mxu0 0.0
    %1963 = vmatprep.subr.mxu0 0.0
    %1964 = vmatpush1.msra.mxu0 0.0
    %1965 = vmatprep.subr.mxu0 0.0
    %1966 = vmatpush1.msra.mxu0 0.0
    %1967 = vmatprep.subr.mxu0 0.0
    %1968 = vmatpush1.msra.mxu0 0.0
    %1969 = vmatprep.subr.mxu0 0.0
    %1970 = vmatpush1.msra.mxu0 0.0
    %1971 = vmatprep.subr.mxu0 0.0
    %1972 = vmatpush1.msra.mxu0 0.0
    %1973 = vmatprep.subr.mxu0 0.0
    %1974 = vmatpush1.msra.mxu0 0.0
    %1975 = vmatprep.subr.mxu0 0.0
    %1976 = vmatpush1.msra.mxu0 0.0
    %1977 = vmatprep.subr.mxu0 0.0
    %1978 = vmatpush1.msra.mxu0 0.0
    %1979 = vmatprep.subr.mxu0 0.0
    %1980 = vmatpush1.msra.mxu0 0.0
    %1981 = vmatprep.subr.mxu0 0.0
    %1982 = vmatpush1.msra.mxu0 0.0
    %1983 = vmatprep.subr.mxu0 0.0
    %1984 = vmatpush1.msra.mxu0 0.0
    %1985 = vmatprep.subr.mxu0 0.0
    %1986 = vmatpush1.msra.mxu0 0.0
    %1987 = vmatprep.subr.mxu0 0.0
    %1988 = vmatpush1.msra.mxu0 0.0
    %1989 = vmatprep.subr.mxu0 0.0
    %1990 = vmatpush1.msra.mxu0 0.0
    %1991 = vmatprep.subr.mxu0 0.0
    %1992 = vmatpush1.msra.mxu0 0.0
    %1993 = vmatprep.subr.mxu0 0.0
    %1994 = vmatpush1.msra.mxu0 0.0
    %1995 = vmatprep.subr.mxu0 0.0
    %1996 = vmatpush1.msra.mxu0 0.0
    %1997 = vmatprep.subr.mxu0 0.0
    %1998 = vmatpush1.msra.mxu0 0.0
    %1999 = vmatprep.subr.mxu0 0.0
    %2000 = vmatpush1.msra.mxu0 0.0
    %2001 = vmatprep.subr.mxu0 0.0
    %2002 = vmatpush1.msra.mxu0 0.0
    %2003 = vmatprep.subr.mxu0 0.0
    %2004 = vmatpush1.msra.mxu0 0.0
    %2005 = vmatprep.subr.mxu0 0.0
    %2006 = vmatpush1.msra.mxu0 0.0
    %2007 = vmatprep.subr.mxu0 0.0
    %2008 = vmatpush1.msra.mxu0 0.0
    %2009 = vmatprep.subr.mxu0 0.0
    %2010 = vmatpush1.msra.mxu0 0.0
    %2011 = vmatprep.subr.mxu0 0.0
    %2012 = vmatpush1.msra.mxu0 0.0
    %2013 = vmatprep.subr.mxu0 0.0
    %2014 = vmatpush1.msra.mxu0 0.0
    %2015 = vmatprep.mubr.f32.mxu0 0.0
    %2016 = vmatmul.mubr.f32.gmra.mrb[0].mxu0 %v1842
    %v2017 = vpop.f32.mrb[0].mxu0
    %v2018 = vadd.f32 0.0, %v2017
    %v2019 = vpop.f32.mrb[0].mxu0
    %2020 = vdwg.mxu0
    %v2022 = vrot.slane %v2018, 4
    %v2024 = vadd.f32 %v194, %v2022
    %v2025 = vxor.u32 %v2024, 2147483648
    %v2026 = vmul.f32 %v2025, 1.442695
    %v2027 = vpow.pop %v2026
    %v2028 = vadd.f32 %v2027, 1.0
    %v2029 = vrcp.pop %v2028
    %v2030 = vmul.f32 1.0, %v2029
    %v2031 = vtanh.pop %v2024
    %v2033 = vrot.slane %v1756, 6
    %v2035 = vmul.f32 %v2030, %v2033
    %2037 = vrot.lane.b32.xlu0 %v2031, 64
    %v2038 = vpop.permute.xlu0 %2037
    %v2040 = vmul.f32 %v2030, %v2038
    %2042 = vrot.lane.b32.xlu0 %v2040, 32
    %v2043 = vpop.permute.xlu0 %2042
    %v2045 = vadd.f32 %v2035, %v2043
    %v2046 = vtanh.pop %v2045
    %2048 = vrot.lane.b32.xlu0 %v2046, 64
    %v2049 = vpop.permute.xlu0 %2048
    %v2051 = vmul.f32 %v2030, %v2049
    %2053 = vrot.lane.b32.xlu0 %v1938, 32
    %v2054 = vpop.permute.xlu0 %2053
    %v2055 = vsel %vm115, %v2054, 0
    %2057 = vmatprep.subr.mxu0 0.0
    %2058 = vmatpush1.msra.mxu0 %v205
    %2059 = vmatprep.subr.mxu0 0.0
    %2060 = vmatpush1.msra.mxu0 %v206
    %2061 = vmatprep.subr.mxu0 0.0
    %2062 = vmatpush1.msra.mxu0 %v207
    %2063 = vmatprep.subr.mxu0 0.0
    %2064 = vmatpush1.msra.mxu0 %v208
    %2065 = vmatprep.subr.mxu0 0.0
    %2066 = vmatpush1.msra.mxu0 0.0
    %2067 = vmatprep.subr.mxu0 0.0
    %2068 = vmatpush1.msra.mxu0 0.0
    %2069 = vmatprep.subr.mxu0 0.0
    %2070 = vmatpush1.msra.mxu0 0.0
    %2071 = vmatprep.subr.mxu0 0.0
    %2072 = vmatpush1.msra.mxu0 0.0
    %2073 = vmatprep.subr.mxu0 0.0
    %2074 = vmatpush1.msra.mxu0 0.0
    %2075 = vmatprep.subr.mxu0 0.0
    %2076 = vmatpush1.msra.mxu0 0.0
    %2077 = vmatprep.subr.mxu0 0.0
    %2078 = vmatpush1.msra.mxu0 0.0
    %2079 = vmatprep.subr.mxu0 0.0
    %2080 = vmatpush1.msra.mxu0 0.0
    %2081 = vmatprep.subr.mxu0 0.0
    %2082 = vmatpush1.msra.mxu0 0.0
    %2083 = vmatprep.subr.mxu0 0.0
    %2084 = vmatpush1.msra.mxu0 0.0
    %2085 = vmatprep.subr.mxu0 0.0
    %2086 = vmatpush1.msra.mxu0 0.0
    %2087 = vmatprep.subr.mxu0 0.0
    %2088 = vmatpush1.msra.mxu0 0.0
    %2089 = vmatprep.subr.mxu0 0.0
    %2090 = vmatpush1.msra.mxu0 0.0
    %2091 = vmatprep.subr.mxu0 0.0
    %2092 = vmatpush1.msra.mxu0 0.0
    %2093 = vmatprep.subr.mxu0 0.0
    %2094 = vmatpush1.msra.mxu0 0.0
    %2095 = vmatprep.subr.mxu0 0.0
    %2096 = vmatpush1.msra.mxu0 0.0
    %2097 = vmatprep.subr.mxu0 0.0
    %2098 = vmatpush1.msra.mxu0 0.0
    %2099 = vmatprep.subr.mxu0 0.0
    %2100 = vmatpush1.msra.mxu0 0.0
    %2101 = vmatprep.subr.mxu0 0.0
    %2102 = vmatpush1.msra.mxu0 0.0
    %2103 = vmatprep.subr.mxu0 0.0
    %2104 = vmatpush1.msra.mxu0 0.0
    %2105 = vmatprep.subr.mxu0 0.0
    %2106 = vmatpush1.msra.mxu0 0.0
    %2107 = vmatprep.subr.mxu0 0.0
    %2108 = vmatpush1.msra.mxu0 0.0
    %2109 = vmatprep.subr.mxu0 0.0
    %2110 = vmatpush1.msra.mxu0 0.0
    %2111 = vmatprep.subr.mxu0 0.0
    %2112 = vmatpush1.msra.mxu0 0.0
    %2113 = vmatprep.subr.mxu0 0.0
    %2114 = vmatpush1.msra.mxu0 0.0
    %2115 = vmatprep.subr.mxu0 0.0
    %2116 = vmatpush1.msra.mxu0 0.0
    %2117 = vmatprep.subr.mxu0 0.0
    %2118 = vmatpush1.msra.mxu0 0.0
    %2119 = vmatprep.subr.mxu0 0.0
    %2120 = vmatpush1.msra.mxu0 0.0
    %2121 = vmatprep.mubr.f32.mxu0 0.0
    %2122 = vmatmul.mubr.f32.gmra.mrb[0].mxu0 %v2055
    %v2123 = vpop.f32.mrb[0].mxu0
    %v2124 = vadd.f32 0.0, %v2123
    %v2125 = vpop.f32.mrb[0].mxu0
    %2126 = vdwg.mxu0
    %v2128 = vrot.slane %v2051, 4
    %2129 = vrot.lane.b32.xlu0 %v2128, 32
    %v2130 = vpop.permute.xlu0 %2129
    %v2131 = vsel %vm115, %v2130, 0
    %2133 = vmatprep.subr.mxu0 0.0
    %2134 = vmatpush1.msra.mxu0 %v201
    %2135 = vmatprep.subr.mxu0 0.0
    %2136 = vmatpush1.msra.mxu0 %v202
    %2137 = vmatprep.subr.mxu0 0.0
    %2138 = vmatpush1.msra.mxu0 %v203
    %2139 = vmatprep.subr.mxu0 0.0
    %2140 = vmatpush1.msra.mxu0 %v204
    %2141 = vmatprep.subr.mxu0 0.0
    %2142 = vmatpush1.msra.mxu0 0.0
    %2143 = vmatprep.subr.mxu0 0.0
    %2144 = vmatpush1.msra.mxu0 0.0
    %2145 = vmatprep.subr.mxu0 0.0
    %2146 = vmatpush1.msra.mxu0 0.0
    %2147 = vmatprep.subr.mxu0 0.0
    %2148 = vmatpush1.msra.mxu0 0.0
    %2149 = vmatprep.subr.mxu0 0.0
    %2150 = vmatpush1.msra.mxu0 0.0
    %2151 = vmatprep.subr.mxu0 0.0
    %2152 = vmatpush1.msra.mxu0 0.0
    %2153 = vmatprep.subr.mxu0 0.0
    %2154 = vmatpush1.msra.mxu0 0.0
    %2155 = vmatprep.subr.mxu0 0.0
    %2156 = vmatpush1.msra.mxu0 0.0
    %2157 = vmatprep.subr.mxu0 0.0
    %2158 = vmatpush1.msra.mxu0 0.0
    %2159 = vmatprep.subr.mxu0 0.0
    %2160 = vmatpush1.msra.mxu0 0.0
    %2161 = vmatprep.subr.mxu0 0.0
    %2162 = vmatpush1.msra.mxu0 0.0
    %2163 = vmatprep.subr.mxu0 0.0
    %2164 = vmatpush1.msra.mxu0 0.0
    %2165 = vmatprep.subr.mxu0 0.0
    %2166 = vmatpush1.msra.mxu0 0.0
    %2167 = vmatprep.subr.mxu0 0.0
    %2168 = vmatpush1.msra.mxu0 0.0
    %2169 = vmatprep.subr.mxu0 0.0
    %2170 = vmatpush1.msra.mxu0 0.0
    %2171 = vmatprep.subr.mxu0 0.0
    %2172 = vmatpush1.msra.mxu0 0.0
    %2173 = vmatprep.subr.mxu0 0.0
    %2174 = vmatpush1.msra.mxu0 0.0
    %2175 = vmatprep.subr.mxu0 0.0
    %2176 = vmatpush1.msra.mxu0 0.0
    %2177 = vmatprep.subr.mxu0 0.0
    %2178 = vmatpush1.msra.mxu0 0.0
    %2179 = vmatprep.subr.mxu0 0.0
    %2180 = vmatpush1.msra.mxu0 0.0
    %2181 = vmatprep.subr.mxu0 0.0
    %2182 = vmatpush1.msra.mxu0 0.0
    %2183 = vmatprep.subr.mxu0 0.0
    %2184 = vmatpush1.msra.mxu0 0.0
    %2185 = vmatprep.subr.mxu0 0.0
    %2186 = vmatpush1.msra.mxu0 0.0
    %2187 = vmatprep.subr.mxu0 0.0
    %2188 = vmatpush1.msra.mxu0 0.0
    %2189 = vmatprep.subr.mxu0 0.0
    %2190 = vmatpush1.msra.mxu0 0.0
    %2191 = vmatprep.subr.mxu0 0.0
    %2192 = vmatpush1.msra.mxu0 0.0
    %2193 = vmatprep.subr.mxu0 0.0
    %2194 = vmatpush1.msra.mxu0 0.0
    %2195 = vmatprep.subr.mxu0 0.0
    %2196 = vmatpush1.msra.mxu0 0.0
    %2197 = vmatprep.mubr.f32.mxu0 0.0
    %2198 = vmatmul.mubr.f32.gmra.mrb[0].mxu0 %v2131
    %v2199 = vpop.f32.mrb[0].mxu0
    %v2200 = vadd.f32 %v2124, %v2199
    %v2201 = vpop.f32.mrb[0].mxu0
    %2202 = vdwg.mxu0
    %v2203 = vadd.f32 %v2200, %v461
    %v2204 = vxor.u32 %v2203, 2147483648
    %v2205 = vmul.f32 %v2204, 1.442695
    %v2206 = vpow.pop %v2205
    %v2207 = vadd.f32 %v2206, 1.0
    %v2208 = vrcp.pop %v2207
    %v2209 = vmul.f32 1.0, %v2208
    %v2210 = vtanh.pop %v2203
    %v2211 = vmul.f32 %v2209, %v1932
    %2213 = vrot.lane.b32.xlu0 %v2210, 64
    %v2214 = vpop.permute.xlu0 %2213
    %v2216 = vmul.f32 %v2209, %v2214
    %2218 = vrot.lane.b32.xlu0 %v2216, 32
    %v2219 = vpop.permute.xlu0 %2218
    %v2221 = vadd.f32 %v2211, %v2219
    %v2222 = vtanh.pop %v2221
    %2224 = vrot.lane.b32.xlu0 %v2222, 64
    %v2225 = vpop.permute.xlu0 %2224
    %v2227 = vmul.f32 %v2209, %v2225
    %v2228 = vmul.f32 %v2227, %v494
    %2230 = vrot.lane.b32.xlu0 %v2228, 32
    %v2231 = vpop.permute.xlu0 %2230
    %v2233 = vsel %vm501, %v2231, 0.0
    %2234 = vadd.xlane.f32.xlu0 %v2233
    %v2235 = vpop.xlane.xlu0 %2234
    %v2236 = vadd.f32 %v2235, %v505
    %vm2237 = vcmp.eq.s32.totalorder %v213, 6
    %v2238 = vsel %vm2237, %v2236, 0.0
    %v2239 = vadd.f32 %v1950, %v2238
    %2240 = vmatprep.subr.mxu0 0.0
    %2241 = vmatpush1.msra.mxu0 %v197
    %2242 = vmatprep.subr.mxu0 0.0
    %2243 = vmatpush1.msra.mxu0 %v198
    %2244 = vmatprep.subr.mxu0 0.0
    %2245 = vmatpush1.msra.mxu0 %v199
    %2246 = vmatprep.subr.mxu0 0.0
    %2247 = vmatpush1.msra.mxu0 %v200
    %2248 = vmatprep.subr.mxu0 0.0
    %2249 = vmatpush1.msra.mxu0 0.0
    %2250 = vmatprep.subr.mxu0 0.0
    %2251 = vmatpush1.msra.mxu0 0.0
    %2252 = vmatprep.subr.mxu0 0.0
    %2253 = vmatpush1.msra.mxu0 0.0
    %2254 = vmatprep.subr.mxu0 0.0
    %2255 = vmatpush1.msra.mxu0 0.0
    %2256 = vmatprep.subr.mxu0 0.0
    %2257 = vmatpush1.msra.mxu0 0.0
    %2258 = vmatprep.subr.mxu0 0.0
    %2259 = vmatpush1.msra.mxu0 0.0
    %2260 = vmatprep.subr.mxu0 0.0
    %2261 = vmatpush1.msra.mxu0 0.0
    %2262 = vmatprep.subr.mxu0 0.0
    %2263 = vmatpush1.msra.mxu0 0.0
    %2264 = vmatprep.subr.mxu0 0.0
    %2265 = vmatpush1.msra.mxu0 0.0
    %2266 = vmatprep.subr.mxu0 0.0
    %2267 = vmatpush1.msra.mxu0 0.0
    %2268 = vmatprep.subr.mxu0 0.0
    %2269 = vmatpush1.msra.mxu0 0.0
    %2270 = vmatprep.subr.mxu0 0.0
    %2271 = vmatpush1.msra.mxu0 0.0
    %2272 = vmatprep.subr.mxu0 0.0
    %2273 = vmatpush1.msra.mxu0 0.0
    %2274 = vmatprep.subr.mxu0 0.0
    %2275 = vmatpush1.msra.mxu0 0.0
    %2276 = vmatprep.subr.mxu0 0.0
    %2277 = vmatpush1.msra.mxu0 0.0
    %2278 = vmatprep.subr.mxu0 0.0
    %2279 = vmatpush1.msra.mxu0 0.0
    %2280 = vmatprep.subr.mxu0 0.0
    %2281 = vmatpush1.msra.mxu0 0.0
    %2282 = vmatprep.subr.mxu0 0.0
    %2283 = vmatpush1.msra.mxu0 0.0
    %2284 = vmatprep.subr.mxu0 0.0
    %2285 = vmatpush1.msra.mxu0 0.0
    %2286 = vmatprep.subr.mxu0 0.0
    %2287 = vmatpush1.msra.mxu0 0.0
    %2288 = vmatprep.subr.mxu0 0.0
    %2289 = vmatpush1.msra.mxu0 0.0
    %2290 = vmatprep.subr.mxu0 0.0
    %2291 = vmatpush1.msra.mxu0 0.0
    %2292 = vmatprep.subr.mxu0 0.0
    %2293 = vmatpush1.msra.mxu0 0.0
    %2294 = vmatprep.subr.mxu0 0.0
    %2295 = vmatpush1.msra.mxu0 0.0
    %2296 = vmatprep.subr.mxu0 0.0
    %2297 = vmatpush1.msra.mxu0 0.0
    %2298 = vmatprep.subr.mxu0 0.0
    %2299 = vmatpush1.msra.mxu0 0.0
    %2300 = vmatprep.subr.mxu0 0.0
    %2301 = vmatpush1.msra.mxu0 0.0
    %2302 = vmatprep.subr.mxu0 0.0
    %2303 = vmatpush1.msra.mxu0 0.0
    %2304 = vmatprep.mubr.f32.mxu0 0.0
    %2305 = vmatmul.mubr.f32.gmra.mrb[0].mxu0 %v2131
    %v2306 = vpop.f32.mrb[0].mxu0
    %v2307 = vadd.f32 0.0, %v2306
    %v2308 = vpop.f32.mrb[0].mxu0
    %2309 = vdwg.mxu0
    %v2311 = vrot.slane %v2307, 2
    %v2313 = vadd.f32 %v194, %v2311
    %v2314 = vxor.u32 %v2313, 2147483648
    %v2315 = vmul.f32 %v2314, 1.442695
    %v2316 = vpow.pop %v2315
    %v2317 = vadd.f32 %v2316, 1.0
    %v2318 = vrcp.pop %v2317
    %v2319 = vmul.f32 1.0, %v2318
    %v2320 = vtanh.pop %v2313
    %v2322 = vrot.slane %v2045, 6
    %v2324 = vmul.f32 %v2319, %v2322
    %2326 = vrot.lane.b32.xlu0 %v2320, 64
    %v2327 = vpop.permute.xlu0 %2326
    %v2329 = vmul.f32 %v2319, %v2327
    %2331 = vrot.lane.b32.xlu0 %v2329, 32
    %v2332 = vpop.permute.xlu0 %2331
    %v2334 = vadd.f32 %v2324, %v2332
    %v2335 = vtanh.pop %v2334
    %2337 = vrot.lane.b32.xlu0 %v2335, 64
    %v2338 = vpop.permute.xlu0 %2337
    %v2340 = vmul.f32 %v2319, %v2338
    %2342 = vrot.lane.b32.xlu0 %v2227, 32
    %v2343 = vpop.permute.xlu0 %2342
    %v2344 = vsel %vm115, %v2343, 0
    %2346 = vmatprep.subr.mxu0 0.0
    %2347 = vmatpush1.msra.mxu0 %v205
    %2348 = vmatprep.subr.mxu0 0.0
    %2349 = vmatpush1.msra.mxu0 %v206
    %2350 = vmatprep.subr.mxu0 0.0
    %2351 = vmatpush1.msra.mxu0 %v207
    %2352 = vmatprep.subr.mxu0 0.0
    %2353 = vmatpush1.msra.mxu0 %v208
    %2354 = vmatprep.subr.mxu0 0.0
    %2355 = vmatpush1.msra.mxu0 0.0
    %2356 = vmatprep.subr.mxu0 0.0
    %2357 = vmatpush1.msra.mxu0 0.0
    %2358 = vmatprep.subr.mxu0 0.0
    %2359 = vmatpush1.msra.mxu0 0.0
    %2360 = vmatprep.subr.mxu0 0.0
    %2361 = vmatpush1.msra.mxu0 0.0
    %2362 = vmatprep.subr.mxu0 0.0
    %2363 = vmatpush1.msra.mxu0 0.0
    %2364 = vmatprep.subr.mxu0 0.0
    %2365 = vmatpush1.msra.mxu0 0.0
    %2366 = vmatprep.subr.mxu0 0.0
    %2367 = vmatpush1.msra.mxu0 0.0
    %2368 = vmatprep.subr.mxu0 0.0
    %2369 = vmatpush1.msra.mxu0 0.0
    %2370 = vmatprep.subr.mxu0 0.0
    %2371 = vmatpush1.msra.mxu0 0.0
    %2372 = vmatprep.subr.mxu0 0.0
    %2373 = vmatpush1.msra.mxu0 0.0
    %2374 = vmatprep.subr.mxu0 0.0
    %2375 = vmatpush1.msra.mxu0 0.0
    %2376 = vmatprep.subr.mxu0 0.0
    %2377 = vmatpush1.msra.mxu0 0.0
    %2378 = vmatprep.subr.mxu0 0.0
    %2379 = vmatpush1.msra.mxu0 0.0
    %2380 = vmatprep.subr.mxu0 0.0
    %2381 = vmatpush1.msra.mxu0 0.0
    %2382 = vmatprep.subr.mxu0 0.0
    %2383 = vmatpush1.msra.mxu0 0.0
    %2384 = vmatprep.subr.mxu0 0.0
    %2385 = vmatpush1.msra.mxu0 0.0
    %2386 = vmatprep.subr.mxu0 0.0
    %2387 = vmatpush1.msra.mxu0 0.0
    %2388 = vmatprep.subr.mxu0 0.0
    %2389 = vmatpush1.msra.mxu0 0.0
    %2390 = vmatprep.subr.mxu0 0.0
    %2391 = vmatpush1.msra.mxu0 0.0
    %2392 = vmatprep.subr.mxu0 0.0
    %2393 = vmatpush1.msra.mxu0 0.0
    %2394 = vmatprep.subr.mxu0 0.0
    %2395 = vmatpush1.msra.mxu0 0.0
    %2396 = vmatprep.subr.mxu0 0.0
    %2397 = vmatpush1.msra.mxu0 0.0
    %2398 = vmatprep.subr.mxu0 0.0
    %2399 = vmatpush1.msra.mxu0 0.0
    %2400 = vmatprep.subr.mxu0 0.0
    %2401 = vmatpush1.msra.mxu0 0.0
    %2402 = vmatprep.subr.mxu0 0.0
    %2403 = vmatpush1.msra.mxu0 0.0
    %2404 = vmatprep.subr.mxu0 0.0
    %2405 = vmatpush1.msra.mxu0 0.0
    %2406 = vmatprep.subr.mxu0 0.0
    %2407 = vmatpush1.msra.mxu0 0.0
    %2408 = vmatprep.subr.mxu0 0.0
    %2409 = vmatpush1.msra.mxu0 0.0
    %2410 = vmatprep.mubr.f32.mxu0 0.0
    %2411 = vmatmul.mubr.f32.gmra.mrb[0].mxu0 %v2344
    %v2412 = vpop.f32.mrb[0].mxu0
    %v2413 = vadd.f32 0.0, %v2412
    %v2414 = vpop.f32.mrb[0].mxu0
    %2415 = vdwg.mxu0
    %v2417 = vrot.slane %v2340, 6
    %2418 = vrot.lane.b32.xlu0 %v2417, 32
    %v2419 = vpop.permute.xlu0 %2418
    %v2420 = vsel %vm115, %v2419, 0
    %2422 = vmatprep.subr.mxu0 0.0
    %2423 = vmatpush1.msra.mxu0 %v201
    %2424 = vmatprep.subr.mxu0 0.0
    %2425 = vmatpush1.msra.mxu0 %v202
    %2426 = vmatprep.subr.mxu0 0.0
    %2427 = vmatpush1.msra.mxu0 %v203
    %2428 = vmatprep.subr.mxu0 0.0
    %2429 = vmatpush1.msra.mxu0 %v204
    %2430 = vmatprep.subr.mxu0 0.0
    %2431 = vmatpush1.msra.mxu0 0.0
    %2432 = vmatprep.subr.mxu0 0.0
    %2433 = vmatpush1.msra.mxu0 0.0
    %2434 = vmatprep.subr.mxu0 0.0
    %2435 = vmatpush1.msra.mxu0 0.0
    %2436 = vmatprep.subr.mxu0 0.0
    %2437 = vmatpush1.msra.mxu0 0.0
    %2438 = vmatprep.subr.mxu0 0.0
    %2439 = vmatpush1.msra.mxu0 0.0
    %2440 = vmatprep.subr.mxu0 0.0
    %2441 = vmatpush1.msra.mxu0 0.0
    %2442 = vmatprep.subr.mxu0 0.0
    %2443 = vmatpush1.msra.mxu0 0.0
    %2444 = vmatprep.subr.mxu0 0.0
    %2445 = vmatpush1.msra.mxu0 0.0
    %2446 = vmatprep.subr.mxu0 0.0
    %2447 = vmatpush1.msra.mxu0 0.0
    %2448 = vmatprep.subr.mxu0 0.0
    %2449 = vmatpush1.msra.mxu0 0.0
    %2450 = vmatprep.subr.mxu0 0.0
    %2451 = vmatpush1.msra.mxu0 0.0
    %2452 = vmatprep.subr.mxu0 0.0
    %2453 = vmatpush1.msra.mxu0 0.0
    %2454 = vmatprep.subr.mxu0 0.0
    %2455 = vmatpush1.msra.mxu0 0.0
    %2456 = vmatprep.subr.mxu0 0.0
    %2457 = vmatpush1.msra.mxu0 0.0
    %2458 = vmatprep.subr.mxu0 0.0
    %2459 = vmatpush1.msra.mxu0 0.0
    %2460 = vmatprep.subr.mxu0 0.0
    %2461 = vmatpush1.msra.mxu0 0.0
    %2462 = vmatprep.subr.mxu0 0.0
    %2463 = vmatpush1.msra.mxu0 0.0
    %2464 = vmatprep.subr.mxu0 0.0
    %2465 = vmatpush1.msra.mxu0 0.0
    %2466 = vmatprep.subr.mxu0 0.0
    %2467 = vmatpush1.msra.mxu0 0.0
    %2468 = vmatprep.subr.mxu0 0.0
    %2469 = vmatpush1.msra.mxu0 0.0
    %2470 = vmatprep.subr.mxu0 0.0
    %2471 = vmatpush1.msra.mxu0 0.0
    %2472 = vmatprep.subr.mxu0 0.0
    %2473 = vmatpush1.msra.mxu0 0.0
    %2474 = vmatprep.subr.mxu0 0.0
    %2475 = vmatpush1.msra.mxu0 0.0
    %2476 = vmatprep.subr.mxu0 0.0
    %2477 = vmatpush1.msra.mxu0 0.0
    %2478 = vmatprep.subr.mxu0 0.0
    %2479 = vmatpush1.msra.mxu0 0.0
    %2480 = vmatprep.subr.mxu0 0.0
    %2481 = vmatpush1.msra.mxu0 0.0
    %2482 = vmatprep.subr.mxu0 0.0
    %2483 = vmatpush1.msra.mxu0 0.0
    %2484 = vmatprep.subr.mxu0 0.0
    %2485 = vmatpush1.msra.mxu0 0.0
    %2486 = vmatprep.mubr.f32.mxu0 0.0
    %2487 = vmatmul.mubr.f32.gmra.mrb[0].mxu0 %v2420
    %v2488 = vpop.f32.mrb[0].mxu0
    %v2489 = vadd.f32 %v2413, %v2488
    %v2490 = vpop.f32.mrb[0].mxu0
    %2491 = vdwg.mxu0
    %v2492 = vadd.f32 %v2489, %v461
    %v2493 = vxor.u32 %v2492, 2147483648
    %v2494 = vmul.f32 %v2493, 1.442695
    %v2495 = vpow.pop %v2494
    %v2496 = vadd.f32 %v2495, 1.0
    %v2497 = vrcp.pop %v2496
    %v2498 = vmul.f32 1.0, %v2497
    %v2499 = vtanh.pop %v2492
    %v2500 = vmul.f32 %v2498, %v2221
    %2502 = vrot.lane.b32.xlu0 %v2499, 64
    %v2503 = vpop.permute.xlu0 %2502
    %v2505 = vmul.f32 %v2498, %v2503
    %2507 = vrot.lane.b32.xlu0 %v2505, 32
    %v2508 = vpop.permute.xlu0 %2507
    %v2510 = vadd.f32 %v2500, %v2508
    %v2511 = vtanh.pop %v2510
    %2513 = vrot.lane.b32.xlu0 %v2511, 64
    %v2514 = vpop.permute.xlu0 %2513
    %v2516 = vmul.f32 %v2498, %v2514
    %v2517 = vmul.f32 %v2516, %v494
    %2519 = vrot.lane.b32.xlu0 %v2517, 32
    %v2520 = vpop.permute.xlu0 %2519
    %v2522 = vsel %vm501, %v2520, 0.0
    %2523 = vadd.xlane.f32.xlu0 %v2522
    %v2524 = vpop.xlane.xlu0 %2523
    %v2525 = vadd.f32 %v2524, %v505
    %vm2526 = vcmp.eq.s32.totalorder %v213, 7
    %v2527 = vsel %vm2526, %v2525, 0.0
    %v2528 = vadd.f32 %v2239, %v2527
    %vm2529 = vcmask 58368
    %2530 = vst.msk [vmem:[#allocation12] sm:$0x3] %vm2529, %v2528
    // Predicated region
    $region58: #{sequence_forward.1} parent=1 // pred_check
      _
    $region59: #{sequence_forward.1} parent=1 // pred_check_branch
      %2532 = sbr.rel (0) target = $region61
    $region60: #{sequence_forward.1} parent=1 // pred_region
      %s2534 = ssub.s32 32, 32
      %2535 = vsyncadd [#allocation5], %s2534
      %s2537 = sshll.u32 [#allocation12], 4
      %s2538 = int_to_ptr.vmem [resolvable:$true] %s2537
      %2540 = dma.vmem_to_hbm [thread:$0]  %s2538, 32, %s9, [#allocation5]
    $region61: #{sequence_forward.1} parent=1 // pred_fallthru
      _
    // Predicated region
    $region62: #{sequence_forward.1} parent=1 // pred_check
      _
    $region63: #{sequence_forward.1} parent=1 // pred_check_branch
      %2542 = sbr.rel (0) target = $region65
    $region64: #{sequence_forward.1} parent=1 // pred_region
      %2543 = dma.done [#allocation5], 32
    $region65: #{sequence_forward.1} parent=1 // pred_fallthru
      _
    %2544 = vsyncpa [#allocation4], 1
    %2545 = vsyncpa [#allocation7], 1
    %2546 = vsyncpa [#allocation10], 1
    %2547 = vsyncpa [#allocation5], 1

</llo_original>
